<compile_context>
chip_gen: v7x
topology: tpu7x:2x2x1
jax: 0.10.0
libtpu: 0.0.40
codegen_flags: <defaults>
</compile_context>

<pallas_src>
import functools

import jax
import jax.numpy as jnp
from jax.experimental import pallas as pl
from jax.experimental.pallas import tpu as pltpu


# ----------------------------- Fused kernel ---------------------------------
def fused_bottleneck_kernel(x_ref, w1_ref, w2_ref, fc1w_ref, fc2w_ref, w3_ref,
                            bias_ref, o_ref, ypad_ref, *, H, W):
    # x_ref   : (NB, HW, Cin)      f32  (residual input; Cin == Cout, no downsample)
    # w1_ref  : (Cin, Cg)          bf16 (bn1 scale folded in)
    # w2_ref  : (9*Cg, Cg)         bf16 (tap-major K: k = t*Cg + c_in, t = kh*3+kw;
    #                                    SplAt bn0 scale folded in)
    # fc1w_ref: (Cg, I)            f32  (SplAt bn1 scale folded in)
    # fc2w_ref: (I, Cg)            f32
    # w3_ref  : (Cg, Cout)         bf16 (bn3 scale folded in)
    # bias_ref: (8, 128)           f32  packed per-channel biases (rows: b1, b0,
    #                                   fc1b*sfc+bfc, fc2b, b3)
    # ypad_ref: (NB, H+2, W+2, Cg) f32  VMEM scratch (zero halo + conv1 output)
    NB, HW, Cin = x_ref.shape
    Cg = w1_ref.shape[1]
    I = fc1w_ref.shape[1]
    Cout = w3_ref.shape[1]

    b1 = bias_ref[0:1, 0:Cg]        # bn1 bias
    b0 = bias_ref[1:2, 0:Cg]        # SplAt bn0 bias
    bfc = bias_ref[2:3, 0:I]        # fc1 bias folded with SplAt bn1
    b2 = bias_ref[3:4, 0:Cg]        # fc2 bias
    b3 = bias_ref[4:5, 0:Cout]      # bn3 bias

    # ---- conv1 (1x1, bias=False) + bn1 + ReLU  (M = NB*HW) ------------------
    x = x_ref[...].reshape(NB * HW, Cin)                           # f32; also residual
    h1 = jnp.dot(x.astype(jnp.bfloat16), w1_ref[...],
                 preferred_element_type=jnp.float32)               # (M, Cg)
    y1 = jnp.maximum(h1 + b1, 0.0)

    # ---- im2col glue in VMEM: halo-only zero + interior write ---------------
    # Re-zero the halo every grid step (scratch is per-core under megacore);
    # the interior is fully overwritten so a full memset would be wasted stores.
    zrow = jnp.zeros((NB, 1, W + 2, Cg), jnp.float32)
    zcol = jnp.zeros((NB, H, 1, Cg), jnp.float32)
    ypad_ref[:, 0:1, :, :] = zrow
    ypad_ref[:, H + 1:H + 2, :, :] = zrow
    ypad_ref[:, 1:H + 1, 0:1, :] = zcol
    ypad_ref[:, 1:H + 1, W + 1:W + 2, :] = zcol
    ypad_ref[:, 1:H + 1, 1:W + 1, :] = y1.reshape(NB, H, W, Cg)

    # 9 shifted 3x3 taps, cast to bf16 at read so the concat and the (M, 9*Cg)
    # conv2 operand are assembled directly in the MXU input dtype.
    taps = [ypad_ref[:, dh:dh + H, dw:dw + W, :].astype(jnp.bfloat16)
            for dh in range(3) for dw in range(3)]                 # 9 x (NB,H,W,Cg)
    big = jnp.concatenate(taps, axis=-1).reshape(NB * HW, 9 * Cg)  # (M, 9Cg) bf16

    # ---- conv2: single (M, 9Cg) @ (9Cg, Cg) MXU matmul + bn0 + ReLU ---------
    u = jnp.dot(big, w2_ref[...], preferred_element_type=jnp.float32)
    u = jnp.maximum(u + b0, 0.0)                                   # (M, Cg)

    # ---- split-attention (radix=1), per image -------------------------------
    u3 = u.reshape(NB, HW, Cg)
    gap = jnp.mean(u3, axis=1)                                     # (NB, Cg)
    # Tiny M=NB dots: keep in f32 (latency path only, no MXU benefit expected).
    g = jnp.maximum(
        jnp.dot(gap, fc1w_ref[...], preferred_element_type=jnp.float32) + bfc,
        0.0)                                                       # (NB, I)
    att = jax.nn.sigmoid(
        jnp.dot(g, fc2w_ref[...], preferred_element_type=jnp.float32) + b2)
    v = (u3 * att.reshape(NB, 1, Cg)).reshape(NB * HW, Cg)         # scale per image

    # ---- conv3 (1x1) + bn3 + residual add + ReLU ----------------------------
    y = jnp.dot(v.astype(jnp.bfloat16), w3_ref[...],
                preferred_element_type=jnp.float32)                # (M, Cout)
    y = y + b3 + x
    o_ref[...] = jnp.maximum(y, 0.0).reshape(NB, HW, Cout).astype(o_ref.dtype)


# ----------------------------- Wrapper --------------------------------------
def _images_per_block(N):
    """NB images per grid step.

    v7x has two TensorCores: one image block per core (grid "parallel" axis).
    v5e/v6e are single-core: a single grid step (M = N*H*W) avoids per-step
    overhead and better feeds the MXU.
    """
    try:
        kind = jax.devices()[0].device_kind.lower()
    except Exception:  # pragma: no cover - defensive
        kind = ""
    if ("v7" in kind or "7x" in kind) and N % 2 == 0:
        return N // 2
    return N


@functools.partial(jax.jit, static_argnums=(2,))
def _bottleneck_forward(x_nchw, p, nb):
    N, Cin, H, W = x_nchw.shape
    HW = H * W
    Cg = p["w1"].shape[1]
    I = p["fc1w"].shape[1]
    Cout = p["w3"].shape[1]
    assert N % nb == 0

    # NCHW -> (N, H*W, C)  (channels on the lane dim); interface stays NCHW.
    x = jnp.transpose(x_nchw, (0, 2, 3, 1)).reshape(N, HW, Cin).astype(jnp.float32)

    # ---- param prep: fold BN scales into weights (in f32, then cast to bf16) ----
    w1 = (p["w1"] * p["s1"]).astype(jnp.bfloat16)                    # (Cin, Cg)
    w2 = (p["w2"].reshape(9 * Cg, Cg) * p["s0"]).astype(jnp.bfloat16)  # (9Cg, Cg)
    w3 = (p["w3"] * p["s3"]).astype(jnp.bfloat16)                    # (Cg, Cout)
    fc1w = (p["fc1w"] * p["sfc"]).astype(jnp.float32)                # (Cg, I)
    fc2w = p["fc2w"].astype(jnp.float32)                             # (I, Cg)

    # ---- pack the tiny per-channel bias vectors into ONE (8,128) operand ----
    bias = jnp.zeros((8, 128), jnp.float32)
    bias = bias.at[0, :Cg].set(p["b1"][0])
    bias = bias.at[1, :Cg].set(p["b0"][0])
    bias = bias.at[2, :I].set((p["fc1b"] * p["sfc"] + p["bfc"])[0])
    bias = bias.at[3, :Cg].set(p["fc2b"][0])
    bias = bias.at[4, :Cout].set(p["b3"][0])

    kernel = functools.partial(fused_bottleneck_kernel, H=H, W=W)
    rep = lambda g: (0, 0)   # replicated (weight / bias) operands

    out = pl.pallas_call(
        kernel,
        out_shape=jax.ShapeDtypeStruct((N, HW, Cout), jnp.float32),
        grid=(N // nb,),
        in_specs=[
            pl.BlockSpec((nb, HW, Cin), lambda g: (g, 0, 0)),   # x
            pl.BlockSpec((Cin, Cg), rep),                       # w1 bf16 (bn1 folded)
            pl.BlockSpec((9 * Cg, Cg), rep),                    # w2 bf16 (bn0 folded)
            pl.BlockSpec((Cg, I), rep),                         # fc1w (SplAt bn folded)
            pl.BlockSpec((I, Cg), rep),                         # fc2w
            pl.BlockSpec((Cg, Cout), rep),                      # w3 bf16 (bn3 folded)
            pl.BlockSpec((8, 128), rep),                        # packed biases
        ],
        out_specs=pl.BlockSpec((nb, HW, Cout), lambda g: (g, 0, 0)),
        scratch_shapes=[pltpu.VMEM((nb, H + 2, W + 2, Cg), jnp.float32)],
        compiler_params=pltpu.CompilerParams(
            dimension_semantics=("parallel",)),
    )(x, w1, w2, fc1w, fc2w, w3, bias)

    # (N, H*W, Cout) -> NCHW
    return jnp.transpose(out.reshape(N, H, W, Cout), (0, 3, 1, 2))


def bottleneck_forward(x_nchw, params):
    return _bottleneck_forward(x_nchw, params, _images_per_block(x_nchw.shape[0]))


# ----------------------------- Reference (plain JAX, f32) -------------------
def reference_forward(x_nchw, p):
    N, Cin, H, W = x_nchw.shape
    HW = H * W
    x = jnp.transpose(x_nchw, (0, 2, 3, 1)).reshape(N, HW, Cin).astype(jnp.float32)
    y1 = jnp.maximum(jnp.einsum("npc,cd->npd", x, p["w1"]) * p["s1"] + p["b1"], 0.0)
    Cg = y1.shape[-1]
    y1p = jnp.pad(y1.reshape(N, H, W, Cg), ((0, 0), (1, 1), (1, 1), (0, 0)))
    pats = jnp.stack(
        [y1p[:, dh:dh + H, dw:dw + W, :] for dh in range(3) for dw in range(3)],
        axis=1,
    ).reshape(N, 9, HW, Cg)
    u = jnp.einsum("ntpc,tcd->npd", pats, p["w2"])
    u = jnp.maximum(u * p["s0"] + p["b0"], 0.0)
    gap = jnp.mean(u, axis=1, keepdims=True)
    g = jnp.maximum((gap @ p["fc1w"] + p["fc1b"]) * p["sfc"] + p["bfc"], 0.0)
    att = jax.nn.sigmoid(g @ p["fc2w"] + p["fc2b"])
    v = u * att
    y = (v @ p["w3"]) * p["s3"] + p["b3"] + x
    y = jnp.maximum(y, 0.0)
    return jnp.transpose(y.reshape(N, H, W, -1), (0, 3, 1, 2))


# ----------------------------- Params ---------------------------------------
def make_params(key, Cin, Cout, Cg, I):
    ks = jax.random.split(key, 32)

    def nrm(k, shape, scale=0.05):
        return (scale * jax.random.normal(k, shape)).astype(jnp.float32)

    def bn_fold(k, C, eps=1e-5):
        kg, kb, km, kv = jax.random.split(k, 4)
        gamma = 1.0 + 0.1 * jax.random.normal(kg, (C,))
        beta = 0.1 * jax.random.normal(kb, (C,))
        mean = 0.1 * jax.random.normal(km, (C,))
        var = jnp.abs(1.0 + 0.1 * jax.random.normal(kv, (C,)))
        scale = gamma / jnp.sqrt(var + eps)
        bias = beta - mean * scale
        return (scale.reshape(1, C).astype(jnp.float32),
                bias.reshape(1, C).astype(jnp.float32))

    p = {}
    p["w1"] = nrm(ks[0], (Cin, Cg))                  # conv1 1x1 (bias=False)
    p["s1"], p["b1"] = bn_fold(ks[1], Cg)            # bn1
    p["w2"] = nrm(ks[2], (9, Cg, Cg))                # SplAt 3x3 conv: (tap, Cin, Cout),
    #   tap t = kh*3+kw matches PyTorch weight[:, :, kh, kw] (transposed to Cin,Cout)
    p["s0"], p["b0"] = bn_fold(ks[3], Cg)            # SplAt bn0
    p["fc1w"] = nrm(ks[4], (Cg, I))                  # fc1 1x1 (bias)
    p["fc1b"] = nrm(ks[5], (1, I))
    p["sfc"], p["bfc"] = bn_fold(ks[6], I)           # SplAt bn1
    p["fc2w"] = nrm(ks[7], (I, Cg))                  # fc2 1x1 (bias)
    p["fc2b"] = nrm(ks[8], (1, Cg))
    p["w3"] = nrm(ks[9], (Cg, Cout))                 # conv3 1x1 (bias=False)
    p["s3"], p["b3"] = bn_fold(ks[10], Cout)         # bn3
    return p


if __name__ == "__main__":
    # Bottleneck(64, 64, radix=1, cardinality=1, bottleneck_width=64,
    #            norm_layer=BatchNorm2d, down=False, is_first=False)
    N, Cin, H, W = 2, 64, 16, 16
    Cout = 64
    Cg = int(Cout * (64 / 64.0)) * 1                 # group_width = 64
    I = max(Cg * 1 // 4, 32)                         # inter_channels = 32

    key = jax.random.PRNGKey(0)
    kx, kp = jax.random.split(key)
    x = jax.random.normal(kx, (N, Cin, H, W), dtype=jnp.float32)
    params = make_params(kp, Cin, Cout, Cg, I)

    out = jax.block_until_ready(bottleneck_forward(x, params))
    ref = jax.block_until_ready(reference_forward(x, params))

    assert out.shape == (N, Cout, H, W)
    # Kernel uses bf16 matmul operands (with BN scales folded in f32 before the
    # bf16 cast) and f32 accumulation; reference is pure f32, so allow a
    # correspondingly looser (still tight in absolute terms) tolerance.
    assert jnp.allclose(out, ref, rtol=2e-2, atol=2e-2), "mismatch vs reference"

    print("KERNEL_OK")
</pallas_src>

<mosaic_0001>
module attributes {stable_mosaic.version = 11 : i64} {
  func.func @fused_bottleneck_kernel(%arg0: i32, %arg1: memref<2x256x64xf32, #tpu.memory_space<vmem>>, %arg2: memref<64x64xbf16, #tpu.memory_space<vmem>>, %arg3: memref<576x64xbf16, #tpu.memory_space<vmem>>, %arg4: memref<64x32xf32, #tpu.memory_space<vmem>>, %arg5: memref<32x64xf32, #tpu.memory_space<vmem>>, %arg6: memref<64x64xbf16, #tpu.memory_space<vmem>>, %arg7: memref<8x128xf32, #tpu.memory_space<vmem>>, %arg8: memref<2x256x64xf32, #tpu.memory_space<vmem>>, %arg9: memref<2x18x18x64xf32, #tpu.memory_space<vmem>>) attributes {dimension_semantics = [#tpu.dimension_semantics<parallel>], iteration_bounds = array<i64: 1>, scalar_prefetch = 0 : i64, scratch_operands = 1 : i64, tpu.core_type = #tpu.core_type<tc>, window_params = [{transform_indices = @transform_0, window_bounds = array<i64: 2, 256, 64>}, {pipeline_mode = #tpu.pipeline_mode<synchronous>, transform_indices = @transform_1, window_bounds = array<i64: 64, 64>}, {pipeline_mode = #tpu.pipeline_mode<synchronous>, transform_indices = @transform_2, window_bounds = array<i64: 576, 64>}, {pipeline_mode = #tpu.pipeline_mode<synchronous>, transform_indices = @transform_3, window_bounds = array<i64: 64, 32>}, {pipeline_mode = #tpu.pipeline_mode<synchronous>, transform_indices = @transform_4, window_bounds = array<i64: 32, 64>}, {pipeline_mode = #tpu.pipeline_mode<synchronous>, transform_indices = @transform_5, window_bounds = array<i64: 64, 64>}, {pipeline_mode = #tpu.pipeline_mode<synchronous>, transform_indices = @transform_6, window_bounds = array<i64: 8, 128>}, {transform_indices = @transform_7, window_bounds = array<i64: 2, 256, 64>}]} {
    %c0 = arith.constant 0 : index
    %c0_0 = arith.constant 0 : index
    %0 = vector.load %arg7[%c0, %c0_0] : memref<8x128xf32, #tpu.memory_space<vmem>>, vector<1x64xf32>
    %c1 = arith.constant 1 : index
    %c0_1 = arith.constant 0 : index
    %1 = vector.load %arg7[%c1, %c0_1] : memref<8x128xf32, #tpu.memory_space<vmem>>, vector<1x64xf32>
    %c2 = arith.constant 2 : index
    %c0_2 = arith.constant 0 : index
    %2 = vector.load %arg7[%c2, %c0_2] : memref<8x128xf32, #tpu.memory_space<vmem>>, vector<1x32xf32>
    %c3 = arith.constant 3 : index
    %c0_3 = arith.constant 0 : index
    %3 = vector.load %arg7[%c3, %c0_3] : memref<8x128xf32, #tpu.memory_space<vmem>>, vector<1x64xf32>
    %c4 = arith.constant 4 : index
    %c0_4 = arith.constant 0 : index
    %4 = vector.load %arg7[%c4, %c0_4] : memref<8x128xf32, #tpu.memory_space<vmem>>, vector<1x64xf32>
    %c0_5 = arith.constant 0 : index
    %c0_6 = arith.constant 0 : index
    %c0_7 = arith.constant 0 : index
    %5 = vector.load %arg1[%c0_5, %c0_6, %c0_7] : memref<2x256x64xf32, #tpu.memory_space<vmem>>, vector<2x256x64xf32>
    %6 = vector.shape_cast %5 : vector<2x256x64xf32> to vector<512x64xf32>
    %7 = arith.truncf %6 : vector<512x64xf32> to vector<512x64xbf16>
    %c0_8 = arith.constant 0 : index
    %c0_9 = arith.constant 0 : index
    %8 = vector.load %arg2[%c0_8, %c0_9] : memref<64x64xbf16, #tpu.memory_space<vmem>>, vector<64x64xbf16>
    %cst = arith.constant dense<0.000000e+00> : vector<512x64xf32>
    %9 = tpu.matmul %7, %8, %cst {dimension_numbers = #tpu.dot_dimension_numbers<[1], [0], [0], [1], [0, 0, 1, 1], [], []>} : vector<512x64xbf16>, vector<64x64xbf16>, vector<512x64xf32> -> vector<512x64xf32>
    %10 = vector.broadcast %0 : vector<1x64xf32> to vector<512x64xf32>
    %11 = arith.addf %9, %10 : vector<512x64xf32>
    %cst_10 = arith.constant 0.000000e+00 : f32
    %12 = vector.broadcast %cst_10 : f32 to vector<512x64xf32>
    %13 = arith.maximumf %11, %12 : vector<512x64xf32>
    %cst_11 = arith.constant 0.000000e+00 : f32
    %14 = vector.broadcast %cst_11 : f32 to vector<2x1x18x64xf32>
    %cst_12 = arith.constant 0.000000e+00 : f32
    %15 = vector.broadcast %cst_12 : f32 to vector<2x16x1x64xf32>
    %c0_13 = arith.constant 0 : index
    %c0_14 = arith.constant 0 : index
    %c0_15 = arith.constant 0 : index
    %c0_16 = arith.constant 0 : index
    %16 = vector.load %arg9[%c0_13, %c0_14, %c0_15, %c0_16] : memref<2x18x18x64xf32, #tpu.memory_space<vmem>>, vector<2x1x18x64xf32>
    tpu.vector_store %arg9[%c0_13, %c0_14, %c0_15, %c0_16], %14 {strides = array<i32>} : memref<2x18x18x64xf32, #tpu.memory_space<vmem>>, vector<2x1x18x64xf32>,
    %c0_17 = arith.constant 0 : index
    %c17 = arith.constant 17 : index
    %c0_18 = arith.constant 0 : index
    %c0_19 = arith.constant 0 : index
    %17 = vector.load %arg9[%c0_17, %c17, %c0_18, %c0_19] : memref<2x18x18x64xf32, #tpu.memory_space<vmem>>, vector<2x1x18x64xf32>
    tpu.vector_store %arg9[%c0_17, %c17, %c0_18, %c0_19], %14 {strides = array<i32>} : memref<2x18x18x64xf32, #tpu.memory_space<vmem>>, vector<2x1x18x64xf32>,
    %c0_20 = arith.constant 0 : index
    %c1_21 = arith.constant 1 : index
    %c0_22 = arith.constant 0 : index
    %c0_23 = arith.constant 0 : index
    %18 = vector.load %arg9[%c0_20, %c1_21, %c0_22, %c0_23] : memref<2x18x18x64xf32, #tpu.memory_space<vmem>>, vector<2x16x1x64xf32>
    tpu.vector_store %arg9[%c0_20, %c1_21, %c0_22, %c0_23], %15 {strides = array<i32>} : memref<2x18x18x64xf32, #tpu.memory_space<vmem>>, vector<2x16x1x64xf32>,
    %c0_24 = arith.constant 0 : index
    %c1_25 = arith.constant 1 : index
    %c17_26 = arith.constant 17 : index
    %c0_27 = arith.constant 0 : index
    %19 = vector.load %arg9[%c0_24, %c1_25, %c17_26, %c0_27] : memref<2x18x18x64xf32, #tpu.memory_space<vmem>>, vector<2x16x1x64xf32>
    tpu.vector_store %arg9[%c0_24, %c1_25, %c17_26, %c0_27], %15 {strides = array<i32>} : memref<2x18x18x64xf32, #tpu.memory_space<vmem>>, vector<2x16x1x64xf32>,
    %20 = vector.shape_cast %13 : vector<512x64xf32> to vector<2x16x16x64xf32>
    %c0_28 = arith.constant 0 : index
    %c1_29 = arith.constant 1 : index
    %c1_30 = arith.constant 1 : index
    %c0_31 = arith.constant 0 : index
    %21 = vector.load %arg9[%c0_28, %c1_29, %c1_30, %c0_31] : memref<2x18x18x64xf32, #tpu.memory_space<vmem>>, vector<2x16x16x64xf32>
    tpu.vector_store %arg9[%c0_28, %c1_29, %c1_30, %c0_31], %20 {strides = array<i32>} : memref<2x18x18x64xf32, #tpu.memory_space<vmem>>, vector<2x16x16x64xf32>,
    %c0_32 = arith.constant 0 : index
    %c0_33 = arith.constant 0 : index
    %c0_34 = arith.constant 0 : index
    %c0_35 = arith.constant 0 : index
    %22 = vector.load %arg9[%c0_32, %c0_33, %c0_34, %c0_35] : memref<2x18x18x64xf32, #tpu.memory_space<vmem>>, vector<2x16x16x64xf32>
    %23 = arith.truncf %22 : vector<2x16x16x64xf32> to vector<2x16x16x64xbf16>
    %c0_36 = arith.constant 0 : index
    %c0_37 = arith.constant 0 : index
    %c1_38 = arith.constant 1 : index
    %c0_39 = arith.constant 0 : index
    %24 = vector.load %arg9[%c0_36, %c0_37, %c1_38, %c0_39] : memref<2x18x18x64xf32, #tpu.memory_space<vmem>>, vector<2x16x16x64xf32>
    %25 = arith.truncf %24 : vector<2x16x16x64xf32> to vector<2x16x16x64xbf16>
    %c0_40 = arith.constant 0 : index
    %c0_41 = arith.constant 0 : index
    %c2_42 = arith.constant 2 : index
    %c0_43 = arith.constant 0 : index
    %26 = vector.load %arg9[%c0_40, %c0_41, %c2_42, %c0_43] : memref<2x18x18x64xf32, #tpu.memory_space<vmem>>, vector<2x16x16x64xf32>
    %27 = arith.truncf %26 : vector<2x16x16x64xf32> to vector<2x16x16x64xbf16>
    %c0_44 = arith.constant 0 : index
    %c1_45 = arith.constant 1 : index
    %c0_46 = arith.constant 0 : index
    %c0_47 = arith.constant 0 : index
    %28 = vector.load %arg9[%c0_44, %c1_45, %c0_46, %c0_47] : memref<2x18x18x64xf32, #tpu.memory_space<vmem>>, vector<2x16x16x64xf32>
    %29 = arith.truncf %28 : vector<2x16x16x64xf32> to vector<2x16x16x64xbf16>
    %c0_48 = arith.constant 0 : index
    %c1_49 = arith.constant 1 : index
    %c1_50 = arith.constant 1 : index
    %c0_51 = arith.constant 0 : index
    %30 = vector.load %arg9[%c0_48, %c1_49, %c1_50, %c0_51] : memref<2x18x18x64xf32, #tpu.memory_space<vmem>>, vector<2x16x16x64xf32>
    %31 = arith.truncf %30 : vector<2x16x16x64xf32> to vector<2x16x16x64xbf16>
    %c0_52 = arith.constant 0 : index
    %c1_53 = arith.constant 1 : index
    %c2_54 = arith.constant 2 : index
    %c0_55 = arith.constant 0 : index
    %32 = vector.load %arg9[%c0_52, %c1_53, %c2_54, %c0_55] : memref<2x18x18x64xf32, #tpu.memory_space<vmem>>, vector<2x16x16x64xf32>
    %33 = arith.truncf %32 : vector<2x16x16x64xf32> to vector<2x16x16x64xbf16>
    %c0_56 = arith.constant 0 : index
    %c2_57 = arith.constant 2 : index
    %c0_58 = arith.constant 0 : index
    %c0_59 = arith.constant 0 : index
    %34 = vector.load %arg9[%c0_56, %c2_57, %c0_58, %c0_59] : memref<2x18x18x64xf32, #tpu.memory_space<vmem>>, vector<2x16x16x64xf32>
    %35 = arith.truncf %34 : vector<2x16x16x64xf32> to vector<2x16x16x64xbf16>
    %c0_60 = arith.constant 0 : index
    %c2_61 = arith.constant 2 : index
    %c1_62 = arith.constant 1 : index
    %c0_63 = arith.constant 0 : index
    %36 = vector.load %arg9[%c0_60, %c2_61, %c1_62, %c0_63] : memref<2x18x18x64xf32, #tpu.memory_space<vmem>>, vector<2x16x16x64xf32>
    %37 = arith.truncf %36 : vector<2x16x16x64xf32> to vector<2x16x16x64xbf16>
    %c0_64 = arith.constant 0 : index
    %c2_65 = arith.constant 2 : index
    %c2_66 = arith.constant 2 : index
    %c0_67 = arith.constant 0 : index
    %38 = vector.load %arg9[%c0_64, %c2_65, %c2_66, %c0_67] : memref<2x18x18x64xf32, #tpu.memory_space<vmem>>, vector<2x16x16x64xf32>
    %39 = arith.truncf %38 : vector<2x16x16x64xf32> to vector<2x16x16x64xbf16>
    %40 = tpu.concatenate %23, %25, %27, %29, %31, %33, %35, %37, %39 in 3 : vector<2x16x16x64xbf16>, vector<2x16x16x64xbf16>, vector<2x16x16x64xbf16>, vector<2x16x16x64xbf16>, vector<2x16x16x64xbf16>, vector<2x16x16x64xbf16>, vector<2x16x16x64xbf16>, vector<2x16x16x64xbf16>, vector<2x16x16x64xbf16> -> vector<2x16x16x576xbf16>
    %41 = vector.shape_cast %40 : vector<2x16x16x576xbf16> to vector<512x576xbf16>
    %c0_68 = arith.constant 0 : index
    %c0_69 = arith.constant 0 : index
    %42 = vector.load %arg3[%c0_68, %c0_69] : memref<576x64xbf16, #tpu.memory_space<vmem>>, vector<576x64xbf16>
    %cst_70 = arith.constant dense<0.000000e+00> : vector<512x64xf32>
    %43 = tpu.matmul %41, %42, %cst_70 {dimension_numbers = #tpu.dot_dimension_numbers<[1], [0], [0], [1], [0, 0, 1, 1], [], []>} : vector<512x576xbf16>, vector<576x64xbf16>, vector<512x64xf32> -> vector<512x64xf32>
    %44 = vector.broadcast %1 : vector<1x64xf32> to vector<512x64xf32>
    %45 = arith.addf %43, %44 : vector<512x64xf32>
    %cst_71 = arith.constant 0.000000e+00 : f32
    %46 = vector.broadcast %cst_71 : f32 to vector<512x64xf32>
    %47 = arith.maximumf %45, %46 : vector<512x64xf32>
    %48 = vector.shape_cast %47 : vector<512x64xf32> to vector<2x256x64xf32>
    %cst_72 = arith.constant dense<0.000000e+00> : vector<2x64xf32>
    %49 = vector.multi_reduction <add>, %48, %cst_72 [1] : vector<2x256x64xf32> to vector<2x64xf32>
    %cst_73 = arith.constant 2.560000e+02 : f32
    %50 = vector.broadcast %cst_73 : f32 to vector<2x64xf32>
    %51 = arith.divf %49, %50 : vector<2x64xf32>
    %c0_74 = arith.constant 0 : index
    %c0_75 = arith.constant 0 : index
    %52 = vector.load %arg4[%c0_74, %c0_75] : memref<64x32xf32, #tpu.memory_space<vmem>>, vector<64x32xf32>
    %cst_76 = arith.constant dense<0.000000e+00> : vector<2x32xf32>
    %53 = tpu.matmul %51, %52, %cst_76 {dimension_numbers = #tpu.dot_dimension_numbers<[1], [0], [0], [1], [0, 0, 1, 1], [], []>} : vector<2x64xf32>, vector<64x32xf32>, vector<2x32xf32> -> vector<2x32xf32>
    %54 = vector.broadcast %2 : vector<1x32xf32> to vector<2x32xf32>
    %55 = arith.addf %53, %54 : vector<2x32xf32>
    %cst_77 = arith.constant 0.000000e+00 : f32
    %56 = vector.broadcast %cst_77 : f32 to vector<2x32xf32>
    %57 = arith.maximumf %55, %56 : vector<2x32xf32>
    %c0_78 = arith.constant 0 : index
    %c0_79 = arith.constant 0 : index
    %58 = vector.load %arg5[%c0_78, %c0_79] : memref<32x64xf32, #tpu.memory_space<vmem>>, vector<32x64xf32>
    %cst_80 = arith.constant dense<0.000000e+00> : vector<2x64xf32>
    %59 = tpu.matmul %57, %58, %cst_80 {dimension_numbers = #tpu.dot_dimension_numbers<[1], [0], [0], [1], [0, 0, 1, 1], [], []>} : vector<2x32xf32>, vector<32x64xf32>, vector<2x64xf32> -> vector<2x64xf32>
    %60 = vector.broadcast %3 : vector<1x64xf32> to vector<2x64xf32>
    %61 = arith.addf %59, %60 : vector<2x64xf32>
    %62 = arith.negf %61 : vector<2x64xf32>
    %63 = math.exp %62 : vector<2x64xf32>
    %cst_81 = arith.constant 1.000000e+00 : f32
    %64 = vector.broadcast %cst_81 : f32 to vector<2x64xf32>
    %65 = arith.addf %64, %63 : vector<2x64xf32>
    %66 = arith.divf %64, %65 : vector<2x64xf32>
    %67 = vector.shape_cast %66 : vector<2x64xf32> to vector<2x1x64xf32>
    %68 = vector.broadcast %67 : vector<2x1x64xf32> to vector<2x256x64xf32>
    %69 = arith.mulf %48, %68 : vector<2x256x64xf32>
    %70 = vector.shape_cast %69 : vector<2x256x64xf32> to vector<512x64xf32>
    %71 = arith.truncf %70 : vector<512x64xf32> to vector<512x64xbf16>
    %c0_82 = arith.constant 0 : index
    %c0_83 = arith.constant 0 : index
    %72 = vector.load %arg6[%c0_82, %c0_83] : memref<64x64xbf16, #tpu.memory_space<vmem>>, vector<64x64xbf16>
    %cst_84 = arith.constant dense<0.000000e+00> : vector<512x64xf32>
    %73 = tpu.matmul %71, %72, %cst_84 {dimension_numbers = #tpu.dot_dimension_numbers<[1], [0], [0], [1], [0, 0, 1, 1], [], []>} : vector<512x64xbf16>, vector<64x64xbf16>, vector<512x64xf32> -> vector<512x64xf32>
    %74 = vector.broadcast %4 : vector<1x64xf32> to vector<512x64xf32>
    %75 = arith.addf %73, %74 : vector<512x64xf32>
    %76 = arith.addf %75, %6 : vector<512x64xf32>
    %cst_85 = arith.constant 0.000000e+00 : f32
    %77 = vector.broadcast %cst_85 : f32 to vector<512x64xf32>
    %78 = arith.maximumf %76, %77 : vector<512x64xf32>
    %79 = vector.shape_cast %78 : vector<512x64xf32> to vector<2x256x64xf32>
    %c0_86 = arith.constant 0 : index
    %c0_87 = arith.constant 0 : index
    %c0_88 = arith.constant 0 : index
    %80 = vector.load %arg8[%c0_86, %c0_87, %c0_88] : memref<2x256x64xf32, #tpu.memory_space<vmem>>, vector<2x256x64xf32>
    tpu.vector_store %arg8[%c0_86, %c0_87, %c0_88], %79 {strides = array<i32>} : memref<2x256x64xf32, #tpu.memory_space<vmem>>, vector<2x256x64xf32>,
    return
  }
  func.func @transform_0(%arg0: i32) -> (i32, i32, i32) {
    %c0_i32 = arith.constant 0 : i32
    %c0_i32_0 = arith.constant 0 : i32
    %c0_i32_1 = arith.constant 0 : i32
    return %arg0, %c0_i32, %c0_i32_0 : i32, i32, i32
  }
  func.func @transform_1(%arg0: i32) -> (i32, i32) {
    %c0_i32 = arith.constant 0 : i32
    %c0_i32_0 = arith.constant 0 : i32
    %c0_i32_1 = arith.constant 0 : i32
    return %c0_i32, %c0_i32_0 : i32, i32
  }
  func.func @transform_2(%arg0: i32) -> (i32, i32) {
    %c0_i32 = arith.constant 0 : i32
    %c0_i32_0 = arith.constant 0 : i32
    %c0_i32_1 = arith.constant 0 : i32
    return %c0_i32, %c0_i32_0 : i32, i32
  }
  func.func @transform_3(%arg0: i32) -> (i32, i32) {
    %c0_i32 = arith.constant 0 : i32
    %c0_i32_0 = arith.constant 0 : i32
    %c0_i32_1 = arith.constant 0 : i32
    return %c0_i32, %c0_i32_0 : i32, i32
  }
  func.func @transform_4(%arg0: i32) -> (i32, i32) {
    %c0_i32 = arith.constant 0 : i32
    %c0_i32_0 = arith.constant 0 : i32
    %c0_i32_1 = arith.constant 0 : i32
    return %c0_i32, %c0_i32_0 : i32, i32
  }
  func.func @transform_5(%arg0: i32) -> (i32, i32) {
    %c0_i32 = arith.constant 0 : i32
    %c0_i32_0 = arith.constant 0 : i32
    %c0_i32_1 = arith.constant 0 : i32
    return %c0_i32, %c0_i32_0 : i32, i32
  }
  func.func @transform_6(%arg0: i32) -> (i32, i32) {
    %c0_i32 = arith.constant 0 : i32
    %c0_i32_0 = arith.constant 0 : i32
    %c0_i32_1 = arith.constant 0 : i32
    return %c0_i32, %c0_i32_0 : i32, i32
  }
  func.func @transform_7(%arg0: i32) -> (i32, i32, i32) {
    %c0_i32 = arith.constant 0 : i32
    %c0_i32_0 = arith.constant 0 : i32
    %c0_i32_1 = arith.constant 0 : i32
    return %arg0, %c0_i32, %c0_i32_0 : i32, i32, i32
  }
}

</mosaic_0001>

<llo_original>
// kernel: _bottleneck_forward.1
$region0: #{_bottleneck_forward.1}
  #allocation0 [shape = 'u32[]', space=smem, size = 0x4, offset = 0x4, fixed_abs, tag = 'smem constant byte address 0x4 - core index']
  #allocation1 [shape = 'u32[144,128]{1,0:T(1,128)}', space=vmem, size = 0x12000, scoped, tag = 'internal scratch']
  #allocation2 [shape = 'f32[2,18,18,64]{3,2,1,0:T(8,128)}', space=vmem, size = 0x6c000, scoped, tag = 'scratch operand']
  %s0 = inlined_call_operand.vmem [shape: f32[2,256,64], index: 0, kind: input, shape index: {}]
  %s1 = inlined_call_operand.vmem [shape: bf16[64,64], index: 1, kind: input, shape index: {}]
  %s2 = inlined_call_operand.vmem [shape: bf16[576,64], index: 2, kind: input, shape index: {}]
  %s3 = inlined_call_operand.vmem [shape: f32[64,32], index: 3, kind: input, shape index: {}]
  %s4 = inlined_call_operand.vmem [shape: f32[32,64], index: 4, kind: input, shape index: {}]
  %s5 = inlined_call_operand.vmem [shape: bf16[64,64], index: 5, kind: input, shape index: {}]
  %s6 = inlined_call_operand.vmem [shape: f32[8,128], index: 6, kind: input, shape index: {}]
  %s7 = inlined_call_operand.hbm [shape: f32[2,256,64], index: 7, kind: output, shape index: {}]
  %s8 = sld [smem:[#allocation0]]
  $region38: #{_bottleneck_forward.1} parent=0
    _
  %s10 = ssub.s32 1, %s8
  %s11 = scalar_select 0, %s10, %s8
  $region1: #{_bottleneck_forward.1} parent=0
    #allocation3 [shape = 'u8[262144]{0}', space=vmem, size = 0x40000, scoped, tag = 'output window, operand 0, single buffered']
    #allocation4 [shape = 's32[1]{0}', space=sflag, size = 0x4, scoped, tag = 'scoped memory for _bottleneck_forward.1']
    %12 = vsyncpa [#allocation4], 0
    // Predicated region
    $region2: #{_bottleneck_forward.1} parent=1 // pred_check
      _
    $region3: #{_bottleneck_forward.1} parent=1 // pred_check_branch
      %14 = sbr.rel (0) target = $region5
    $region4: #{_bottleneck_forward.1} parent=1 // pred_region
      _
    $region5: #{_bottleneck_forward.1} parent=1 // pred_fallthru
      _
    // Predicated region
    $region6: #{_bottleneck_forward.1} parent=1 // pred_check
      _
    $region7: #{_bottleneck_forward.1} parent=1 // pred_check_branch
      %16 = sbr.rel (0) target = $region9
    $region8: #{_bottleneck_forward.1} parent=1 // pred_region
      _
    $region9: #{_bottleneck_forward.1} parent=1 // pred_fallthru
      _
    // Predicated region
    $region10: #{_bottleneck_forward.1} parent=1 // pred_check
      _
    $region11: #{_bottleneck_forward.1} parent=1 // pred_check_branch
      %18 = sbr.rel (0) target = $region13
    $region12: #{_bottleneck_forward.1} parent=1 // pred_region
      _
    $region13: #{_bottleneck_forward.1} parent=1 // pred_fallthru
      _
    // Predicated region
    $region14: #{_bottleneck_forward.1} parent=1 // pred_check
      _
    $region15: #{_bottleneck_forward.1} parent=1 // pred_check_branch
      %20 = sbr.rel (0) target = $region17
    $region16: #{_bottleneck_forward.1} parent=1 // pred_region
      _
    $region17: #{_bottleneck_forward.1} parent=1 // pred_fallthru
      _
    // Predicated region
    $region18: #{_bottleneck_forward.1} parent=1 // pred_check
      _
    $region19: #{_bottleneck_forward.1} parent=1 // pred_check_branch
      %22 = sbr.rel (0) target = $region21
    $region20: #{_bottleneck_forward.1} parent=1 // pred_region
      _
    $region21: #{_bottleneck_forward.1} parent=1 // pred_fallthru
      _
    // Predicated region
    $region22: #{_bottleneck_forward.1} parent=1 // pred_check
      _
    $region23: #{_bottleneck_forward.1} parent=1 // pred_check_branch
      %24 = sbr.rel (0) target = $region25
    $region24: #{_bottleneck_forward.1} parent=1 // pred_region
      _
    $region25: #{_bottleneck_forward.1} parent=1 // pred_fallthru
      _
    // Predicated region
    $region26: #{_bottleneck_forward.1} parent=1 // pred_check
      _
    $region27: #{_bottleneck_forward.1} parent=1 // pred_check_branch
      %26 = sbr.rel (0) target = $region29
    $region28: #{_bottleneck_forward.1} parent=1 // pred_region
      _
    $region29: #{_bottleneck_forward.1} parent=1 // pred_fallthru
      _
    %v28 = vld [vmem:[%s6] sm:$0x1]
    %v29 = vld [vmem:[%s6 + $0x1] sm:$0x1]
    %v30 = vld [vmem:[%s6 + $0x2] sm:$0x1]
    %v31 = vld [vmem:[%s6 + $0x3] sm:$0x1]
    %v32 = vld [vmem:[%s6 + $0x4] sm:$0x1]
    %v33 = vld [vmem:[%s0] sm:$0xff]
    %v34 = vld [vmem:[%s0 + $0x8] sm:$0xff]
    %v35 = vld [vmem:[%s0 + $0x10] sm:$0xff]
    %v36 = vld [vmem:[%s0 + $0x18] sm:$0xff]
    %v37 = vld [vmem:[%s0 + $0x20] sm:$0xff]
    %v38 = vld [vmem:[%s0 + $0x28] sm:$0xff]
    %v39 = vld [vmem:[%s0 + $0x30] sm:$0xff]
    %v40 = vld [vmem:[%s0 + $0x38] sm:$0xff]
    %v41 = vld [vmem:[%s0 + $0x40] sm:$0xff]
    %v42 = vld [vmem:[%s0 + $0x48] sm:$0xff]
    %v43 = vld [vmem:[%s0 + $0x50] sm:$0xff]
    %v44 = vld [vmem:[%s0 + $0x58] sm:$0xff]
    %v45 = vld [vmem:[%s0 + $0x60] sm:$0xff]
    %v46 = vld [vmem:[%s0 + $0x68] sm:$0xff]
    %v47 = vld [vmem:[%s0 + $0x70] sm:$0xff]
    %v48 = vld [vmem:[%s0 + $0x78] sm:$0xff]
    %v49 = vld [vmem:[%s0 + $0x80] sm:$0xff]
    %v50 = vld [vmem:[%s0 + $0x88] sm:$0xff]
    %v51 = vld [vmem:[%s0 + $0x90] sm:$0xff]
    %v52 = vld [vmem:[%s0 + $0x98] sm:$0xff]
    %v53 = vld [vmem:[%s0 + $0xa0] sm:$0xff]
    %v54 = vld [vmem:[%s0 + $0xa8] sm:$0xff]
    %v55 = vld [vmem:[%s0 + $0xb0] sm:$0xff]
    %v56 = vld [vmem:[%s0 + $0xb8] sm:$0xff]
    %v57 = vld [vmem:[%s0 + $0xc0] sm:$0xff]
    %v58 = vld [vmem:[%s0 + $0xc8] sm:$0xff]
    %v59 = vld [vmem:[%s0 + $0xd0] sm:$0xff]
    %v60 = vld [vmem:[%s0 + $0xd8] sm:$0xff]
    %v61 = vld [vmem:[%s0 + $0xe0] sm:$0xff]
    %v62 = vld [vmem:[%s0 + $0xe8] sm:$0xff]
    %v63 = vld [vmem:[%s0 + $0xf0] sm:$0xff]
    %v64 = vld [vmem:[%s0 + $0xf8] sm:$0xff]
    %v65 = vld [vmem:[%s0 + $0x100] sm:$0xff]
    %v66 = vld [vmem:[%s0 + $0x108] sm:$0xff]
    %v67 = vld [vmem:[%s0 + $0x110] sm:$0xff]
    %v68 = vld [vmem:[%s0 + $0x118] sm:$0xff]
    %v69 = vld [vmem:[%s0 + $0x120] sm:$0xff]
    %v70 = vld [vmem:[%s0 + $0x128] sm:$0xff]
    %v71 = vld [vmem:[%s0 + $0x130] sm:$0xff]
    %v72 = vld [vmem:[%s0 + $0x138] sm:$0xff]
    %v73 = vld [vmem:[%s0 + $0x140] sm:$0xff]
    %v74 = vld [vmem:[%s0 + $0x148] sm:$0xff]
    %v75 = vld [vmem:[%s0 + $0x150] sm:$0xff]
    %v76 = vld [vmem:[%s0 + $0x158] sm:$0xff]
    %v77 = vld [vmem:[%s0 + $0x160] sm:$0xff]
    %v78 = vld [vmem:[%s0 + $0x168] sm:$0xff]
    %v79 = vld [vmem:[%s0 + $0x170] sm:$0xff]
    %v80 = vld [vmem:[%s0 + $0x178] sm:$0xff]
    %v81 = vld [vmem:[%s0 + $0x180] sm:$0xff]
    %v82 = vld [vmem:[%s0 + $0x188] sm:$0xff]
    %v83 = vld [vmem:[%s0 + $0x190] sm:$0xff]
    %v84 = vld [vmem:[%s0 + $0x198] sm:$0xff]
    %v85 = vld [vmem:[%s0 + $0x1a0] sm:$0xff]
    %v86 = vld [vmem:[%s0 + $0x1a8] sm:$0xff]
    %v87 = vld [vmem:[%s0 + $0x1b0] sm:$0xff]
    %v88 = vld [vmem:[%s0 + $0x1b8] sm:$0xff]
    %v89 = vld [vmem:[%s0 + $0x1c0] sm:$0xff]
    %v90 = vld [vmem:[%s0 + $0x1c8] sm:$0xff]
    %v91 = vld [vmem:[%s0 + $0x1d0] sm:$0xff]
    %v92 = vld [vmem:[%s0 + $0x1d8] sm:$0xff]
    %v93 = vld [vmem:[%s0 + $0x1e0] sm:$0xff]
    %v94 = vld [vmem:[%s0 + $0x1e8] sm:$0xff]
    %v95 = vld [vmem:[%s0 + $0x1f0] sm:$0xff]
    %v96 = vld [vmem:[%s0 + $0x1f8] sm:$0xff]
    %v97 = vpack.c.bf16 %v34, %v33
    %v98 = vpack.c.bf16 %v36, %v35
    %v99 = vpack.c.bf16 %v38, %v37
    %v100 = vpack.c.bf16 %v40, %v39
    %v101 = vpack.c.bf16 %v42, %v41
    %v102 = vpack.c.bf16 %v44, %v43
    %v103 = vpack.c.bf16 %v46, %v45
    %v104 = vpack.c.bf16 %v48, %v47
    %v105 = vpack.c.bf16 %v50, %v49
    %v106 = vpack.c.bf16 %v52, %v51
    %v107 = vpack.c.bf16 %v54, %v53
    %v108 = vpack.c.bf16 %v56, %v55
    %v109 = vpack.c.bf16 %v58, %v57
    %v110 = vpack.c.bf16 %v60, %v59
    %v111 = vpack.c.bf16 %v62, %v61
    %v112 = vpack.c.bf16 %v64, %v63
    %v113 = vpack.c.bf16 %v66, %v65
    %v114 = vpack.c.bf16 %v68, %v67
    %v115 = vpack.c.bf16 %v70, %v69
    %v116 = vpack.c.bf16 %v72, %v71
    %v117 = vpack.c.bf16 %v74, %v73
    %v118 = vpack.c.bf16 %v76, %v75
    %v119 = vpack.c.bf16 %v78, %v77
    %v120 = vpack.c.bf16 %v80, %v79
    %v121 = vpack.c.bf16 %v82, %v81
    %v122 = vpack.c.bf16 %v84, %v83
    %v123 = vpack.c.bf16 %v86, %v85
    %v124 = vpack.c.bf16 %v88, %v87
    %v125 = vpack.c.bf16 %v90, %v89
    %v126 = vpack.c.bf16 %v92, %v91
    %v127 = vpack.c.bf16 %v94, %v93
    %v128 = vpack.c.bf16 %v96, %v95
    %v129 = vld [vmem:[%s1] sm:$0xf]
    %v130 = vld [vmem:[%s1 + $0x4] sm:$0xf]
    %v131 = vld [vmem:[%s1 + $0x8] sm:$0xf]
    %v132 = vld [vmem:[%s1 + $0xc] sm:$0xf]
    %v133 = vld [vmem:[%s1 + $0x10] sm:$0xf]
    %v134 = vld [vmem:[%s1 + $0x14] sm:$0xf]
    %v135 = vld [vmem:[%s1 + $0x18] sm:$0xf]
    %v136 = vld [vmem:[%s1 + $0x1c] sm:$0xf]
    %v137 = vlaneseq
    %v138 = vshrl.u32 %v137, 7
    %v139 = vsub.s32 0, %v138
    %v140 = vrot.slane %v28, %v139
    %v149 = vunpack.c.l.b16 %v129
    %v150 = vunpack.c.l.b16 %v130
    %v151 = vunpack.c.l.b16 %v131
    %v152 = vunpack.c.l.b16 %v132
    %v153 = vunpack.c.l.b16 %v133
    %v154 = vunpack.c.l.b16 %v134
    %v155 = vunpack.c.l.b16 %v135
    %v156 = vunpack.c.l.b16 %v136
    %v157 = vpack.c.b16 %v150, %v149
    %v158 = vpack.c.b16 %v152, %v151
    %v159 = vpack.c.b16 %v154, %v153
    %v160 = vpack.c.b16 %v156, %v155
    %vm165 = vcmask 523264
    %v167 = vsel %vm165, %v97, 0
    %v170 = vsel %vm165, %v98, 0
    %v173 = vsel %vm165, %v99, 0
    %v176 = vsel %vm165, %v100, 0
    %v179 = vsel %vm165, %v101, 0
    %v182 = vsel %vm165, %v102, 0
    %v185 = vsel %vm165, %v103, 0
    %v188 = vsel %vm165, %v104, 0
    %v191 = vsel %vm165, %v105, 0
    %v194 = vsel %vm165, %v106, 0
    %v197 = vsel %vm165, %v107, 0
    %v200 = vsel %vm165, %v108, 0
    %v203 = vsel %vm165, %v109, 0
    %v206 = vsel %vm165, %v110, 0
    %v209 = vsel %vm165, %v111, 0
    %v212 = vsel %vm165, %v112, 0
    %v215 = vsel %vm165, %v113, 0
    %v218 = vsel %vm165, %v114, 0
    %v221 = vsel %vm165, %v115, 0
    %v224 = vsel %vm165, %v116, 0
    %v227 = vsel %vm165, %v117, 0
    %v230 = vsel %vm165, %v118, 0
    %v233 = vsel %vm165, %v119, 0
    %v236 = vsel %vm165, %v120, 0
    %v239 = vsel %vm165, %v121, 0
    %v242 = vsel %vm165, %v122, 0
    %v245 = vsel %vm165, %v123, 0
    %v248 = vsel %vm165, %v124, 0
    %v251 = vsel %vm165, %v125, 0
    %v254 = vsel %vm165, %v126, 0
    %v257 = vsel %vm165, %v127, 0
    %v260 = vsel %vm165, %v128, 0
    %262 = vmatprep.subr.bf16.mxu0 0
    %263 = vmatpush1.bf16.msra.mxu0 %v157
    %264 = vmatprep.subr.bf16.mxu0 0
    %265 = vmatpush1.bf16.msra.mxu0 %v158
    %266 = vmatprep.subr.bf16.mxu0 0
    %267 = vmatpush1.bf16.msra.mxu0 %v159
    %268 = vmatprep.subr.bf16.mxu0 0
    %269 = vmatpush1.bf16.msra.mxu0 %v160
    %270 = vmatprep.subr.bf16.mxu0 0
    %271 = vmatpush1.bf16.msra.mxu0 0
    %272 = vmatprep.subr.bf16.mxu0 0
    %273 = vmatpush1.bf16.msra.mxu0 0
    %274 = vmatprep.subr.bf16.mxu0 0
    %275 = vmatpush1.bf16.msra.mxu0 0
    %276 = vmatprep.subr.bf16.mxu0 0
    %277 = vmatpush1.bf16.msra.mxu0 0
    %278 = vmatprep.subr.bf16.mxu0 0
    %279 = vmatpush1.bf16.msra.mxu0 0
    %280 = vmatprep.subr.bf16.mxu0 0
    %281 = vmatpush1.bf16.msra.mxu0 0
    %282 = vmatprep.subr.bf16.mxu0 0
    %283 = vmatpush1.bf16.msra.mxu0 0
    %284 = vmatprep.subr.bf16.mxu0 0
    %285 = vmatpush1.bf16.msra.mxu0 0
    %286 = vmatprep.subr.bf16.mxu0 0
    %287 = vmatpush1.bf16.msra.mxu0 0
    %288 = vmatprep.subr.bf16.mxu0 0
    %289 = vmatpush1.bf16.msra.mxu0 0
    %290 = vmatprep.subr.bf16.mxu0 0
    %291 = vmatpush1.bf16.msra.mxu0 0
    %292 = vmatprep.subr.bf16.mxu0 0
    %293 = vmatpush1.bf16.msra.mxu0 0
    %294 = vmatprep.mubr.bf16.mxu0 0
    %295 = vmatmul.mubr.bf16.gmra.mrb[0].mxu0 %v167
    %v296 = vpop.f32.mrb[0].mxu0
    %v297 = vadd.f32 %v140, %v296
    %v298 = vpop.f32.mrb[0].mxu0
    %v299 = vpop.f32.mrb[0].mxu0
    %v300 = vadd.f32 %v140, %v299
    %v301 = vpop.f32.mrb[0].mxu0
    %302 = vmatprep.mubr.bf16.mxu0 0
    %303 = vmatmul.mubr.bf16.gmra.mrb[0].mxu0 %v170
    %v304 = vpop.f32.mrb[0].mxu0
    %v305 = vadd.f32 %v140, %v304
    %v306 = vpop.f32.mrb[0].mxu0
    %v307 = vpop.f32.mrb[0].mxu0
    %v308 = vadd.f32 %v140, %v307
    %v309 = vpop.f32.mrb[0].mxu0
    %310 = vmatprep.mubr.bf16.mxu0 0
    %311 = vmatmul.mubr.bf16.gmra.mrb[0].mxu0 %v173
    %v312 = vpop.f32.mrb[0].mxu0
    %v313 = vadd.f32 %v140, %v312
    %v314 = vpop.f32.mrb[0].mxu0
    %v315 = vpop.f32.mrb[0].mxu0
    %v316 = vadd.f32 %v140, %v315
    %v317 = vpop.f32.mrb[0].mxu0
    %318 = vmatprep.mubr.bf16.mxu0 0
    %319 = vmatmul.mubr.bf16.gmra.mrb[0].mxu0 %v176
    %v320 = vpop.f32.mrb[0].mxu0
    %v321 = vadd.f32 %v140, %v320
    %v322 = vpop.f32.mrb[0].mxu0
    %v323 = vpop.f32.mrb[0].mxu0
    %v324 = vadd.f32 %v140, %v323
    %v325 = vpop.f32.mrb[0].mxu0
    %326 = vmatprep.mubr.bf16.mxu0 0
    %327 = vmatmul.mubr.bf16.gmra.mrb[0].mxu0 %v179
    %v328 = vpop.f32.mrb[0].mxu0
    %v329 = vadd.f32 %v140, %v328
    %v330 = vpop.f32.mrb[0].mxu0
    %v331 = vpop.f32.mrb[0].mxu0
    %v332 = vadd.f32 %v140, %v331
    %v333 = vpop.f32.mrb[0].mxu0
    %334 = vmatprep.mubr.bf16.mxu0 0
    %335 = vmatmul.mubr.bf16.gmra.mrb[0].mxu0 %v182
    %v336 = vpop.f32.mrb[0].mxu0
    %v337 = vadd.f32 %v140, %v336
    %v338 = vpop.f32.mrb[0].mxu0
    %v339 = vpop.f32.mrb[0].mxu0
    %v340 = vadd.f32 %v140, %v339
    %v341 = vpop.f32.mrb[0].mxu0
    %342 = vmatprep.mubr.bf16.mxu0 0
    %343 = vmatmul.mubr.bf16.gmra.mrb[0].mxu0 %v185
    %v344 = vpop.f32.mrb[0].mxu0
    %v345 = vadd.f32 %v140, %v344
    %v346 = vpop.f32.mrb[0].mxu0
    %v347 = vpop.f32.mrb[0].mxu0
    %v348 = vadd.f32 %v140, %v347
    %v349 = vpop.f32.mrb[0].mxu0
    %350 = vmatprep.mubr.bf16.mxu0 0
    %351 = vmatmul.mubr.bf16.gmra.mrb[0].mxu0 %v188
    %v352 = vpop.f32.mrb[0].mxu0
    %v353 = vadd.f32 %v140, %v352
    %v354 = vpop.f32.mrb[0].mxu0
    %v355 = vpop.f32.mrb[0].mxu0
    %v356 = vadd.f32 %v140, %v355
    %v357 = vpop.f32.mrb[0].mxu0
    %358 = vmatprep.mubr.bf16.mxu0 0
    %359 = vmatmul.mubr.bf16.gmra.mrb[0].mxu0 %v191
    %v360 = vpop.f32.mrb[0].mxu0
    %v361 = vadd.f32 %v140, %v360
    %v362 = vpop.f32.mrb[0].mxu0
    %v363 = vpop.f32.mrb[0].mxu0
    %v364 = vadd.f32 %v140, %v363
    %v365 = vpop.f32.mrb[0].mxu0
    %366 = vmatprep.mubr.bf16.mxu0 0
    %367 = vmatmul.mubr.bf16.gmra.mrb[0].mxu0 %v194
    %v368 = vpop.f32.mrb[0].mxu0
    %v369 = vadd.f32 %v140, %v368
    %v370 = vpop.f32.mrb[0].mxu0
    %v371 = vpop.f32.mrb[0].mxu0
    %v372 = vadd.f32 %v140, %v371
    %v373 = vpop.f32.mrb[0].mxu0
    %374 = vmatprep.mubr.bf16.mxu0 0
    %375 = vmatmul.mubr.bf16.gmra.mrb[0].mxu0 %v197
    %v376 = vpop.f32.mrb[0].mxu0
    %v377 = vadd.f32 %v140, %v376
    %v378 = vpop.f32.mrb[0].mxu0
    %v379 = vpop.f32.mrb[0].mxu0
    %v380 = vadd.f32 %v140, %v379
    %v381 = vpop.f32.mrb[0].mxu0
    %382 = vmatprep.mubr.bf16.mxu0 0
    %383 = vmatmul.mubr.bf16.gmra.mrb[0].mxu0 %v200
    %v384 = vpop.f32.mrb[0].mxu0
    %v385 = vadd.f32 %v140, %v384
    %v386 = vpop.f32.mrb[0].mxu0
    %v387 = vpop.f32.mrb[0].mxu0
    %v388 = vadd.f32 %v140, %v387
    %v389 = vpop.f32.mrb[0].mxu0
    %390 = vmatprep.mubr.bf16.mxu0 0
    %391 = vmatmul.mubr.bf16.gmra.mrb[0].mxu0 %v203
    %v392 = vpop.f32.mrb[0].mxu0
    %v393 = vadd.f32 %v140, %v392
    %v394 = vpop.f32.mrb[0].mxu0
    %v395 = vpop.f32.mrb[0].mxu0
    %v396 = vadd.f32 %v140, %v395
    %v397 = vpop.f32.mrb[0].mxu0
    %398 = vmatprep.mubr.bf16.mxu0 0
    %399 = vmatmul.mubr.bf16.gmra.mrb[0].mxu0 %v206
    %v400 = vpop.f32.mrb[0].mxu0
    %v401 = vadd.f32 %v140, %v400
    %v402 = vpop.f32.mrb[0].mxu0
    %v403 = vpop.f32.mrb[0].mxu0
    %v404 = vadd.f32 %v140, %v403
    %v405 = vpop.f32.mrb[0].mxu0
    %406 = vmatprep.mubr.bf16.mxu0 0
    %407 = vmatmul.mubr.bf16.gmra.mrb[0].mxu0 %v209
    %v408 = vpop.f32.mrb[0].mxu0
    %v409 = vadd.f32 %v140, %v408
    %v410 = vpop.f32.mrb[0].mxu0
    %v411 = vpop.f32.mrb[0].mxu0
    %v412 = vadd.f32 %v140, %v411
    %v413 = vpop.f32.mrb[0].mxu0
    %414 = vmatprep.mubr.bf16.mxu0 0
    %415 = vmatmul.mubr.bf16.gmra.mrb[0].mxu0 %v212
    %v416 = vpop.f32.mrb[0].mxu0
    %v417 = vadd.f32 %v140, %v416
    %v418 = vpop.f32.mrb[0].mxu0
    %v419 = vpop.f32.mrb[0].mxu0
    %v420 = vadd.f32 %v140, %v419
    %v421 = vpop.f32.mrb[0].mxu0
    %422 = vmatprep.mubr.bf16.mxu0 0
    %423 = vmatmul.mubr.bf16.gmra.mrb[0].mxu0 %v215
    %v424 = vpop.f32.mrb[0].mxu0
    %v425 = vadd.f32 %v140, %v424
    %v426 = vpop.f32.mrb[0].mxu0
    %v427 = vpop.f32.mrb[0].mxu0
    %v428 = vadd.f32 %v140, %v427
    %v429 = vpop.f32.mrb[0].mxu0
    %430 = vmatprep.mubr.bf16.mxu0 0
    %431 = vmatmul.mubr.bf16.gmra.mrb[0].mxu0 %v218
    %v432 = vpop.f32.mrb[0].mxu0
    %v433 = vadd.f32 %v140, %v432
    %v434 = vpop.f32.mrb[0].mxu0
    %v435 = vpop.f32.mrb[0].mxu0
    %v436 = vadd.f32 %v140, %v435
    %v437 = vpop.f32.mrb[0].mxu0
    %438 = vmatprep.mubr.bf16.mxu0 0
    %439 = vmatmul.mubr.bf16.gmra.mrb[0].mxu0 %v221
    %v440 = vpop.f32.mrb[0].mxu0
    %v441 = vadd.f32 %v140, %v440
    %v442 = vpop.f32.mrb[0].mxu0
    %v443 = vpop.f32.mrb[0].mxu0
    %v444 = vadd.f32 %v140, %v443
    %v445 = vpop.f32.mrb[0].mxu0
    %446 = vmatprep.mubr.bf16.mxu0 0
    %447 = vmatmul.mubr.bf16.gmra.mrb[0].mxu0 %v224
    %v448 = vpop.f32.mrb[0].mxu0
    %v449 = vadd.f32 %v140, %v448
    %v450 = vpop.f32.mrb[0].mxu0
    %v451 = vpop.f32.mrb[0].mxu0
    %v452 = vadd.f32 %v140, %v451
    %v453 = vpop.f32.mrb[0].mxu0
    %454 = vmatprep.mubr.bf16.mxu0 0
    %455 = vmatmul.mubr.bf16.gmra.mrb[0].mxu0 %v227
    %v456 = vpop.f32.mrb[0].mxu0
    %v457 = vadd.f32 %v140, %v456
    %v458 = vpop.f32.mrb[0].mxu0
    %v459 = vpop.f32.mrb[0].mxu0
    %v460 = vadd.f32 %v140, %v459
    %v461 = vpop.f32.mrb[0].mxu0
    %462 = vmatprep.mubr.bf16.mxu0 0
    %463 = vmatmul.mubr.bf16.gmra.mrb[0].mxu0 %v230
    %v464 = vpop.f32.mrb[0].mxu0
    %v465 = vadd.f32 %v140, %v464
    %v466 = vpop.f32.mrb[0].mxu0
    %v467 = vpop.f32.mrb[0].mxu0
    %v468 = vadd.f32 %v140, %v467
    %v469 = vpop.f32.mrb[0].mxu0
    %470 = vmatprep.mubr.bf16.mxu0 0
    %471 = vmatmul.mubr.bf16.gmra.mrb[0].mxu0 %v233
    %v472 = vpop.f32.mrb[0].mxu0
    %v473 = vadd.f32 %v140, %v472
    %v474 = vpop.f32.mrb[0].mxu0
    %v475 = vpop.f32.mrb[0].mxu0
    %v476 = vadd.f32 %v140, %v475
    %v477 = vpop.f32.mrb[0].mxu0
    %478 = vmatprep.mubr.bf16.mxu0 0
    %479 = vmatmul.mubr.bf16.gmra.mrb[0].mxu0 %v236
    %v480 = vpop.f32.mrb[0].mxu0
    %v481 = vadd.f32 %v140, %v480
    %v482 = vpop.f32.mrb[0].mxu0
    %v483 = vpop.f32.mrb[0].mxu0
    %v484 = vadd.f32 %v140, %v483
    %v485 = vpop.f32.mrb[0].mxu0
    %486 = vmatprep.mubr.bf16.mxu0 0
    %487 = vmatmul.mubr.bf16.gmra.mrb[0].mxu0 %v239
    %v488 = vpop.f32.mrb[0].mxu0
    %v489 = vadd.f32 %v140, %v488
    %v490 = vpop.f32.mrb[0].mxu0
    %v491 = vpop.f32.mrb[0].mxu0
    %v492 = vadd.f32 %v140, %v491
    %v493 = vpop.f32.mrb[0].mxu0
    %494 = vmatprep.mubr.bf16.mxu0 0
    %495 = vmatmul.mubr.bf16.gmra.mrb[0].mxu0 %v242
    %v496 = vpop.f32.mrb[0].mxu0
    %v497 = vadd.f32 %v140, %v496
    %v498 = vpop.f32.mrb[0].mxu0
    %v499 = vpop.f32.mrb[0].mxu0
    %v500 = vadd.f32 %v140, %v499
    %v501 = vpop.f32.mrb[0].mxu0
    %502 = vmatprep.mubr.bf16.mxu0 0
    %503 = vmatmul.mubr.bf16.gmra.mrb[0].mxu0 %v245
    %v504 = vpop.f32.mrb[0].mxu0
    %v505 = vadd.f32 %v140, %v504
    %v506 = vpop.f32.mrb[0].mxu0
    %v507 = vpop.f32.mrb[0].mxu0
    %v508 = vadd.f32 %v140, %v507
    %v509 = vpop.f32.mrb[0].mxu0
    %510 = vmatprep.mubr.bf16.mxu0 0
    %511 = vmatmul.mubr.bf16.gmra.mrb[0].mxu0 %v248
    %v512 = vpop.f32.mrb[0].mxu0
    %v513 = vadd.f32 %v140, %v512
    %v514 = vpop.f32.mrb[0].mxu0
    %v515 = vpop.f32.mrb[0].mxu0
    %v516 = vadd.f32 %v140, %v515
    %v517 = vpop.f32.mrb[0].mxu0
    %518 = vmatprep.mubr.bf16.mxu0 0
    %519 = vmatmul.mubr.bf16.gmra.mrb[0].mxu0 %v251
    %v520 = vpop.f32.mrb[0].mxu0
    %v521 = vadd.f32 %v140, %v520
    %v522 = vpop.f32.mrb[0].mxu0
    %v523 = vpop.f32.mrb[0].mxu0
    %v524 = vadd.f32 %v140, %v523
    %v525 = vpop.f32.mrb[0].mxu0
    %526 = vmatprep.mubr.bf16.mxu0 0
    %527 = vmatmul.mubr.bf16.gmra.mrb[0].mxu0 %v254
    %v528 = vpop.f32.mrb[0].mxu0
    %v529 = vadd.f32 %v140, %v528
    %v530 = vpop.f32.mrb[0].mxu0
    %v531 = vpop.f32.mrb[0].mxu0
    %v532 = vadd.f32 %v140, %v531
    %v533 = vpop.f32.mrb[0].mxu0
    %534 = vmatprep.mubr.bf16.mxu0 0
    %535 = vmatmul.mubr.bf16.gmra.mrb[0].mxu0 %v257
    %v536 = vpop.f32.mrb[0].mxu0
    %v537 = vadd.f32 %v140, %v536
    %v538 = vpop.f32.mrb[0].mxu0
    %v539 = vpop.f32.mrb[0].mxu0
    %v540 = vadd.f32 %v140, %v539
    %v541 = vpop.f32.mrb[0].mxu0
    %542 = vmatprep.mubr.bf16.mxu0 0
    %543 = vmatmul.mubr.bf16.gmra.mrb[0].mxu0 %v260
    %v544 = vpop.f32.mrb[0].mxu0
    %v545 = vadd.f32 %v140, %v544
    %v546 = vpop.f32.mrb[0].mxu0
    %v547 = vpop.f32.mrb[0].mxu0
    %v548 = vadd.f32 %v140, %v547
    %v549 = vpop.f32.mrb[0].mxu0
    %550 = vdwg.mxu0
    %v551 = vmax.f32 %v297, 0.0
    %v552 = vmax.f32 %v300, 0.0
    %v553 = vmax.f32 %v305, 0.0
    %v554 = vmax.f32 %v308, 0.0
    %v555 = vmax.f32 %v313, 0.0
    %v556 = vmax.f32 %v316, 0.0
    %v557 = vmax.f32 %v321, 0.0
    %v558 = vmax.f32 %v324, 0.0
    %v559 = vmax.f32 %v329, 0.0
    %v560 = vmax.f32 %v332, 0.0
    %v561 = vmax.f32 %v337, 0.0
    %v562 = vmax.f32 %v340, 0.0
    %v563 = vmax.f32 %v345, 0.0
    %v564 = vmax.f32 %v348, 0.0
    %v565 = vmax.f32 %v353, 0.0
    %v566 = vmax.f32 %v356, 0.0
    %v567 = vmax.f32 %v361, 0.0
    %v568 = vmax.f32 %v364, 0.0
    %v569 = vmax.f32 %v369, 0.0
    %v570 = vmax.f32 %v372, 0.0
    %v571 = vmax.f32 %v377, 0.0
    %v572 = vmax.f32 %v380, 0.0
    %v573 = vmax.f32 %v385, 0.0
    %v574 = vmax.f32 %v388, 0.0
    %v575 = vmax.f32 %v393, 0.0
    %v576 = vmax.f32 %v396, 0.0
    %v577 = vmax.f32 %v401, 0.0
    %v578 = vmax.f32 %v404, 0.0
    %v579 = vmax.f32 %v409, 0.0
    %v580 = vmax.f32 %v412, 0.0
    %v581 = vmax.f32 %v417, 0.0
    %v582 = vmax.f32 %v420, 0.0
    %v583 = vmax.f32 %v425, 0.0
    %v584 = vmax.f32 %v428, 0.0
    %v585 = vmax.f32 %v433, 0.0
    %v586 = vmax.f32 %v436, 0.0
    %v587 = vmax.f32 %v441, 0.0
    %v588 = vmax.f32 %v444, 0.0
    %v589 = vmax.f32 %v449, 0.0
    %v590 = vmax.f32 %v452, 0.0
    %v591 = vmax.f32 %v457, 0.0
    %v592 = vmax.f32 %v460, 0.0
    %v593 = vmax.f32 %v465, 0.0
    %v594 = vmax.f32 %v468, 0.0
    %v595 = vmax.f32 %v473, 0.0
    %v596 = vmax.f32 %v476, 0.0
    %v597 = vmax.f32 %v481, 0.0
    %v598 = vmax.f32 %v484, 0.0
    %v599 = vmax.f32 %v489, 0.0
    %v600 = vmax.f32 %v492, 0.0
    %v601 = vmax.f32 %v497, 0.0
    %v602 = vmax.f32 %v500, 0.0
    %v603 = vmax.f32 %v505, 0.0
    %v604 = vmax.f32 %v508, 0.0
    %v605 = vmax.f32 %v513, 0.0
    %v606 = vmax.f32 %v516, 0.0
    %v607 = vmax.f32 %v521, 0.0
    %v608 = vmax.f32 %v524, 0.0
    %v609 = vmax.f32 %v529, 0.0
    %v610 = vmax.f32 %v532, 0.0
    %v611 = vmax.f32 %v537, 0.0
    %v612 = vmax.f32 %v540, 0.0
    %v613 = vmax.f32 %v545, 0.0
    %v614 = vmax.f32 %v548, 0.0
    %615 = vst.msk [vmem:[#allocation2] sm:$0xff] %vm165, 0.0
    %616 = vst.msk [vmem:[#allocation2 + $0x8] sm:$0xff] %vm165, 0.0
    %vm617 = vcmask 517120
    %618 = vst.msk [vmem:[#allocation2 + $0x10] sm:$0x3] %vm617, 0.0
    %619 = vst.msk [vmem:[#allocation2 + $0x1b0] sm:$0xff] %vm165, 0.0
    %620 = vst.msk [vmem:[#allocation2 + $0x1b8] sm:$0xff] %vm165, 0.0
    %621 = vst.msk [vmem:[#allocation2 + $0x1c0] sm:$0x3] %vm617, 0.0
    %s622 = scalar_lea.vmem [#allocation2], 408
    %623 = vst.msk [vmem:[%s622] sm:$0xff] %vm165, 0.0
    %624 = vst.msk [vmem:[%s622 + $0x8] sm:$0xff] %vm165, 0.0
    %625 = vst.msk [vmem:[%s622 + $0x10] sm:$0x3] %vm617, 0.0
    %626 = vst.msk [vmem:[%s622 + $0x1b0] sm:$0xff] %vm165, 0.0
    %627 = vst.msk [vmem:[%s622 + $0x1b8] sm:$0xff] %vm165, 0.0
    %628 = vst.msk [vmem:[%s622 + $0x1c0] sm:$0x3] %vm617, 0.0
    %s629 = scalar_lea.vmem [#allocation2], 24
    %vm630 = vcmask 516096
    %631 = vst.msk [vmem:[%s629] sm:$0x1] %vm630, 0.0
    %632 = vst.msk [vmem:[%s629 + $0x18] sm:$0x1] %vm630, 0.0
    %633 = vst.msk [vmem:[%s629 + $0x30] sm:$0x1] %vm630, 0.0
    %634 = vst.msk [vmem:[%s629 + $0x48] sm:$0x1] %vm630, 0.0
    %635 = vst.msk [vmem:[%s629 + $0x60] sm:$0x1] %vm630, 0.0
    %636 = vst.msk [vmem:[%s629 + $0x78] sm:$0x1] %vm630, 0.0
    %637 = vst.msk [vmem:[%s629 + $0x90] sm:$0x1] %vm630, 0.0
    %638 = vst.msk [vmem:[%s629 + $0xa8] sm:$0x1] %vm630, 0.0
    %639 = vst.msk [vmem:[%s629 + $0xc0] sm:$0x1] %vm630, 0.0
    %640 = vst.msk [vmem:[%s629 + $0xd8] sm:$0x1] %vm630, 0.0
    %641 = vst.msk [vmem:[%s629 + $0xf0] sm:$0x1] %vm630, 0.0
    %642 = vst.msk [vmem:[%s629 + $0x108] sm:$0x1] %vm630, 0.0
    %643 = vst.msk [vmem:[%s629 + $0x120] sm:$0x1] %vm630, 0.0
    %644 = vst.msk [vmem:[%s629 + $0x138] sm:$0x1] %vm630, 0.0
    %645 = vst.msk [vmem:[%s629 + $0x150] sm:$0x1] %vm630, 0.0
    %646 = vst.msk [vmem:[%s629 + $0x168] sm:$0x1] %vm630, 0.0
    %647 = vst.msk [vmem:[%s629 + $0x1b0] sm:$0x1] %vm630, 0.0
    %648 = vst.msk [vmem:[%s629 + $0x1c8] sm:$0x1] %vm630, 0.0
    %649 = vst.msk [vmem:[%s629 + $0x1e0] sm:$0x1] %vm630, 0.0
    %650 = vst.msk [vmem:[%s629 + $0x1f8] sm:$0x1] %vm630, 0.0
    %651 = vst.msk [vmem:[%s629 + $0x210] sm:$0x1] %vm630, 0.0
    %652 = vst.msk [vmem:[%s629 + $0x228] sm:$0x1] %vm630, 0.0
    %653 = vst.msk [vmem:[%s629 + $0x240] sm:$0x1] %vm630, 0.0
    %654 = vst.msk [vmem:[%s629 + $0x258] sm:$0x1] %vm630, 0.0
    %655 = vst.msk [vmem:[%s629 + $0x270] sm:$0x1] %vm630, 0.0
    %656 = vst.msk [vmem:[%s629 + $0x288] sm:$0x1] %vm630, 0.0
    %657 = vst.msk [vmem:[%s629 + $0x2a0] sm:$0x1] %vm630, 0.0
    %658 = vst.msk [vmem:[%s629 + $0x2b8] sm:$0x1] %vm630, 0.0
    %659 = vst.msk [vmem:[%s629 + $0x2d0] sm:$0x1] %vm630, 0.0
    %660 = vst.msk [vmem:[%s629 + $0x2e8] sm:$0x1] %vm630, 0.0
    %661 = vst.msk [vmem:[%s629 + $0x300] sm:$0x1] %vm630, 0.0
    %662 = vst.msk [vmem:[%s629 + $0x318] sm:$0x1] %vm630, 0.0
    %663 = vst.msk [vmem:[%s629 + $0x11] sm:$0x1] %vm630, 0.0
    %664 = vst.msk [vmem:[%s629 + $0x29] sm:$0x1] %vm630, 0.0
    %665 = vst.msk [vmem:[%s629 + $0x41] sm:$0x1] %vm630, 0.0
    %666 = vst.msk [vmem:[%s629 + $0x59] sm:$0x1] %vm630, 0.0
    %667 = vst.msk [vmem:[%s629 + $0x71] sm:$0x1] %vm630, 0.0
    %668 = vst.msk [vmem:[%s629 + $0x89] sm:$0x1] %vm630, 0.0
    %669 = vst.msk [vmem:[%s629 + $0xa1] sm:$0x1] %vm630, 0.0
    %670 = vst.msk [vmem:[%s629 + $0xb9] sm:$0x1] %vm630, 0.0
    %671 = vst.msk [vmem:[%s629 + $0xd1] sm:$0x1] %vm630, 0.0
    %672 = vst.msk [vmem:[%s629 + $0xe9] sm:$0x1] %vm630, 0.0
    %673 = vst.msk [vmem:[%s629 + $0x101] sm:$0x1] %vm630, 0.0
    %674 = vst.msk [vmem:[%s629 + $0x119] sm:$0x1] %vm630, 0.0
    %675 = vst.msk [vmem:[%s629 + $0x131] sm:$0x1] %vm630, 0.0
    %676 = vst.msk [vmem:[%s629 + $0x149] sm:$0x1] %vm630, 0.0
    %677 = vst.msk [vmem:[%s629 + $0x161] sm:$0x1] %vm630, 0.0
    %678 = vst.msk [vmem:[%s629 + $0x179] sm:$0x1] %vm630, 0.0
    %679 = vst.msk [vmem:[%s629 + $0x1c1] sm:$0x1] %vm630, 0.0
    %680 = vst.msk [vmem:[%s629 + $0x1d9] sm:$0x1] %vm630, 0.0
    %681 = vst.msk [vmem:[%s629 + $0x1f1] sm:$0x1] %vm630, 0.0
    %682 = vst.msk [vmem:[%s629 + $0x209] sm:$0x1] %vm630, 0.0
    %683 = vst.msk [vmem:[%s629 + $0x221] sm:$0x1] %vm630, 0.0
    %684 = vst.msk [vmem:[%s629 + $0x239] sm:$0x1] %vm630, 0.0
    %685 = vst.msk [vmem:[%s629 + $0x251] sm:$0x1] %vm630, 0.0
    %686 = vst.msk [vmem:[%s629 + $0x269] sm:$0x1] %vm630, 0.0
    %687 = vst.msk [vmem:[%s629 + $0x281] sm:$0x1] %vm630, 0.0
    %688 = vst.msk [vmem:[%s629 + $0x299] sm:$0x1] %vm630, 0.0
    %689 = vst.msk [vmem:[%s629 + $0x2b1] sm:$0x1] %vm630, 0.0
    %690 = vst.msk [vmem:[%s629 + $0x2c9] sm:$0x1] %vm630, 0.0
    %691 = vst.msk [vmem:[%s629 + $0x2e1] sm:$0x1] %vm630, 0.0
    %692 = vst.msk [vmem:[%s629 + $0x2f9] sm:$0x1] %vm630, 0.0
    %693 = vst.msk [vmem:[%s629 + $0x311] sm:$0x1] %vm630, 0.0
    %694 = vst.msk [vmem:[%s629 + $0x329] sm:$0x1] %vm630, 0.0
    %695 = vst.msk [vmem:[%s629 + $0x1] sm:$0xff] %vm165, %v551
    %696 = vst.msk [vmem:[%s629 + $0x9] sm:$0xff] %vm165, %v552
    %697 = vst.msk [vmem:[%s629 + $0x19] sm:$0xff] %vm165, %v553
    %698 = vst.msk [vmem:[%s629 + $0x21] sm:$0xff] %vm165, %v554
    %699 = vst.msk [vmem:[%s629 + $0x31] sm:$0xff] %vm165, %v555
    %700 = vst.msk [vmem:[%s629 + $0x39] sm:$0xff] %vm165, %v556
    %701 = vst.msk [vmem:[%s629 + $0x49] sm:$0xff] %vm165, %v557
    %702 = vst.msk [vmem:[%s629 + $0x51] sm:$0xff] %vm165, %v558
    %703 = vst.msk [vmem:[%s629 + $0x61] sm:$0xff] %vm165, %v559
    %704 = vst.msk [vmem:[%s629 + $0x69] sm:$0xff] %vm165, %v560
    %705 = vst.msk [vmem:[%s629 + $0x79] sm:$0xff] %vm165, %v561
    %706 = vst.msk [vmem:[%s629 + $0x81] sm:$0xff] %vm165, %v562
    %707 = vst.msk [vmem:[%s629 + $0x91] sm:$0xff] %vm165, %v563
    %708 = vst.msk [vmem:[%s629 + $0x99] sm:$0xff] %vm165, %v564
    %709 = vst.msk [vmem:[%s629 + $0xa9] sm:$0xff] %vm165, %v565
    %710 = vst.msk [vmem:[%s629 + $0xb1] sm:$0xff] %vm165, %v566
    %711 = vst.msk [vmem:[%s629 + $0xc1] sm:$0xff] %vm165, %v567
    %712 = vst.msk [vmem:[%s629 + $0xc9] sm:$0xff] %vm165, %v568
    %713 = vst.msk [vmem:[%s629 + $0xd9] sm:$0xff] %vm165, %v569
    %714 = vst.msk [vmem:[%s629 + $0xe1] sm:$0xff] %vm165, %v570
    %715 = vst.msk [vmem:[%s629 + $0xf1] sm:$0xff] %vm165, %v571
    %716 = vst.msk [vmem:[%s629 + $0xf9] sm:$0xff] %vm165, %v572
    %717 = vst.msk [vmem:[%s629 + $0x109] sm:$0xff] %vm165, %v573
    %718 = vst.msk [vmem:[%s629 + $0x111] sm:$0xff] %vm165, %v574
    %719 = vst.msk [vmem:[%s629 + $0x121] sm:$0xff] %vm165, %v575
    %720 = vst.msk [vmem:[%s629 + $0x129] sm:$0xff] %vm165, %v576
    %721 = vst.msk [vmem:[%s629 + $0x139] sm:$0xff] %vm165, %v577
    %722 = vst.msk [vmem:[%s629 + $0x141] sm:$0xff] %vm165, %v578
    %723 = vst.msk [vmem:[%s629 + $0x151] sm:$0xff] %vm165, %v579
    %724 = vst.msk [vmem:[%s629 + $0x159] sm:$0xff] %vm165, %v580
    %725 = vst.msk [vmem:[%s629 + $0x169] sm:$0xff] %vm165, %v581
    %726 = vst.msk [vmem:[%s629 + $0x171] sm:$0xff] %vm165, %v582
    %727 = vst.msk [vmem:[%s629 + $0x1b1] sm:$0xff] %vm165, %v583
    %728 = vst.msk [vmem:[%s629 + $0x1b9] sm:$0xff] %vm165, %v584
    %729 = vst.msk [vmem:[%s629 + $0x1c9] sm:$0xff] %vm165, %v585
    %730 = vst.msk [vmem:[%s629 + $0x1d1] sm:$0xff] %vm165, %v586
    %731 = vst.msk [vmem:[%s629 + $0x1e1] sm:$0xff] %vm165, %v587
    %732 = vst.msk [vmem:[%s629 + $0x1e9] sm:$0xff] %vm165, %v588
    %733 = vst.msk [vmem:[%s629 + $0x1f9] sm:$0xff] %vm165, %v589
    %734 = vst.msk [vmem:[%s629 + $0x201] sm:$0xff] %vm165, %v590
    %735 = vst.msk [vmem:[%s629 + $0x211] sm:$0xff] %vm165, %v591
    %736 = vst.msk [vmem:[%s629 + $0x219] sm:$0xff] %vm165, %v592
    %737 = vst.msk [vmem:[%s629 + $0x229] sm:$0xff] %vm165, %v593
    %738 = vst.msk [vmem:[%s629 + $0x231] sm:$0xff] %vm165, %v594
    %739 = vst.msk [vmem:[%s629 + $0x241] sm:$0xff] %vm165, %v595
    %740 = vst.msk [vmem:[%s629 + $0x249] sm:$0xff] %vm165, %v596
    %741 = vst.msk [vmem:[%s629 + $0x259] sm:$0xff] %vm165, %v597
    %742 = vst.msk [vmem:[%s629 + $0x261] sm:$0xff] %vm165, %v598
    %743 = vst.msk [vmem:[%s629 + $0x271] sm:$0xff] %vm165, %v599
    %744 = vst.msk [vmem:[%s629 + $0x279] sm:$0xff] %vm165, %v600
    %745 = vst.msk [vmem:[%s629 + $0x289] sm:$0xff] %vm165, %v601
    %746 = vst.msk [vmem:[%s629 + $0x291] sm:$0xff] %vm165, %v602
    %747 = vst.msk [vmem:[%s629 + $0x2a1] sm:$0xff] %vm165, %v603
    %748 = vst.msk [vmem:[%s629 + $0x2a9] sm:$0xff] %vm165, %v604
    %749 = vst.msk [vmem:[%s629 + $0x2b9] sm:$0xff] %vm165, %v605
    %750 = vst.msk [vmem:[%s629 + $0x2c1] sm:$0xff] %vm165, %v606
    %751 = vst.msk [vmem:[%s629 + $0x2d1] sm:$0xff] %vm165, %v607
    %752 = vst.msk [vmem:[%s629 + $0x2d9] sm:$0xff] %vm165, %v608
    %753 = vst.msk [vmem:[%s629 + $0x2e9] sm:$0xff] %vm165, %v609
    %754 = vst.msk [vmem:[%s629 + $0x2f1] sm:$0xff] %vm165, %v610
    %755 = vst.msk [vmem:[%s629 + $0x301] sm:$0xff] %vm165, %v611
    %756 = vst.msk [vmem:[%s629 + $0x309] sm:$0xff] %vm165, %v612
    %757 = vst.msk [vmem:[%s629 + $0x319] sm:$0xff] %vm165, %v613
    %758 = vst.msk [vmem:[%s629 + $0x321] sm:$0xff] %vm165, %v614
    %v759 = vld [vmem:[#allocation2] sm:$0xff]
    %v760 = vld [vmem:[#allocation2 + $0x8] sm:$0xff]
    %v761 = vld [vmem:[#allocation2 + $0x18] sm:$0xff]
    %v762 = vld [vmem:[#allocation2 + $0x20] sm:$0xff]
    %v763 = vld [vmem:[#allocation2 + $0x30] sm:$0xff]
    %v764 = vld [vmem:[#allocation2 + $0x38] sm:$0xff]
    %v765 = vld [vmem:[#allocation2 + $0x48] sm:$0xff]
    %v766 = vld [vmem:[#allocation2 + $0x50] sm:$0xff]
    %v767 = vld [vmem:[#allocation2 + $0x60] sm:$0xff]
    %v768 = vld [vmem:[#allocation2 + $0x68] sm:$0xff]
    %v769 = vld [vmem:[#allocation2 + $0x78] sm:$0xff]
    %v770 = vld [vmem:[#allocation2 + $0x80] sm:$0xff]
    %v771 = vld [vmem:[#allocation2 + $0x90] sm:$0xff]
    %v772 = vld [vmem:[#allocation2 + $0x98] sm:$0xff]
    %v773 = vld [vmem:[#allocation2 + $0xa8] sm:$0xff]
    %v774 = vld [vmem:[#allocation2 + $0xb0] sm:$0xff]
    %v775 = vld [vmem:[#allocation2 + $0xc0] sm:$0xff]
    %v776 = vld [vmem:[#allocation2 + $0xc8] sm:$0xff]
    %v777 = vld [vmem:[#allocation2 + $0xd8] sm:$0xff]
    %v778 = vld [vmem:[#allocation2 + $0xe0] sm:$0xff]
    %v779 = vld [vmem:[#allocation2 + $0xf0] sm:$0xff]
    %v780 = vld [vmem:[#allocation2 + $0xf8] sm:$0xff]
    %v781 = vld [vmem:[#allocation2 + $0x108] sm:$0xff]
    %v782 = vld [vmem:[#allocation2 + $0x110] sm:$0xff]
    %v783 = vld [vmem:[#allocation2 + $0x120] sm:$0xff]
    %v784 = vld [vmem:[#allocation2 + $0x128] sm:$0xff]
    %v785 = vld [vmem:[#allocation2 + $0x138] sm:$0xff]
    %v786 = vld [vmem:[#allocation2 + $0x140] sm:$0xff]
    %v787 = vld [vmem:[#allocation2 + $0x150] sm:$0xff]
    %v788 = vld [vmem:[#allocation2 + $0x158] sm:$0xff]
    %v789 = vld [vmem:[#allocation2 + $0x168] sm:$0xff]
    %v790 = vld [vmem:[#allocation2 + $0x170] sm:$0xff]
    %v791 = vld [vmem:[#allocation2 + $0x1b0] sm:$0xff]
    %v792 = vld [vmem:[#allocation2 + $0x1b8] sm:$0xff]
    %v793 = vld [vmem:[#allocation2 + $0x1c8] sm:$0xff]
    %v794 = vld [vmem:[#allocation2 + $0x1d0] sm:$0xff]
    %v795 = vld [vmem:[#allocation2 + $0x1e0] sm:$0xff]
    %v796 = vld [vmem:[#allocation2 + $0x1e8] sm:$0xff]
    %v797 = vld [vmem:[#allocation2 + $0x1f8] sm:$0xff]
    %v798 = vld [vmem:[#allocation2 + $0x200] sm:$0xff]
    %v799 = vld [vmem:[#allocation2 + $0x210] sm:$0xff]
    %v800 = vld [vmem:[#allocation2 + $0x218] sm:$0xff]
    %v801 = vld [vmem:[#allocation2 + $0x228] sm:$0xff]
    %v802 = vld [vmem:[#allocation2 + $0x230] sm:$0xff]
    %v803 = vld [vmem:[#allocation2 + $0x240] sm:$0xff]
    %v804 = vld [vmem:[#allocation2 + $0x248] sm:$0xff]
    %v805 = vld [vmem:[#allocation2 + $0x258] sm:$0xff]
    %v806 = vld [vmem:[#allocation2 + $0x260] sm:$0xff]
    %v807 = vld [vmem:[#allocation2 + $0x270] sm:$0xff]
    %v808 = vld [vmem:[#allocation2 + $0x278] sm:$0xff]
    %v809 = vld [vmem:[#allocation2 + $0x288] sm:$0xff]
    %v810 = vld [vmem:[#allocation2 + $0x290] sm:$0xff]
    %v811 = vld [vmem:[#allocation2 + $0x2a0] sm:$0xff]
    %v812 = vld [vmem:[#allocation2 + $0x2a8] sm:$0xff]
    %v813 = vld [vmem:[#allocation2 + $0x2b8] sm:$0xff]
    %v814 = vld [vmem:[#allocation2 + $0x2c0] sm:$0xff]
    %v815 = vld [vmem:[#allocation2 + $0x2d0] sm:$0xff]
    %v816 = vld [vmem:[#allocation2 + $0x2d8] sm:$0xff]
    %v817 = vld [vmem:[#allocation2 + $0x2e8] sm:$0xff]
    %v818 = vld [vmem:[#allocation2 + $0x2f0] sm:$0xff]
    %v819 = vld [vmem:[#allocation2 + $0x300] sm:$0xff]
    %v820 = vld [vmem:[#allocation2 + $0x308] sm:$0xff]
    %v821 = vld [vmem:[#allocation2 + $0x318] sm:$0xff]
    %v822 = vld [vmem:[#allocation2 + $0x320] sm:$0xff]
    %v823 = vpack.c.bf16 %v760, %v759
    %v824 = vpack.c.bf16 %v762, %v761
    %v825 = vpack.c.bf16 %v764, %v763
    %v826 = vpack.c.bf16 %v766, %v765
    %v827 = vpack.c.bf16 %v768, %v767
    %v828 = vpack.c.bf16 %v770, %v769
    %v829 = vpack.c.bf16 %v772, %v771
    %v830 = vpack.c.bf16 %v774, %v773
    %v831 = vpack.c.bf16 %v776, %v775
    %v832 = vpack.c.bf16 %v778, %v777
    %v833 = vpack.c.bf16 %v780, %v779
    %v834 = vpack.c.bf16 %v782, %v781
    %v835 = vpack.c.bf16 %v784, %v783
    %v836 = vpack.c.bf16 %v786, %v785
    %v837 = vpack.c.bf16 %v788, %v787
    %v838 = vpack.c.bf16 %v790, %v789
    %v839 = vpack.c.bf16 %v792, %v791
    %v840 = vpack.c.bf16 %v794, %v793
    %v841 = vpack.c.bf16 %v796, %v795
    %v842 = vpack.c.bf16 %v798, %v797
    %v843 = vpack.c.bf16 %v800, %v799
    %v844 = vpack.c.bf16 %v802, %v801
    %v845 = vpack.c.bf16 %v804, %v803
    %v846 = vpack.c.bf16 %v806, %v805
    %v847 = vpack.c.bf16 %v808, %v807
    %v848 = vpack.c.bf16 %v810, %v809
    %v849 = vpack.c.bf16 %v812, %v811
    %v850 = vpack.c.bf16 %v814, %v813
    %v851 = vpack.c.bf16 %v816, %v815
    %v852 = vpack.c.bf16 %v818, %v817
    %v853 = vpack.c.bf16 %v820, %v819
    %v854 = vpack.c.bf16 %v822, %v821
    %v855 = vld [vmem:[#allocation2 + $0x1] sm:$0xff]
    %v856 = vld [vmem:[#allocation2 + $0x9] sm:$0xff]
    %v857 = vld [vmem:[#allocation2 + $0x19] sm:$0xff]
    %v858 = vld [vmem:[#allocation2 + $0x21] sm:$0xff]
    %v859 = vld [vmem:[#allocation2 + $0x31] sm:$0xff]
    %v860 = vld [vmem:[#allocation2 + $0x39] sm:$0xff]
    %v861 = vld [vmem:[#allocation2 + $0x49] sm:$0xff]
    %v862 = vld [vmem:[#allocation2 + $0x51] sm:$0xff]
    %v863 = vld [vmem:[#allocation2 + $0x61] sm:$0xff]
    %v864 = vld [vmem:[#allocation2 + $0x69] sm:$0xff]
    %v865 = vld [vmem:[#allocation2 + $0x79] sm:$0xff]
    %v866 = vld [vmem:[#allocation2 + $0x81] sm:$0xff]
    %v867 = vld [vmem:[#allocation2 + $0x91] sm:$0xff]
    %v868 = vld [vmem:[#allocation2 + $0x99] sm:$0xff]
    %v869 = vld [vmem:[#allocation2 + $0xa9] sm:$0xff]
    %v870 = vld [vmem:[#allocation2 + $0xb1] sm:$0xff]
    %v871 = vld [vmem:[#allocation2 + $0xc1] sm:$0xff]
    %v872 = vld [vmem:[#allocation2 + $0xc9] sm:$0xff]
    %v873 = vld [vmem:[#allocation2 + $0xd9] sm:$0xff]
    %v874 = vld [vmem:[#allocation2 + $0xe1] sm:$0xff]
    %v875 = vld [vmem:[#allocation2 + $0xf1] sm:$0xff]
    %v876 = vld [vmem:[#allocation2 + $0xf9] sm:$0xff]
    %v877 = vld [vmem:[#allocation2 + $0x109] sm:$0xff]
    %v878 = vld [vmem:[#allocation2 + $0x111] sm:$0xff]
    %v879 = vld [vmem:[#allocation2 + $0x121] sm:$0xff]
    %v880 = vld [vmem:[#allocation2 + $0x129] sm:$0xff]
    %v881 = vld [vmem:[#allocation2 + $0x139] sm:$0xff]
    %v882 = vld [vmem:[#allocation2 + $0x141] sm:$0xff]
    %v883 = vld [vmem:[#allocation2 + $0x151] sm:$0xff]
    %v884 = vld [vmem:[#allocation2 + $0x159] sm:$0xff]
    %v885 = vld [vmem:[#allocation2 + $0x169] sm:$0xff]
    %v886 = vld [vmem:[#allocation2 + $0x171] sm:$0xff]
    %v887 = vld [vmem:[#allocation2 + $0x1b1] sm:$0xff]
    %v888 = vld [vmem:[#allocation2 + $0x1b9] sm:$0xff]
    %v889 = vld [vmem:[#allocation2 + $0x1c9] sm:$0xff]
    %v890 = vld [vmem:[#allocation2 + $0x1d1] sm:$0xff]
    %v891 = vld [vmem:[#allocation2 + $0x1e1] sm:$0xff]
    %v892 = vld [vmem:[#allocation2 + $0x1e9] sm:$0xff]
    %v893 = vld [vmem:[#allocation2 + $0x1f9] sm:$0xff]
    %v894 = vld [vmem:[#allocation2 + $0x201] sm:$0xff]
    %v895 = vld [vmem:[#allocation2 + $0x211] sm:$0xff]
    %v896 = vld [vmem:[#allocation2 + $0x219] sm:$0xff]
    %v897 = vld [vmem:[#allocation2 + $0x229] sm:$0xff]
    %v898 = vld [vmem:[#allocation2 + $0x231] sm:$0xff]
    %v899 = vld [vmem:[#allocation2 + $0x241] sm:$0xff]
    %v900 = vld [vmem:[#allocation2 + $0x249] sm:$0xff]
    %v901 = vld [vmem:[#allocation2 + $0x259] sm:$0xff]
    %v902 = vld [vmem:[#allocation2 + $0x261] sm:$0xff]
    %v903 = vld [vmem:[#allocation2 + $0x271] sm:$0xff]
    %v904 = vld [vmem:[#allocation2 + $0x279] sm:$0xff]
    %v905 = vld [vmem:[#allocation2 + $0x289] sm:$0xff]
    %v906 = vld [vmem:[#allocation2 + $0x291] sm:$0xff]
    %v907 = vld [vmem:[#allocation2 + $0x2a1] sm:$0xff]
    %v908 = vld [vmem:[#allocation2 + $0x2a9] sm:$0xff]
    %v909 = vld [vmem:[#allocation2 + $0x2b9] sm:$0xff]
    %v910 = vld [vmem:[#allocation2 + $0x2c1] sm:$0xff]
    %v911 = vld [vmem:[#allocation2 + $0x2d1] sm:$0xff]
    %v912 = vld [vmem:[#allocation2 + $0x2d9] sm:$0xff]
    %v913 = vld [vmem:[#allocation2 + $0x2e9] sm:$0xff]
    %v914 = vld [vmem:[#allocation2 + $0x2f1] sm:$0xff]
    %v915 = vld [vmem:[#allocation2 + $0x301] sm:$0xff]
    %v916 = vld [vmem:[#allocation2 + $0x309] sm:$0xff]
    %v917 = vld [vmem:[#allocation2 + $0x319] sm:$0xff]
    %v918 = vld [vmem:[#allocation2 + $0x321] sm:$0xff]
    %v919 = vpack.c.bf16 %v856, %v855
    %v920 = vpack.c.bf16 %v858, %v857
    %v921 = vpack.c.bf16 %v860, %v859
    %v922 = vpack.c.bf16 %v862, %v861
    %v923 = vpack.c.bf16 %v864, %v863
    %v924 = vpack.c.bf16 %v866, %v865
    %v925 = vpack.c.bf16 %v868, %v867
    %v926 = vpack.c.bf16 %v870, %v869
    %v927 = vpack.c.bf16 %v872, %v871
    %v928 = vpack.c.bf16 %v874, %v873
    %v929 = vpack.c.bf16 %v876, %v875
    %v930 = vpack.c.bf16 %v878, %v877
    %v931 = vpack.c.bf16 %v880, %v879
    %v932 = vpack.c.bf16 %v882, %v881
    %v933 = vpack.c.bf16 %v884, %v883
    %v934 = vpack.c.bf16 %v886, %v885
    %v935 = vpack.c.bf16 %v888, %v887
    %v936 = vpack.c.bf16 %v890, %v889
    %v937 = vpack.c.bf16 %v892, %v891
    %v938 = vpack.c.bf16 %v894, %v893
    %v939 = vpack.c.bf16 %v896, %v895
    %v940 = vpack.c.bf16 %v898, %v897
    %v941 = vpack.c.bf16 %v900, %v899
    %v942 = vpack.c.bf16 %v902, %v901
    %v943 = vpack.c.bf16 %v904, %v903
    %v944 = vpack.c.bf16 %v906, %v905
    %v945 = vpack.c.bf16 %v908, %v907
    %v946 = vpack.c.bf16 %v910, %v909
    %v947 = vpack.c.bf16 %v912, %v911
    %v948 = vpack.c.bf16 %v914, %v913
    %v949 = vpack.c.bf16 %v916, %v915
    %v950 = vpack.c.bf16 %v918, %v917
    %v951 = vld [vmem:[#allocation2 + $0x2] sm:$0xff]
    %v952 = vld [vmem:[#allocation2 + $0xa] sm:$0xff]
    %v953 = vld [vmem:[#allocation2 + $0x1a] sm:$0xff]
    %v954 = vld [vmem:[#allocation2 + $0x22] sm:$0xff]
    %v955 = vld [vmem:[#allocation2 + $0x32] sm:$0xff]
    %v956 = vld [vmem:[#allocation2 + $0x3a] sm:$0xff]
    %v957 = vld [vmem:[#allocation2 + $0x4a] sm:$0xff]
    %v958 = vld [vmem:[#allocation2 + $0x52] sm:$0xff]
    %v959 = vld [vmem:[#allocation2 + $0x62] sm:$0xff]
    %v960 = vld [vmem:[#allocation2 + $0x6a] sm:$0xff]
    %v961 = vld [vmem:[#allocation2 + $0x7a] sm:$0xff]
    %v962 = vld [vmem:[#allocation2 + $0x82] sm:$0xff]
    %v963 = vld [vmem:[#allocation2 + $0x92] sm:$0xff]
    %v964 = vld [vmem:[#allocation2 + $0x9a] sm:$0xff]
    %v965 = vld [vmem:[#allocation2 + $0xaa] sm:$0xff]
    %v966 = vld [vmem:[#allocation2 + $0xb2] sm:$0xff]
    %v967 = vld [vmem:[#allocation2 + $0xc2] sm:$0xff]
    %v968 = vld [vmem:[#allocation2 + $0xca] sm:$0xff]
    %v969 = vld [vmem:[#allocation2 + $0xda] sm:$0xff]
    %v970 = vld [vmem:[#allocation2 + $0xe2] sm:$0xff]
    %v971 = vld [vmem:[#allocation2 + $0xf2] sm:$0xff]
    %v972 = vld [vmem:[#allocation2 + $0xfa] sm:$0xff]
    %v973 = vld [vmem:[#allocation2 + $0x10a] sm:$0xff]
    %v974 = vld [vmem:[#allocation2 + $0x112] sm:$0xff]
    %v975 = vld [vmem:[#allocation2 + $0x122] sm:$0xff]
    %v976 = vld [vmem:[#allocation2 + $0x12a] sm:$0xff]
    %v977 = vld [vmem:[#allocation2 + $0x13a] sm:$0xff]
    %v978 = vld [vmem:[#allocation2 + $0x142] sm:$0xff]
    %v979 = vld [vmem:[#allocation2 + $0x152] sm:$0xff]
    %v980 = vld [vmem:[#allocation2 + $0x15a] sm:$0xff]
    %v981 = vld [vmem:[#allocation2 + $0x16a] sm:$0xff]
    %v982 = vld [vmem:[#allocation2 + $0x172] sm:$0xff]
    %v983 = vld [vmem:[#allocation2 + $0x1b2] sm:$0xff]
    %v984 = vld [vmem:[#allocation2 + $0x1ba] sm:$0xff]
    %v985 = vld [vmem:[#allocation2 + $0x1ca] sm:$0xff]
    %v986 = vld [vmem:[#allocation2 + $0x1d2] sm:$0xff]
    %v987 = vld [vmem:[#allocation2 + $0x1e2] sm:$0xff]
    %v988 = vld [vmem:[#allocation2 + $0x1ea] sm:$0xff]
    %v989 = vld [vmem:[#allocation2 + $0x1fa] sm:$0xff]
    %v990 = vld [vmem:[#allocation2 + $0x202] sm:$0xff]
    %v991 = vld [vmem:[#allocation2 + $0x212] sm:$0xff]
    %v992 = vld [vmem:[#allocation2 + $0x21a] sm:$0xff]
    %v993 = vld [vmem:[#allocation2 + $0x22a] sm:$0xff]
    %v994 = vld [vmem:[#allocation2 + $0x232] sm:$0xff]
    %v995 = vld [vmem:[#allocation2 + $0x242] sm:$0xff]
    %v996 = vld [vmem:[#allocation2 + $0x24a] sm:$0xff]
    %v997 = vld [vmem:[#allocation2 + $0x25a] sm:$0xff]
    %v998 = vld [vmem:[#allocation2 + $0x262] sm:$0xff]
    %v999 = vld [vmem:[#allocation2 + $0x272] sm:$0xff]
    %v1000 = vld [vmem:[#allocation2 + $0x27a] sm:$0xff]
    %v1001 = vld [vmem:[#allocation2 + $0x28a] sm:$0xff]
    %v1002 = vld [vmem:[#allocation2 + $0x292] sm:$0xff]
    %v1003 = vld [vmem:[#allocation2 + $0x2a2] sm:$0xff]
    %v1004 = vld [vmem:[#allocation2 + $0x2aa] sm:$0xff]
    %v1005 = vld [vmem:[#allocation2 + $0x2ba] sm:$0xff]
    %v1006 = vld [vmem:[#allocation2 + $0x2c2] sm:$0xff]
    %v1007 = vld [vmem:[#allocation2 + $0x2d2] sm:$0xff]
    %v1008 = vld [vmem:[#allocation2 + $0x2da] sm:$0xff]
    %v1009 = vld [vmem:[#allocation2 + $0x2ea] sm:$0xff]
    %v1010 = vld [vmem:[#allocation2 + $0x2f2] sm:$0xff]
    %v1011 = vld [vmem:[#allocation2 + $0x302] sm:$0xff]
    %v1012 = vld [vmem:[#allocation2 + $0x30a] sm:$0xff]
    %v1013 = vld [vmem:[#allocation2 + $0x31a] sm:$0xff]
    %v1014 = vld [vmem:[#allocation2 + $0x322] sm:$0xff]
    %v1015 = vpack.c.bf16 %v952, %v951
    %v1016 = vpack.c.bf16 %v954, %v953
    %v1017 = vpack.c.bf16 %v956, %v955
    %v1018 = vpack.c.bf16 %v958, %v957
    %v1019 = vpack.c.bf16 %v960, %v959
    %v1020 = vpack.c.bf16 %v962, %v961
    %v1021 = vpack.c.bf16 %v964, %v963
    %v1022 = vpack.c.bf16 %v966, %v965
    %v1023 = vpack.c.bf16 %v968, %v967
    %v1024 = vpack.c.bf16 %v970, %v969
    %v1025 = vpack.c.bf16 %v972, %v971
    %v1026 = vpack.c.bf16 %v974, %v973
    %v1027 = vpack.c.bf16 %v976, %v975
    %v1028 = vpack.c.bf16 %v978, %v977
    %v1029 = vpack.c.bf16 %v980, %v979
    %v1030 = vpack.c.bf16 %v982, %v981
    %v1031 = vpack.c.bf16 %v984, %v983
    %v1032 = vpack.c.bf16 %v986, %v985
    %v1033 = vpack.c.bf16 %v988, %v987
    %v1034 = vpack.c.bf16 %v990, %v989
    %v1035 = vpack.c.bf16 %v992, %v991
    %v1036 = vpack.c.bf16 %v994, %v993
    %v1037 = vpack.c.bf16 %v996, %v995
    %v1038 = vpack.c.bf16 %v998, %v997
    %v1039 = vpack.c.bf16 %v1000, %v999
    %v1040 = vpack.c.bf16 %v1002, %v1001
    %v1041 = vpack.c.bf16 %v1004, %v1003
    %v1042 = vpack.c.bf16 %v1006, %v1005
    %v1043 = vpack.c.bf16 %v1008, %v1007
    %v1044 = vpack.c.bf16 %v1010, %v1009
    %v1045 = vpack.c.bf16 %v1012, %v1011
    %v1046 = vpack.c.bf16 %v1014, %v1013
    %v1047 = vld [vmem:[%s629] sm:$0xff]
    %v1048 = vld [vmem:[%s629 + $0x8] sm:$0xff]
    %v1049 = vld [vmem:[%s629 + $0x18] sm:$0xff]
    %v1050 = vld [vmem:[%s629 + $0x20] sm:$0xff]
    %v1051 = vld [vmem:[%s629 + $0x30] sm:$0xff]
    %v1052 = vld [vmem:[%s629 + $0x38] sm:$0xff]
    %v1053 = vld [vmem:[%s629 + $0x48] sm:$0xff]
    %v1054 = vld [vmem:[%s629 + $0x50] sm:$0xff]
    %v1055 = vld [vmem:[%s629 + $0x60] sm:$0xff]
    %v1056 = vld [vmem:[%s629 + $0x68] sm:$0xff]
    %v1057 = vld [vmem:[%s629 + $0x78] sm:$0xff]
    %v1058 = vld [vmem:[%s629 + $0x80] sm:$0xff]
    %v1059 = vld [vmem:[%s629 + $0x90] sm:$0xff]
    %v1060 = vld [vmem:[%s629 + $0x98] sm:$0xff]
    %v1061 = vld [vmem:[%s629 + $0xa8] sm:$0xff]
    %v1062 = vld [vmem:[%s629 + $0xb0] sm:$0xff]
    %v1063 = vld [vmem:[%s629 + $0xc0] sm:$0xff]
    %v1064 = vld [vmem:[%s629 + $0xc8] sm:$0xff]
    %v1065 = vld [vmem:[%s629 + $0xd8] sm:$0xff]
    %v1066 = vld [vmem:[%s629 + $0xe0] sm:$0xff]
    %v1067 = vld [vmem:[%s629 + $0xf0] sm:$0xff]
    %v1068 = vld [vmem:[%s629 + $0xf8] sm:$0xff]
    %v1069 = vld [vmem:[%s629 + $0x108] sm:$0xff]
    %v1070 = vld [vmem:[%s629 + $0x110] sm:$0xff]
    %v1071 = vld [vmem:[%s629 + $0x120] sm:$0xff]
    %v1072 = vld [vmem:[%s629 + $0x128] sm:$0xff]
    %v1073 = vld [vmem:[%s629 + $0x138] sm:$0xff]
    %v1074 = vld [vmem:[%s629 + $0x140] sm:$0xff]
    %v1075 = vld [vmem:[%s629 + $0x150] sm:$0xff]
    %v1076 = vld [vmem:[%s629 + $0x158] sm:$0xff]
    %v1077 = vld [vmem:[%s629 + $0x168] sm:$0xff]
    %v1078 = vld [vmem:[%s629 + $0x170] sm:$0xff]
    %v1079 = vld [vmem:[%s629 + $0x1b0] sm:$0xff]
    %v1080 = vld [vmem:[%s629 + $0x1b8] sm:$0xff]
    %v1081 = vld [vmem:[%s629 + $0x1c8] sm:$0xff]
    %v1082 = vld [vmem:[%s629 + $0x1d0] sm:$0xff]
    %v1083 = vld [vmem:[%s629 + $0x1e0] sm:$0xff]
    %v1084 = vld [vmem:[%s629 + $0x1e8] sm:$0xff]
    %v1085 = vld [vmem:[%s629 + $0x1f8] sm:$0xff]
    %v1086 = vld [vmem:[%s629 + $0x200] sm:$0xff]
    %v1087 = vld [vmem:[%s629 + $0x210] sm:$0xff]
    %v1088 = vld [vmem:[%s629 + $0x218] sm:$0xff]
    %v1089 = vld [vmem:[%s629 + $0x228] sm:$0xff]
    %v1090 = vld [vmem:[%s629 + $0x230] sm:$0xff]
    %v1091 = vld [vmem:[%s629 + $0x240] sm:$0xff]
    %v1092 = vld [vmem:[%s629 + $0x248] sm:$0xff]
    %v1093 = vld [vmem:[%s629 + $0x258] sm:$0xff]
    %v1094 = vld [vmem:[%s629 + $0x260] sm:$0xff]
    %v1095 = vld [vmem:[%s629 + $0x270] sm:$0xff]
    %v1096 = vld [vmem:[%s629 + $0x278] sm:$0xff]
    %v1097 = vld [vmem:[%s629 + $0x288] sm:$0xff]
    %v1098 = vld [vmem:[%s629 + $0x290] sm:$0xff]
    %v1099 = vld [vmem:[%s629 + $0x2a0] sm:$0xff]
    %v1100 = vld [vmem:[%s629 + $0x2a8] sm:$0xff]
    %v1101 = vld [vmem:[%s629 + $0x2b8] sm:$0xff]
    %v1102 = vld [vmem:[%s629 + $0x2c0] sm:$0xff]
    %v1103 = vld [vmem:[%s629 + $0x2d0] sm:$0xff]
    %v1104 = vld [vmem:[%s629 + $0x2d8] sm:$0xff]
    %v1105 = vld [vmem:[%s629 + $0x2e8] sm:$0xff]
    %v1106 = vld [vmem:[%s629 + $0x2f0] sm:$0xff]
    %v1107 = vld [vmem:[%s629 + $0x300] sm:$0xff]
    %v1108 = vld [vmem:[%s629 + $0x308] sm:$0xff]
    %v1109 = vld [vmem:[%s629 + $0x318] sm:$0xff]
    %v1110 = vld [vmem:[%s629 + $0x320] sm:$0xff]
    %v1111 = vpack.c.bf16 %v1048, %v1047
    %v1112 = vpack.c.bf16 %v1050, %v1049
    %v1113 = vpack.c.bf16 %v1052, %v1051
    %v1114 = vpack.c.bf16 %v1054, %v1053
    %v1115 = vpack.c.bf16 %v1056, %v1055
    %v1116 = vpack.c.bf16 %v1058, %v1057
    %v1117 = vpack.c.bf16 %v1060, %v1059
    %v1118 = vpack.c.bf16 %v1062, %v1061
    %v1119 = vpack.c.bf16 %v1064, %v1063
    %v1120 = vpack.c.bf16 %v1066, %v1065
    %v1121 = vpack.c.bf16 %v1068, %v1067
    %v1122 = vpack.c.bf16 %v1070, %v1069
    %v1123 = vpack.c.bf16 %v1072, %v1071
    %v1124 = vpack.c.bf16 %v1074, %v1073
    %v1125 = vpack.c.bf16 %v1076, %v1075
    %v1126 = vpack.c.bf16 %v1078, %v1077
    %v1127 = vpack.c.bf16 %v1080, %v1079
    %v1128 = vpack.c.bf16 %v1082, %v1081
    %v1129 = vpack.c.bf16 %v1084, %v1083
    %v1130 = vpack.c.bf16 %v1086, %v1085
    %v1131 = vpack.c.bf16 %v1088, %v1087
    %v1132 = vpack.c.bf16 %v1090, %v1089
    %v1133 = vpack.c.bf16 %v1092, %v1091
    %v1134 = vpack.c.bf16 %v1094, %v1093
    %v1135 = vpack.c.bf16 %v1096, %v1095
    %v1136 = vpack.c.bf16 %v1098, %v1097
    %v1137 = vpack.c.bf16 %v1100, %v1099
    %v1138 = vpack.c.bf16 %v1102, %v1101
    %v1139 = vpack.c.bf16 %v1104, %v1103
    %v1140 = vpack.c.bf16 %v1106, %v1105
    %v1141 = vpack.c.bf16 %v1108, %v1107
    %v1142 = vpack.c.bf16 %v1110, %v1109
    %v1143 = vld [vmem:[%s629 + $0x1] sm:$0xff]
    %v1144 = vld [vmem:[%s629 + $0x9] sm:$0xff]
    %v1145 = vld [vmem:[%s629 + $0x19] sm:$0xff]
    %v1146 = vld [vmem:[%s629 + $0x21] sm:$0xff]
    %v1147 = vld [vmem:[%s629 + $0x31] sm:$0xff]
    %v1148 = vld [vmem:[%s629 + $0x39] sm:$0xff]
    %v1149 = vld [vmem:[%s629 + $0x49] sm:$0xff]
    %v1150 = vld [vmem:[%s629 + $0x51] sm:$0xff]
    %v1151 = vld [vmem:[%s629 + $0x61] sm:$0xff]
    %v1152 = vld [vmem:[%s629 + $0x69] sm:$0xff]
    %v1153 = vld [vmem:[%s629 + $0x79] sm:$0xff]
    %v1154 = vld [vmem:[%s629 + $0x81] sm:$0xff]
    %v1155 = vld [vmem:[%s629 + $0x91] sm:$0xff]
    %v1156 = vld [vmem:[%s629 + $0x99] sm:$0xff]
    %v1157 = vld [vmem:[%s629 + $0xa9] sm:$0xff]
    %v1158 = vld [vmem:[%s629 + $0xb1] sm:$0xff]
    %v1159 = vld [vmem:[%s629 + $0xc1] sm:$0xff]
    %v1160 = vld [vmem:[%s629 + $0xc9] sm:$0xff]
    %v1161 = vld [vmem:[%s629 + $0xd9] sm:$0xff]
    %v1162 = vld [vmem:[%s629 + $0xe1] sm:$0xff]
    %v1163 = vld [vmem:[%s629 + $0xf1] sm:$0xff]
    %v1164 = vld [vmem:[%s629 + $0xf9] sm:$0xff]
    %v1165 = vld [vmem:[%s629 + $0x109] sm:$0xff]
    %v1166 = vld [vmem:[%s629 + $0x111] sm:$0xff]
    %v1167 = vld [vmem:[%s629 + $0x121] sm:$0xff]
    %v1168 = vld [vmem:[%s629 + $0x129] sm:$0xff]
    %v1169 = vld [vmem:[%s629 + $0x139] sm:$0xff]
    %v1170 = vld [vmem:[%s629 + $0x141] sm:$0xff]
    %v1171 = vld [vmem:[%s629 + $0x151] sm:$0xff]
    %v1172 = vld [vmem:[%s629 + $0x159] sm:$0xff]
    %v1173 = vld [vmem:[%s629 + $0x169] sm:$0xff]
    %v1174 = vld [vmem:[%s629 + $0x171] sm:$0xff]
    %v1175 = vld [vmem:[%s629 + $0x1b1] sm:$0xff]
    %v1176 = vld [vmem:[%s629 + $0x1b9] sm:$0xff]
    %v1177 = vld [vmem:[%s629 + $0x1c9] sm:$0xff]
    %v1178 = vld [vmem:[%s629 + $0x1d1] sm:$0xff]
    %v1179 = vld [vmem:[%s629 + $0x1e1] sm:$0xff]
    %v1180 = vld [vmem:[%s629 + $0x1e9] sm:$0xff]
    %v1181 = vld [vmem:[%s629 + $0x1f9] sm:$0xff]
    %v1182 = vld [vmem:[%s629 + $0x201] sm:$0xff]
    %v1183 = vld [vmem:[%s629 + $0x211] sm:$0xff]
    %v1184 = vld [vmem:[%s629 + $0x219] sm:$0xff]
    %v1185 = vld [vmem:[%s629 + $0x229] sm:$0xff]
    %v1186 = vld [vmem:[%s629 + $0x231] sm:$0xff]
    %v1187 = vld [vmem:[%s629 + $0x241] sm:$0xff]
    %v1188 = vld [vmem:[%s629 + $0x249] sm:$0xff]
    %v1189 = vld [vmem:[%s629 + $0x259] sm:$0xff]
    %v1190 = vld [vmem:[%s629 + $0x261] sm:$0xff]
    %v1191 = vld [vmem:[%s629 + $0x271] sm:$0xff]
    %v1192 = vld [vmem:[%s629 + $0x279] sm:$0xff]
    %v1193 = vld [vmem:[%s629 + $0x289] sm:$0xff]
    %v1194 = vld [vmem:[%s629 + $0x291] sm:$0xff]
    %v1195 = vld [vmem:[%s629 + $0x2a1] sm:$0xff]
    %v1196 = vld [vmem:[%s629 + $0x2a9] sm:$0xff]
    %v1197 = vld [vmem:[%s629 + $0x2b9] sm:$0xff]
    %v1198 = vld [vmem:[%s629 + $0x2c1] sm:$0xff]
    %v1199 = vld [vmem:[%s629 + $0x2d1] sm:$0xff]
    %v1200 = vld [vmem:[%s629 + $0x2d9] sm:$0xff]
    %v1201 = vld [vmem:[%s629 + $0x2e9] sm:$0xff]
    %v1202 = vld [vmem:[%s629 + $0x2f1] sm:$0xff]
    %v1203 = vld [vmem:[%s629 + $0x301] sm:$0xff]
    %v1204 = vld [vmem:[%s629 + $0x309] sm:$0xff]
    %v1205 = vld [vmem:[%s629 + $0x319] sm:$0xff]
    %v1206 = vld [vmem:[%s629 + $0x321] sm:$0xff]
    %v1207 = vpack.c.bf16 %v1144, %v1143
    %v1208 = vpack.c.bf16 %v1146, %v1145
    %v1209 = vpack.c.bf16 %v1148, %v1147
    %v1210 = vpack.c.bf16 %v1150, %v1149
    %v1211 = vpack.c.bf16 %v1152, %v1151
    %v1212 = vpack.c.bf16 %v1154, %v1153
    %v1213 = vpack.c.bf16 %v1156, %v1155
    %v1214 = vpack.c.bf16 %v1158, %v1157
    %v1215 = vpack.c.bf16 %v1160, %v1159
    %v1216 = vpack.c.bf16 %v1162, %v1161
    %v1217 = vpack.c.bf16 %v1164, %v1163
    %v1218 = vpack.c.bf16 %v1166, %v1165
    %v1219 = vpack.c.bf16 %v1168, %v1167
    %v1220 = vpack.c.bf16 %v1170, %v1169
    %v1221 = vpack.c.bf16 %v1172, %v1171
    %v1222 = vpack.c.bf16 %v1174, %v1173
    %v1223 = vpack.c.bf16 %v1176, %v1175
    %v1224 = vpack.c.bf16 %v1178, %v1177
    %v1225 = vpack.c.bf16 %v1180, %v1179
    %v1226 = vpack.c.bf16 %v1182, %v1181
    %v1227 = vpack.c.bf16 %v1184, %v1183
    %v1228 = vpack.c.bf16 %v1186, %v1185
    %v1229 = vpack.c.bf16 %v1188, %v1187
    %v1230 = vpack.c.bf16 %v1190, %v1189
    %v1231 = vpack.c.bf16 %v1192, %v1191
    %v1232 = vpack.c.bf16 %v1194, %v1193
    %v1233 = vpack.c.bf16 %v1196, %v1195
    %v1234 = vpack.c.bf16 %v1198, %v1197
    %v1235 = vpack.c.bf16 %v1200, %v1199
    %v1236 = vpack.c.bf16 %v1202, %v1201
    %v1237 = vpack.c.bf16 %v1204, %v1203
    %v1238 = vpack.c.bf16 %v1206, %v1205
    %v1239 = vld [vmem:[%s629 + $0x2] sm:$0xff]
    %v1240 = vld [vmem:[%s629 + $0xa] sm:$0xff]
    %v1241 = vld [vmem:[%s629 + $0x1a] sm:$0xff]
    %v1242 = vld [vmem:[%s629 + $0x22] sm:$0xff]
    %v1243 = vld [vmem:[%s629 + $0x32] sm:$0xff]
    %v1244 = vld [vmem:[%s629 + $0x3a] sm:$0xff]
    %v1245 = vld [vmem:[%s629 + $0x4a] sm:$0xff]
    %v1246 = vld [vmem:[%s629 + $0x52] sm:$0xff]
    %v1247 = vld [vmem:[%s629 + $0x62] sm:$0xff]
    %v1248 = vld [vmem:[%s629 + $0x6a] sm:$0xff]
    %v1249 = vld [vmem:[%s629 + $0x7a] sm:$0xff]
    %v1250 = vld [vmem:[%s629 + $0x82] sm:$0xff]
    %v1251 = vld [vmem:[%s629 + $0x92] sm:$0xff]
    %v1252 = vld [vmem:[%s629 + $0x9a] sm:$0xff]
    %v1253 = vld [vmem:[%s629 + $0xaa] sm:$0xff]
    %v1254 = vld [vmem:[%s629 + $0xb2] sm:$0xff]
    %v1255 = vld [vmem:[%s629 + $0xc2] sm:$0xff]
    %v1256 = vld [vmem:[%s629 + $0xca] sm:$0xff]
    %v1257 = vld [vmem:[%s629 + $0xda] sm:$0xff]
    %v1258 = vld [vmem:[%s629 + $0xe2] sm:$0xff]
    %v1259 = vld [vmem:[%s629 + $0xf2] sm:$0xff]
    %v1260 = vld [vmem:[%s629 + $0xfa] sm:$0xff]
    %v1261 = vld [vmem:[%s629 + $0x10a] sm:$0xff]
    %v1262 = vld [vmem:[%s629 + $0x112] sm:$0xff]
    %v1263 = vld [vmem:[%s629 + $0x122] sm:$0xff]
    %v1264 = vld [vmem:[%s629 + $0x12a] sm:$0xff]
    %v1265 = vld [vmem:[%s629 + $0x13a] sm:$0xff]
    %v1266 = vld [vmem:[%s629 + $0x142] sm:$0xff]
    %v1267 = vld [vmem:[%s629 + $0x152] sm:$0xff]
    %v1268 = vld [vmem:[%s629 + $0x15a] sm:$0xff]
    %v1269 = vld [vmem:[%s629 + $0x16a] sm:$0xff]
    %v1270 = vld [vmem:[%s629 + $0x172] sm:$0xff]
    %v1271 = vld [vmem:[%s629 + $0x1b2] sm:$0xff]
    %v1272 = vld [vmem:[%s629 + $0x1ba] sm:$0xff]
    %v1273 = vld [vmem:[%s629 + $0x1ca] sm:$0xff]
    %v1274 = vld [vmem:[%s629 + $0x1d2] sm:$0xff]
    %v1275 = vld [vmem:[%s629 + $0x1e2] sm:$0xff]
    %v1276 = vld [vmem:[%s629 + $0x1ea] sm:$0xff]
    %v1277 = vld [vmem:[%s629 + $0x1fa] sm:$0xff]
    %v1278 = vld [vmem:[%s629 + $0x202] sm:$0xff]
    %v1279 = vld [vmem:[%s629 + $0x212] sm:$0xff]
    %v1280 = vld [vmem:[%s629 + $0x21a] sm:$0xff]
    %v1281 = vld [vmem:[%s629 + $0x22a] sm:$0xff]
    %v1282 = vld [vmem:[%s629 + $0x232] sm:$0xff]
    %v1283 = vld [vmem:[%s629 + $0x242] sm:$0xff]
    %v1284 = vld [vmem:[%s629 + $0x24a] sm:$0xff]
    %v1285 = vld [vmem:[%s629 + $0x25a] sm:$0xff]
    %v1286 = vld [vmem:[%s629 + $0x262] sm:$0xff]
    %v1287 = vld [vmem:[%s629 + $0x272] sm:$0xff]
    %v1288 = vld [vmem:[%s629 + $0x27a] sm:$0xff]
    %v1289 = vld [vmem:[%s629 + $0x28a] sm:$0xff]
    %v1290 = vld [vmem:[%s629 + $0x292] sm:$0xff]
    %v1291 = vld [vmem:[%s629 + $0x2a2] sm:$0xff]
    %v1292 = vld [vmem:[%s629 + $0x2aa] sm:$0xff]
    %v1293 = vld [vmem:[%s629 + $0x2ba] sm:$0xff]
    %v1294 = vld [vmem:[%s629 + $0x2c2] sm:$0xff]
    %v1295 = vld [vmem:[%s629 + $0x2d2] sm:$0xff]
    %v1296 = vld [vmem:[%s629 + $0x2da] sm:$0xff]
    %v1297 = vld [vmem:[%s629 + $0x2ea] sm:$0xff]
    %v1298 = vld [vmem:[%s629 + $0x2f2] sm:$0xff]
    %v1299 = vld [vmem:[%s629 + $0x302] sm:$0xff]
    %v1300 = vld [vmem:[%s629 + $0x30a] sm:$0xff]
    %v1301 = vld [vmem:[%s629 + $0x31a] sm:$0xff]
    %v1302 = vld [vmem:[%s629 + $0x322] sm:$0xff]
    %v1303 = vpack.c.bf16 %v1240, %v1239
    %v1304 = vpack.c.bf16 %v1242, %v1241
    %v1305 = vpack.c.bf16 %v1244, %v1243
    %v1306 = vpack.c.bf16 %v1246, %v1245
    %v1307 = vpack.c.bf16 %v1248, %v1247
    %v1308 = vpack.c.bf16 %v1250, %v1249
    %v1309 = vpack.c.bf16 %v1252, %v1251
    %v1310 = vpack.c.bf16 %v1254, %v1253
    %v1311 = vpack.c.bf16 %v1256, %v1255
    %v1312 = vpack.c.bf16 %v1258, %v1257
    %v1313 = vpack.c.bf16 %v1260, %v1259
    %v1314 = vpack.c.bf16 %v1262, %v1261
    %v1315 = vpack.c.bf16 %v1264, %v1263
    %v1316 = vpack.c.bf16 %v1266, %v1265
    %v1317 = vpack.c.bf16 %v1268, %v1267
    %v1318 = vpack.c.bf16 %v1270, %v1269
    %v1319 = vpack.c.bf16 %v1272, %v1271
    %v1320 = vpack.c.bf16 %v1274, %v1273
    %v1321 = vpack.c.bf16 %v1276, %v1275
    %v1322 = vpack.c.bf16 %v1278, %v1277
    %v1323 = vpack.c.bf16 %v1280, %v1279
    %v1324 = vpack.c.bf16 %v1282, %v1281
    %v1325 = vpack.c.bf16 %v1284, %v1283
    %v1326 = vpack.c.bf16 %v1286, %v1285
    %v1327 = vpack.c.bf16 %v1288, %v1287
    %v1328 = vpack.c.bf16 %v1290, %v1289
    %v1329 = vpack.c.bf16 %v1292, %v1291
    %v1330 = vpack.c.bf16 %v1294, %v1293
    %v1331 = vpack.c.bf16 %v1296, %v1295
    %v1332 = vpack.c.bf16 %v1298, %v1297
    %v1333 = vpack.c.bf16 %v1300, %v1299
    %v1334 = vpack.c.bf16 %v1302, %v1301
    %s1335 = scalar_lea.vmem [#allocation2], 48
    %v1336 = vld [vmem:[%s1335] sm:$0xff]
    %v1337 = vld [vmem:[%s1335 + $0x8] sm:$0xff]
    %v1338 = vld [vmem:[%s1335 + $0x18] sm:$0xff]
    %v1339 = vld [vmem:[%s1335 + $0x20] sm:$0xff]
    %v1340 = vld [vmem:[%s1335 + $0x30] sm:$0xff]
    %v1341 = vld [vmem:[%s1335 + $0x38] sm:$0xff]
    %v1342 = vld [vmem:[%s1335 + $0x48] sm:$0xff]
    %v1343 = vld [vmem:[%s1335 + $0x50] sm:$0xff]
    %v1344 = vld [vmem:[%s1335 + $0x60] sm:$0xff]
    %v1345 = vld [vmem:[%s1335 + $0x68] sm:$0xff]
    %v1346 = vld [vmem:[%s1335 + $0x78] sm:$0xff]
    %v1347 = vld [vmem:[%s1335 + $0x80] sm:$0xff]
    %v1348 = vld [vmem:[%s1335 + $0x90] sm:$0xff]
    %v1349 = vld [vmem:[%s1335 + $0x98] sm:$0xff]
    %v1350 = vld [vmem:[%s1335 + $0xa8] sm:$0xff]
    %v1351 = vld [vmem:[%s1335 + $0xb0] sm:$0xff]
    %v1352 = vld [vmem:[%s1335 + $0xc0] sm:$0xff]
    %v1353 = vld [vmem:[%s1335 + $0xc8] sm:$0xff]
    %v1354 = vld [vmem:[%s1335 + $0xd8] sm:$0xff]
    %v1355 = vld [vmem:[%s1335 + $0xe0] sm:$0xff]
    %v1356 = vld [vmem:[%s1335 + $0xf0] sm:$0xff]
    %v1357 = vld [vmem:[%s1335 + $0xf8] sm:$0xff]
    %v1358 = vld [vmem:[%s1335 + $0x108] sm:$0xff]
    %v1359 = vld [vmem:[%s1335 + $0x110] sm:$0xff]
    %v1360 = vld [vmem:[%s1335 + $0x120] sm:$0xff]
    %v1361 = vld [vmem:[%s1335 + $0x128] sm:$0xff]
    %v1362 = vld [vmem:[%s1335 + $0x138] sm:$0xff]
    %v1363 = vld [vmem:[%s1335 + $0x140] sm:$0xff]
    %v1364 = vld [vmem:[%s1335 + $0x150] sm:$0xff]
    %v1365 = vld [vmem:[%s1335 + $0x158] sm:$0xff]
    %v1366 = vld [vmem:[%s1335 + $0x168] sm:$0xff]
    %v1367 = vld [vmem:[%s1335 + $0x170] sm:$0xff]
    %v1368 = vld [vmem:[%s1335 + $0x1b0] sm:$0xff]
    %v1369 = vld [vmem:[%s1335 + $0x1b8] sm:$0xff]
    %v1370 = vld [vmem:[%s1335 + $0x1c8] sm:$0xff]
    %v1371 = vld [vmem:[%s1335 + $0x1d0] sm:$0xff]
    %v1372 = vld [vmem:[%s1335 + $0x1e0] sm:$0xff]
    %v1373 = vld [vmem:[%s1335 + $0x1e8] sm:$0xff]
    %v1374 = vld [vmem:[%s1335 + $0x1f8] sm:$0xff]
    %v1375 = vld [vmem:[%s1335 + $0x200] sm:$0xff]
    %v1376 = vld [vmem:[%s1335 + $0x210] sm:$0xff]
    %v1377 = vld [vmem:[%s1335 + $0x218] sm:$0xff]
    %v1378 = vld [vmem:[%s1335 + $0x228] sm:$0xff]
    %v1379 = vld [vmem:[%s1335 + $0x230] sm:$0xff]
    %v1380 = vld [vmem:[%s1335 + $0x240] sm:$0xff]
    %v1381 = vld [vmem:[%s1335 + $0x248] sm:$0xff]
    %v1382 = vld [vmem:[%s1335 + $0x258] sm:$0xff]
    %v1383 = vld [vmem:[%s1335 + $0x260] sm:$0xff]
    %v1384 = vld [vmem:[%s1335 + $0x270] sm:$0xff]
    %v1385 = vld [vmem:[%s1335 + $0x278] sm:$0xff]
    %v1386 = vld [vmem:[%s1335 + $0x288] sm:$0xff]
    %v1387 = vld [vmem:[%s1335 + $0x290] sm:$0xff]
    %v1388 = vld [vmem:[%s1335 + $0x2a0] sm:$0xff]
    %v1389 = vld [vmem:[%s1335 + $0x2a8] sm:$0xff]
    %v1390 = vld [vmem:[%s1335 + $0x2b8] sm:$0xff]
    %v1391 = vld [vmem:[%s1335 + $0x2c0] sm:$0xff]
    %v1392 = vld [vmem:[%s1335 + $0x2d0] sm:$0xff]
    %v1393 = vld [vmem:[%s1335 + $0x2d8] sm:$0xff]
    %v1394 = vld [vmem:[%s1335 + $0x2e8] sm:$0xff]
    %v1395 = vld [vmem:[%s1335 + $0x2f0] sm:$0xff]
    %v1396 = vld [vmem:[%s1335 + $0x300] sm:$0xff]
    %v1397 = vld [vmem:[%s1335 + $0x308] sm:$0xff]
    %v1398 = vld [vmem:[%s1335 + $0x318] sm:$0xff]
    %v1399 = vld [vmem:[%s1335 + $0x320] sm:$0xff]
    %v1400 = vpack.c.bf16 %v1337, %v1336
    %v1401 = vpack.c.bf16 %v1339, %v1338
    %v1402 = vpack.c.bf16 %v1341, %v1340
    %v1403 = vpack.c.bf16 %v1343, %v1342
    %v1404 = vpack.c.bf16 %v1345, %v1344
    %v1405 = vpack.c.bf16 %v1347, %v1346
    %v1406 = vpack.c.bf16 %v1349, %v1348
    %v1407 = vpack.c.bf16 %v1351, %v1350
    %v1408 = vpack.c.bf16 %v1353, %v1352
    %v1409 = vpack.c.bf16 %v1355, %v1354
    %v1410 = vpack.c.bf16 %v1357, %v1356
    %v1411 = vpack.c.bf16 %v1359, %v1358
    %v1412 = vpack.c.bf16 %v1361, %v1360
    %v1413 = vpack.c.bf16 %v1363, %v1362
    %v1414 = vpack.c.bf16 %v1365, %v1364
    %v1415 = vpack.c.bf16 %v1367, %v1366
    %v1416 = vpack.c.bf16 %v1369, %v1368
    %v1417 = vpack.c.bf16 %v1371, %v1370
    %v1418 = vpack.c.bf16 %v1373, %v1372
    %v1419 = vpack.c.bf16 %v1375, %v1374
    %v1420 = vpack.c.bf16 %v1377, %v1376
    %v1421 = vpack.c.bf16 %v1379, %v1378
    %v1422 = vpack.c.bf16 %v1381, %v1380
    %v1423 = vpack.c.bf16 %v1383, %v1382
    %v1424 = vpack.c.bf16 %v1385, %v1384
    %v1425 = vpack.c.bf16 %v1387, %v1386
    %v1426 = vpack.c.bf16 %v1389, %v1388
    %v1427 = vpack.c.bf16 %v1391, %v1390
    %v1428 = vpack.c.bf16 %v1393, %v1392
    %v1429 = vpack.c.bf16 %v1395, %v1394
    %v1430 = vpack.c.bf16 %v1397, %v1396
    %v1431 = vpack.c.bf16 %v1399, %v1398
    %v1432 = vld [vmem:[%s1335 + $0x1] sm:$0xff]
    %v1433 = vld [vmem:[%s1335 + $0x9] sm:$0xff]
    %v1434 = vld [vmem:[%s1335 + $0x19] sm:$0xff]
    %v1435 = vld [vmem:[%s1335 + $0x21] sm:$0xff]
    %v1436 = vld [vmem:[%s1335 + $0x31] sm:$0xff]
    %v1437 = vld [vmem:[%s1335 + $0x39] sm:$0xff]
    %v1438 = vld [vmem:[%s1335 + $0x49] sm:$0xff]
    %v1439 = vld [vmem:[%s1335 + $0x51] sm:$0xff]
    %v1440 = vld [vmem:[%s1335 + $0x61] sm:$0xff]
    %v1441 = vld [vmem:[%s1335 + $0x69] sm:$0xff]
    %v1442 = vld [vmem:[%s1335 + $0x79] sm:$0xff]
    %v1443 = vld [vmem:[%s1335 + $0x81] sm:$0xff]
    %v1444 = vld [vmem:[%s1335 + $0x91] sm:$0xff]
    %v1445 = vld [vmem:[%s1335 + $0x99] sm:$0xff]
    %v1446 = vld [vmem:[%s1335 + $0xa9] sm:$0xff]
    %v1447 = vld [vmem:[%s1335 + $0xb1] sm:$0xff]
    %v1448 = vld [vmem:[%s1335 + $0xc1] sm:$0xff]
    %v1449 = vld [vmem:[%s1335 + $0xc9] sm:$0xff]
    %v1450 = vld [vmem:[%s1335 + $0xd9] sm:$0xff]
    %v1451 = vld [vmem:[%s1335 + $0xe1] sm:$0xff]
    %v1452 = vld [vmem:[%s1335 + $0xf1] sm:$0xff]
    %v1453 = vld [vmem:[%s1335 + $0xf9] sm:$0xff]
    %v1454 = vld [vmem:[%s1335 + $0x109] sm:$0xff]
    %v1455 = vld [vmem:[%s1335 + $0x111] sm:$0xff]
    %v1456 = vld [vmem:[%s1335 + $0x121] sm:$0xff]
    %v1457 = vld [vmem:[%s1335 + $0x129] sm:$0xff]
    %v1458 = vld [vmem:[%s1335 + $0x139] sm:$0xff]
    %v1459 = vld [vmem:[%s1335 + $0x141] sm:$0xff]
    %v1460 = vld [vmem:[%s1335 + $0x151] sm:$0xff]
    %v1461 = vld [vmem:[%s1335 + $0x159] sm:$0xff]
    %v1462 = vld [vmem:[%s1335 + $0x169] sm:$0xff]
    %v1463 = vld [vmem:[%s1335 + $0x171] sm:$0xff]
    %v1464 = vld [vmem:[%s1335 + $0x1b1] sm:$0xff]
    %v1465 = vld [vmem:[%s1335 + $0x1b9] sm:$0xff]
    %v1466 = vld [vmem:[%s1335 + $0x1c9] sm:$0xff]
    %v1467 = vld [vmem:[%s1335 + $0x1d1] sm:$0xff]
    %v1468 = vld [vmem:[%s1335 + $0x1e1] sm:$0xff]
    %v1469 = vld [vmem:[%s1335 + $0x1e9] sm:$0xff]
    %v1470 = vld [vmem:[%s1335 + $0x1f9] sm:$0xff]
    %v1471 = vld [vmem:[%s1335 + $0x201] sm:$0xff]
    %v1472 = vld [vmem:[%s1335 + $0x211] sm:$0xff]
    %v1473 = vld [vmem:[%s1335 + $0x219] sm:$0xff]
    %v1474 = vld [vmem:[%s1335 + $0x229] sm:$0xff]
    %v1475 = vld [vmem:[%s1335 + $0x231] sm:$0xff]
    %v1476 = vld [vmem:[%s1335 + $0x241] sm:$0xff]
    %v1477 = vld [vmem:[%s1335 + $0x249] sm:$0xff]
    %v1478 = vld [vmem:[%s1335 + $0x259] sm:$0xff]
    %v1479 = vld [vmem:[%s1335 + $0x261] sm:$0xff]
    %v1480 = vld [vmem:[%s1335 + $0x271] sm:$0xff]
    %v1481 = vld [vmem:[%s1335 + $0x279] sm:$0xff]
    %v1482 = vld [vmem:[%s1335 + $0x289] sm:$0xff]
    %v1483 = vld [vmem:[%s1335 + $0x291] sm:$0xff]
    %v1484 = vld [vmem:[%s1335 + $0x2a1] sm:$0xff]
    %v1485 = vld [vmem:[%s1335 + $0x2a9] sm:$0xff]
    %v1486 = vld [vmem:[%s1335 + $0x2b9] sm:$0xff]
    %v1487 = vld [vmem:[%s1335 + $0x2c1] sm:$0xff]
    %v1488 = vld [vmem:[%s1335 + $0x2d1] sm:$0xff]
    %v1489 = vld [vmem:[%s1335 + $0x2d9] sm:$0xff]
    %v1490 = vld [vmem:[%s1335 + $0x2e9] sm:$0xff]
    %v1491 = vld [vmem:[%s1335 + $0x2f1] sm:$0xff]
    %v1492 = vld [vmem:[%s1335 + $0x301] sm:$0xff]
    %v1493 = vld [vmem:[%s1335 + $0x309] sm:$0xff]
    %v1494 = vld [vmem:[%s1335 + $0x319] sm:$0xff]
    %v1495 = vld [vmem:[%s1335 + $0x321] sm:$0xff]
    %v1496 = vpack.c.bf16 %v1433, %v1432
    %v1497 = vpack.c.bf16 %v1435, %v1434
    %v1498 = vpack.c.bf16 %v1437, %v1436
    %v1499 = vpack.c.bf16 %v1439, %v1438
    %v1500 = vpack.c.bf16 %v1441, %v1440
    %v1501 = vpack.c.bf16 %v1443, %v1442
    %v1502 = vpack.c.bf16 %v1445, %v1444
    %v1503 = vpack.c.bf16 %v1447, %v1446
    %v1504 = vpack.c.bf16 %v1449, %v1448
    %v1505 = vpack.c.bf16 %v1451, %v1450
    %v1506 = vpack.c.bf16 %v1453, %v1452
    %v1507 = vpack.c.bf16 %v1455, %v1454
    %v1508 = vpack.c.bf16 %v1457, %v1456
    %v1509 = vpack.c.bf16 %v1459, %v1458
    %v1510 = vpack.c.bf16 %v1461, %v1460
    %v1511 = vpack.c.bf16 %v1463, %v1462
    %v1512 = vpack.c.bf16 %v1465, %v1464
    %v1513 = vpack.c.bf16 %v1467, %v1466
    %v1514 = vpack.c.bf16 %v1469, %v1468
    %v1515 = vpack.c.bf16 %v1471, %v1470
    %v1516 = vpack.c.bf16 %v1473, %v1472
    %v1517 = vpack.c.bf16 %v1475, %v1474
    %v1518 = vpack.c.bf16 %v1477, %v1476
    %v1519 = vpack.c.bf16 %v1479, %v1478
    %v1520 = vpack.c.bf16 %v1481, %v1480
    %v1521 = vpack.c.bf16 %v1483, %v1482
    %v1522 = vpack.c.bf16 %v1485, %v1484
    %v1523 = vpack.c.bf16 %v1487, %v1486
    %v1524 = vpack.c.bf16 %v1489, %v1488
    %v1525 = vpack.c.bf16 %v1491, %v1490
    %v1526 = vpack.c.bf16 %v1493, %v1492
    %v1527 = vpack.c.bf16 %v1495, %v1494
    %v1528 = vld [vmem:[%s1335 + $0x2] sm:$0xff]
    %v1529 = vld [vmem:[%s1335 + $0xa] sm:$0xff]
    %v1530 = vld [vmem:[%s1335 + $0x1a] sm:$0xff]
    %v1531 = vld [vmem:[%s1335 + $0x22] sm:$0xff]
    %v1532 = vld [vmem:[%s1335 + $0x32] sm:$0xff]
    %v1533 = vld [vmem:[%s1335 + $0x3a] sm:$0xff]
    %v1534 = vld [vmem:[%s1335 + $0x4a] sm:$0xff]
    %v1535 = vld [vmem:[%s1335 + $0x52] sm:$0xff]
    %v1536 = vld [vmem:[%s1335 + $0x62] sm:$0xff]
    %v1537 = vld [vmem:[%s1335 + $0x6a] sm:$0xff]
    %v1538 = vld [vmem:[%s1335 + $0x7a] sm:$0xff]
    %v1539 = vld [vmem:[%s1335 + $0x82] sm:$0xff]
    %v1540 = vld [vmem:[%s1335 + $0x92] sm:$0xff]
    %v1541 = vld [vmem:[%s1335 + $0x9a] sm:$0xff]
    %v1542 = vld [vmem:[%s1335 + $0xaa] sm:$0xff]
    %v1543 = vld [vmem:[%s1335 + $0xb2] sm:$0xff]
    %v1544 = vld [vmem:[%s1335 + $0xc2] sm:$0xff]
    %v1545 = vld [vmem:[%s1335 + $0xca] sm:$0xff]
    %v1546 = vld [vmem:[%s1335 + $0xda] sm:$0xff]
    %v1547 = vld [vmem:[%s1335 + $0xe2] sm:$0xff]
    %v1548 = vld [vmem:[%s1335 + $0xf2] sm:$0xff]
    %v1549 = vld [vmem:[%s1335 + $0xfa] sm:$0xff]
    %v1550 = vld [vmem:[%s1335 + $0x10a] sm:$0xff]
    %v1551 = vld [vmem:[%s1335 + $0x112] sm:$0xff]
    %v1552 = vld [vmem:[%s1335 + $0x122] sm:$0xff]
    %v1553 = vld [vmem:[%s1335 + $0x12a] sm:$0xff]
    %v1554 = vld [vmem:[%s1335 + $0x13a] sm:$0xff]
    %v1555 = vld [vmem:[%s1335 + $0x142] sm:$0xff]
    %v1556 = vld [vmem:[%s1335 + $0x152] sm:$0xff]
    %v1557 = vld [vmem:[%s1335 + $0x15a] sm:$0xff]
    %v1558 = vld [vmem:[%s1335 + $0x16a] sm:$0xff]
    %v1559 = vld [vmem:[%s1335 + $0x172] sm:$0xff]
    %v1560 = vld [vmem:[%s1335 + $0x1b2] sm:$0xff]
    %v1561 = vld [vmem:[%s1335 + $0x1ba] sm:$0xff]
    %v1562 = vld [vmem:[%s1335 + $0x1ca] sm:$0xff]
    %v1563 = vld [vmem:[%s1335 + $0x1d2] sm:$0xff]
    %v1564 = vld [vmem:[%s1335 + $0x1e2] sm:$0xff]
    %v1565 = vld [vmem:[%s1335 + $0x1ea] sm:$0xff]
    %v1566 = vld [vmem:[%s1335 + $0x1fa] sm:$0xff]
    %v1567 = vld [vmem:[%s1335 + $0x202] sm:$0xff]
    %v1568 = vld [vmem:[%s1335 + $0x212] sm:$0xff]
    %v1569 = vld [vmem:[%s1335 + $0x21a] sm:$0xff]
    %v1570 = vld [vmem:[%s1335 + $0x22a] sm:$0xff]
    %v1571 = vld [vmem:[%s1335 + $0x232] sm:$0xff]
    %v1572 = vld [vmem:[%s1335 + $0x242] sm:$0xff]
    %v1573 = vld [vmem:[%s1335 + $0x24a] sm:$0xff]
    %v1574 = vld [vmem:[%s1335 + $0x25a] sm:$0xff]
    %v1575 = vld [vmem:[%s1335 + $0x262] sm:$0xff]
    %v1576 = vld [vmem:[%s1335 + $0x272] sm:$0xff]
    %v1577 = vld [vmem:[%s1335 + $0x27a] sm:$0xff]
    %v1578 = vld [vmem:[%s1335 + $0x28a] sm:$0xff]
    %v1579 = vld [vmem:[%s1335 + $0x292] sm:$0xff]
    %v1580 = vld [vmem:[%s1335 + $0x2a2] sm:$0xff]
    %v1581 = vld [vmem:[%s1335 + $0x2aa] sm:$0xff]
    %v1582 = vld [vmem:[%s1335 + $0x2ba] sm:$0xff]
    %v1583 = vld [vmem:[%s1335 + $0x2c2] sm:$0xff]
    %v1584 = vld [vmem:[%s1335 + $0x2d2] sm:$0xff]
    %v1585 = vld [vmem:[%s1335 + $0x2da] sm:$0xff]
    %v1586 = vld [vmem:[%s1335 + $0x2ea] sm:$0xff]
    %v1587 = vld [vmem:[%s1335 + $0x2f2] sm:$0xff]
    %v1588 = vld [vmem:[%s1335 + $0x302] sm:$0xff]
    %v1589 = vld [vmem:[%s1335 + $0x30a] sm:$0xff]
    %v1590 = vld [vmem:[%s1335 + $0x31a] sm:$0xff]
    %v1591 = vld [vmem:[%s1335 + $0x322] sm:$0xff]
    %v1592 = vpack.c.bf16 %v1529, %v1528
    %v1593 = vpack.c.bf16 %v1531, %v1530
    %v1594 = vpack.c.bf16 %v1533, %v1532
    %v1595 = vpack.c.bf16 %v1535, %v1534
    %v1596 = vpack.c.bf16 %v1537, %v1536
    %v1597 = vpack.c.bf16 %v1539, %v1538
    %v1598 = vpack.c.bf16 %v1541, %v1540
    %v1599 = vpack.c.bf16 %v1543, %v1542
    %v1600 = vpack.c.bf16 %v1545, %v1544
    %v1601 = vpack.c.bf16 %v1547, %v1546
    %v1602 = vpack.c.bf16 %v1549, %v1548
    %v1603 = vpack.c.bf16 %v1551, %v1550
    %v1604 = vpack.c.bf16 %v1553, %v1552
    %v1605 = vpack.c.bf16 %v1555, %v1554
    %v1606 = vpack.c.bf16 %v1557, %v1556
    %v1607 = vpack.c.bf16 %v1559, %v1558
    %v1608 = vpack.c.bf16 %v1561, %v1560
    %v1609 = vpack.c.bf16 %v1563, %v1562
    %v1610 = vpack.c.bf16 %v1565, %v1564
    %v1611 = vpack.c.bf16 %v1567, %v1566
    %v1612 = vpack.c.bf16 %v1569, %v1568
    %v1613 = vpack.c.bf16 %v1571, %v1570
    %v1614 = vpack.c.bf16 %v1573, %v1572
    %v1615 = vpack.c.bf16 %v1575, %v1574
    %v1616 = vpack.c.bf16 %v1577, %v1576
    %v1617 = vpack.c.bf16 %v1579, %v1578
    %v1618 = vpack.c.bf16 %v1581, %v1580
    %v1619 = vpack.c.bf16 %v1583, %v1582
    %v1620 = vpack.c.bf16 %v1585, %v1584
    %v1621 = vpack.c.bf16 %v1587, %v1586
    %v1622 = vpack.c.bf16 %v1589, %v1588
    %v1623 = vpack.c.bf16 %v1591, %v1590
    %1656 = vrot.lane.b32.xlu0 %v919, 64
    %v1657 = vpop.permute.xlu0 %1656
    %1658 = vrot.lane.b32.xlu0 %v920, 64
    %v1659 = vpop.permute.xlu0 %1658
    %1660 = vrot.lane.b32.xlu0 %v921, 64
    %v1661 = vpop.permute.xlu0 %1660
    %1662 = vrot.lane.b32.xlu0 %v922, 64
    %v1663 = vpop.permute.xlu0 %1662
    %1664 = vrot.lane.b32.xlu0 %v923, 64
    %v1665 = vpop.permute.xlu0 %1664
    %1666 = vrot.lane.b32.xlu0 %v924, 64
    %v1667 = vpop.permute.xlu0 %1666
    %1668 = vrot.lane.b32.xlu0 %v925, 64
    %v1669 = vpop.permute.xlu0 %1668
    %1670 = vrot.lane.b32.xlu0 %v926, 64
    %v1671 = vpop.permute.xlu0 %1670
    %1672 = vrot.lane.b32.xlu0 %v927, 64
    %v1673 = vpop.permute.xlu0 %1672
    %1674 = vrot.lane.b32.xlu0 %v928, 64
    %v1675 = vpop.permute.xlu0 %1674
    %1676 = vrot.lane.b32.xlu0 %v929, 64
    %v1677 = vpop.permute.xlu0 %1676
    %1678 = vrot.lane.b32.xlu0 %v930, 64
    %v1679 = vpop.permute.xlu0 %1678
    %1680 = vrot.lane.b32.xlu0 %v931, 64
    %v1681 = vpop.permute.xlu0 %1680
    %1682 = vrot.lane.b32.xlu0 %v932, 64
    %v1683 = vpop.permute.xlu0 %1682
    %1684 = vrot.lane.b32.xlu0 %v933, 64
    %v1685 = vpop.permute.xlu0 %1684
    %1686 = vrot.lane.b32.xlu0 %v934, 64
    %v1687 = vpop.permute.xlu0 %1686
    %1688 = vrot.lane.b32.xlu0 %v935, 64
    %v1689 = vpop.permute.xlu0 %1688
    %1690 = vrot.lane.b32.xlu0 %v936, 64
    %v1691 = vpop.permute.xlu0 %1690
    %1692 = vrot.lane.b32.xlu0 %v937, 64
    %v1693 = vpop.permute.xlu0 %1692
    %1694 = vrot.lane.b32.xlu0 %v938, 64
    %v1695 = vpop.permute.xlu0 %1694
    %1696 = vrot.lane.b32.xlu0 %v939, 64
    %v1697 = vpop.permute.xlu0 %1696
    %1698 = vrot.lane.b32.xlu0 %v940, 64
    %v1699 = vpop.permute.xlu0 %1698
    %1700 = vrot.lane.b32.xlu0 %v941, 64
    %v1701 = vpop.permute.xlu0 %1700
    %1702 = vrot.lane.b32.xlu0 %v942, 64
    %v1703 = vpop.permute.xlu0 %1702
    %1704 = vrot.lane.b32.xlu0 %v943, 64
    %v1705 = vpop.permute.xlu0 %1704
    %1706 = vrot.lane.b32.xlu0 %v944, 64
    %v1707 = vpop.permute.xlu0 %1706
    %1708 = vrot.lane.b32.xlu0 %v945, 64
    %v1709 = vpop.permute.xlu0 %1708
    %1710 = vrot.lane.b32.xlu0 %v946, 64
    %v1711 = vpop.permute.xlu0 %1710
    %1712 = vrot.lane.b32.xlu0 %v947, 64
    %v1713 = vpop.permute.xlu0 %1712
    %1714 = vrot.lane.b32.xlu0 %v948, 64
    %v1715 = vpop.permute.xlu0 %1714
    %1716 = vrot.lane.b32.xlu0 %v949, 64
    %v1717 = vpop.permute.xlu0 %1716
    %1718 = vrot.lane.b32.xlu0 %v950, 64
    %v1719 = vpop.permute.xlu0 %1718
    %1752 = vrot.lane.b32.xlu0 %v1111, 64
    %v1753 = vpop.permute.xlu0 %1752
    %1754 = vrot.lane.b32.xlu0 %v1112, 64
    %v1755 = vpop.permute.xlu0 %1754
    %1756 = vrot.lane.b32.xlu0 %v1113, 64
    %v1757 = vpop.permute.xlu0 %1756
    %1758 = vrot.lane.b32.xlu0 %v1114, 64
    %v1759 = vpop.permute.xlu0 %1758
    %1760 = vrot.lane.b32.xlu0 %v1115, 64
    %v1761 = vpop.permute.xlu0 %1760
    %1762 = vrot.lane.b32.xlu0 %v1116, 64
    %v1763 = vpop.permute.xlu0 %1762
    %1764 = vrot.lane.b32.xlu0 %v1117, 64
    %v1765 = vpop.permute.xlu0 %1764
    %1766 = vrot.lane.b32.xlu0 %v1118, 64
    %v1767 = vpop.permute.xlu0 %1766
    %1768 = vrot.lane.b32.xlu0 %v1119, 64
    %v1769 = vpop.permute.xlu0 %1768
    %1770 = vrot.lane.b32.xlu0 %v1120, 64
    %v1771 = vpop.permute.xlu0 %1770
    %1772 = vrot.lane.b32.xlu0 %v1121, 64
    %v1773 = vpop.permute.xlu0 %1772
    %1774 = vrot.lane.b32.xlu0 %v1122, 64
    %v1775 = vpop.permute.xlu0 %1774
    %1776 = vrot.lane.b32.xlu0 %v1123, 64
    %v1777 = vpop.permute.xlu0 %1776
    %1778 = vrot.lane.b32.xlu0 %v1124, 64
    %v1779 = vpop.permute.xlu0 %1778
    %1780 = vrot.lane.b32.xlu0 %v1125, 64
    %v1781 = vpop.permute.xlu0 %1780
    %1782 = vrot.lane.b32.xlu0 %v1126, 64
    %v1783 = vpop.permute.xlu0 %1782
    %1784 = vrot.lane.b32.xlu0 %v1127, 64
    %v1785 = vpop.permute.xlu0 %1784
    %1786 = vrot.lane.b32.xlu0 %v1128, 64
    %v1787 = vpop.permute.xlu0 %1786
    %1788 = vrot.lane.b32.xlu0 %v1129, 64
    %v1789 = vpop.permute.xlu0 %1788
    %1790 = vrot.lane.b32.xlu0 %v1130, 64
    %v1791 = vpop.permute.xlu0 %1790
    %1792 = vrot.lane.b32.xlu0 %v1131, 64
    %v1793 = vpop.permute.xlu0 %1792
    %1794 = vrot.lane.b32.xlu0 %v1132, 64
    %v1795 = vpop.permute.xlu0 %1794
    %1796 = vrot.lane.b32.xlu0 %v1133, 64
    %v1797 = vpop.permute.xlu0 %1796
    %1798 = vrot.lane.b32.xlu0 %v1134, 64
    %v1799 = vpop.permute.xlu0 %1798
    %1800 = vrot.lane.b32.xlu0 %v1135, 64
    %v1801 = vpop.permute.xlu0 %1800
    %1802 = vrot.lane.b32.xlu0 %v1136, 64
    %v1803 = vpop.permute.xlu0 %1802
    %1804 = vrot.lane.b32.xlu0 %v1137, 64
    %v1805 = vpop.permute.xlu0 %1804
    %1806 = vrot.lane.b32.xlu0 %v1138, 64
    %v1807 = vpop.permute.xlu0 %1806
    %1808 = vrot.lane.b32.xlu0 %v1139, 64
    %v1809 = vpop.permute.xlu0 %1808
    %1810 = vrot.lane.b32.xlu0 %v1140, 64
    %v1811 = vpop.permute.xlu0 %1810
    %1812 = vrot.lane.b32.xlu0 %v1141, 64
    %v1813 = vpop.permute.xlu0 %1812
    %1814 = vrot.lane.b32.xlu0 %v1142, 64
    %v1815 = vpop.permute.xlu0 %1814
    %1848 = vrot.lane.b32.xlu0 %v1303, 64
    %v1849 = vpop.permute.xlu0 %1848
    %1850 = vrot.lane.b32.xlu0 %v1304, 64
    %v1851 = vpop.permute.xlu0 %1850
    %1852 = vrot.lane.b32.xlu0 %v1305, 64
    %v1853 = vpop.permute.xlu0 %1852
    %1854 = vrot.lane.b32.xlu0 %v1306, 64
    %v1855 = vpop.permute.xlu0 %1854
    %1856 = vrot.lane.b32.xlu0 %v1307, 64
    %v1857 = vpop.permute.xlu0 %1856
    %1858 = vrot.lane.b32.xlu0 %v1308, 64
    %v1859 = vpop.permute.xlu0 %1858
    %1860 = vrot.lane.b32.xlu0 %v1309, 64
    %v1861 = vpop.permute.xlu0 %1860
    %1862 = vrot.lane.b32.xlu0 %v1310, 64
    %v1863 = vpop.permute.xlu0 %1862
    %1864 = vrot.lane.b32.xlu0 %v1311, 64
    %v1865 = vpop.permute.xlu0 %1864
    %1866 = vrot.lane.b32.xlu0 %v1312, 64
    %v1867 = vpop.permute.xlu0 %1866
    %1868 = vrot.lane.b32.xlu0 %v1313, 64
    %v1869 = vpop.permute.xlu0 %1868
    %1870 = vrot.lane.b32.xlu0 %v1314, 64
    %v1871 = vpop.permute.xlu0 %1870
    %1872 = vrot.lane.b32.xlu0 %v1315, 64
    %v1873 = vpop.permute.xlu0 %1872
    %1874 = vrot.lane.b32.xlu0 %v1316, 64
    %v1875 = vpop.permute.xlu0 %1874
    %1876 = vrot.lane.b32.xlu0 %v1317, 64
    %v1877 = vpop.permute.xlu0 %1876
    %1878 = vrot.lane.b32.xlu0 %v1318, 64
    %v1879 = vpop.permute.xlu0 %1878
    %1880 = vrot.lane.b32.xlu0 %v1319, 64
    %v1881 = vpop.permute.xlu0 %1880
    %1882 = vrot.lane.b32.xlu0 %v1320, 64
    %v1883 = vpop.permute.xlu0 %1882
    %1884 = vrot.lane.b32.xlu0 %v1321, 64
    %v1885 = vpop.permute.xlu0 %1884
    %1886 = vrot.lane.b32.xlu0 %v1322, 64
    %v1887 = vpop.permute.xlu0 %1886
    %1888 = vrot.lane.b32.xlu0 %v1323, 64
    %v1889 = vpop.permute.xlu0 %1888
    %1890 = vrot.lane.b32.xlu0 %v1324, 64
    %v1891 = vpop.permute.xlu0 %1890
    %1892 = vrot.lane.b32.xlu0 %v1325, 64
    %v1893 = vpop.permute.xlu0 %1892
    %1894 = vrot.lane.b32.xlu0 %v1326, 64
    %v1895 = vpop.permute.xlu0 %1894
    %1896 = vrot.lane.b32.xlu0 %v1327, 64
    %v1897 = vpop.permute.xlu0 %1896
    %1898 = vrot.lane.b32.xlu0 %v1328, 64
    %v1899 = vpop.permute.xlu0 %1898
    %1900 = vrot.lane.b32.xlu0 %v1329, 64
    %v1901 = vpop.permute.xlu0 %1900
    %1902 = vrot.lane.b32.xlu0 %v1330, 64
    %v1903 = vpop.permute.xlu0 %1902
    %1904 = vrot.lane.b32.xlu0 %v1331, 64
    %v1905 = vpop.permute.xlu0 %1904
    %1906 = vrot.lane.b32.xlu0 %v1332, 64
    %v1907 = vpop.permute.xlu0 %1906
    %1908 = vrot.lane.b32.xlu0 %v1333, 64
    %v1909 = vpop.permute.xlu0 %1908
    %1910 = vrot.lane.b32.xlu0 %v1334, 64
    %v1911 = vpop.permute.xlu0 %1910
    %1944 = vrot.lane.b32.xlu0 %v1496, 64
    %v1945 = vpop.permute.xlu0 %1944
    %1946 = vrot.lane.b32.xlu0 %v1497, 64
    %v1947 = vpop.permute.xlu0 %1946
    %1948 = vrot.lane.b32.xlu0 %v1498, 64
    %v1949 = vpop.permute.xlu0 %1948
    %1950 = vrot.lane.b32.xlu0 %v1499, 64
    %v1951 = vpop.permute.xlu0 %1950
    %1952 = vrot.lane.b32.xlu0 %v1500, 64
    %v1953 = vpop.permute.xlu0 %1952
    %1954 = vrot.lane.b32.xlu0 %v1501, 64
    %v1955 = vpop.permute.xlu0 %1954
    %1956 = vrot.lane.b32.xlu0 %v1502, 64
    %v1957 = vpop.permute.xlu0 %1956
    %1958 = vrot.lane.b32.xlu0 %v1503, 64
    %v1959 = vpop.permute.xlu0 %1958
    %1960 = vrot.lane.b32.xlu0 %v1504, 64
    %v1961 = vpop.permute.xlu0 %1960
    %1962 = vrot.lane.b32.xlu0 %v1505, 64
    %v1963 = vpop.permute.xlu0 %1962
    %1964 = vrot.lane.b32.xlu0 %v1506, 64
    %v1965 = vpop.permute.xlu0 %1964
    %1966 = vrot.lane.b32.xlu0 %v1507, 64
    %v1967 = vpop.permute.xlu0 %1966
    %1968 = vrot.lane.b32.xlu0 %v1508, 64
    %v1969 = vpop.permute.xlu0 %1968
    %1970 = vrot.lane.b32.xlu0 %v1509, 64
    %v1971 = vpop.permute.xlu0 %1970
    %1972 = vrot.lane.b32.xlu0 %v1510, 64
    %v1973 = vpop.permute.xlu0 %1972
    %1974 = vrot.lane.b32.xlu0 %v1511, 64
    %v1975 = vpop.permute.xlu0 %1974
    %1976 = vrot.lane.b32.xlu0 %v1512, 64
    %v1977 = vpop.permute.xlu0 %1976
    %1978 = vrot.lane.b32.xlu0 %v1513, 64
    %v1979 = vpop.permute.xlu0 %1978
    %1980 = vrot.lane.b32.xlu0 %v1514, 64
    %v1981 = vpop.permute.xlu0 %1980
    %1982 = vrot.lane.b32.xlu0 %v1515, 64
    %v1983 = vpop.permute.xlu0 %1982
    %1984 = vrot.lane.b32.xlu0 %v1516, 64
    %v1985 = vpop.permute.xlu0 %1984
    %1986 = vrot.lane.b32.xlu0 %v1517, 64
    %v1987 = vpop.permute.xlu0 %1986
    %1988 = vrot.lane.b32.xlu0 %v1518, 64
    %v1989 = vpop.permute.xlu0 %1988
    %1990 = vrot.lane.b32.xlu0 %v1519, 64
    %v1991 = vpop.permute.xlu0 %1990
    %1992 = vrot.lane.b32.xlu0 %v1520, 64
    %v1993 = vpop.permute.xlu0 %1992
    %1994 = vrot.lane.b32.xlu0 %v1521, 64
    %v1995 = vpop.permute.xlu0 %1994
    %1996 = vrot.lane.b32.xlu0 %v1522, 64
    %v1997 = vpop.permute.xlu0 %1996
    %1998 = vrot.lane.b32.xlu0 %v1523, 64
    %v1999 = vpop.permute.xlu0 %1998
    %2000 = vrot.lane.b32.xlu0 %v1524, 64
    %v2001 = vpop.permute.xlu0 %2000
    %2002 = vrot.lane.b32.xlu0 %v1525, 64
    %v2003 = vpop.permute.xlu0 %2002
    %2004 = vrot.lane.b32.xlu0 %v1526, 64
    %v2005 = vpop.permute.xlu0 %2004
    %2006 = vrot.lane.b32.xlu0 %v1527, 64
    %v2007 = vpop.permute.xlu0 %2006
    %v2010 = vsel %vm165, %v823, %v1657
    %v2014 = vsel %vm165, %v824, %v1659
    %v2018 = vsel %vm165, %v825, %v1661
    %v2022 = vsel %vm165, %v826, %v1663
    %v2026 = vsel %vm165, %v827, %v1665
    %v2030 = vsel %vm165, %v828, %v1667
    %v2034 = vsel %vm165, %v829, %v1669
    %v2038 = vsel %vm165, %v830, %v1671
    %v2042 = vsel %vm165, %v831, %v1673
    %v2046 = vsel %vm165, %v832, %v1675
    %v2050 = vsel %vm165, %v833, %v1677
    %v2054 = vsel %vm165, %v834, %v1679
    %v2058 = vsel %vm165, %v835, %v1681
    %v2062 = vsel %vm165, %v836, %v1683
    %v2066 = vsel %vm165, %v837, %v1685
    %v2070 = vsel %vm165, %v838, %v1687
    %v2074 = vsel %vm165, %v839, %v1689
    %v2078 = vsel %vm165, %v840, %v1691
    %v2082 = vsel %vm165, %v841, %v1693
    %v2086 = vsel %vm165, %v842, %v1695
    %v2090 = vsel %vm165, %v843, %v1697
    %v2094 = vsel %vm165, %v844, %v1699
    %v2098 = vsel %vm165, %v845, %v1701
    %v2102 = vsel %vm165, %v846, %v1703
    %v2106 = vsel %vm165, %v847, %v1705
    %v2110 = vsel %vm165, %v848, %v1707
    %v2114 = vsel %vm165, %v849, %v1709
    %v2118 = vsel %vm165, %v850, %v1711
    %v2122 = vsel %vm165, %v851, %v1713
    %v2126 = vsel %vm165, %v852, %v1715
    %v2130 = vsel %vm165, %v853, %v1717
    %v2134 = vsel %vm165, %v854, %v1719
    %v2138 = vsel %vm165, %v1015, %v1753
    %v2142 = vsel %vm165, %v1016, %v1755
    %v2146 = vsel %vm165, %v1017, %v1757
    %v2150 = vsel %vm165, %v1018, %v1759
    %v2154 = vsel %vm165, %v1019, %v1761
    %v2158 = vsel %vm165, %v1020, %v1763
    %v2162 = vsel %vm165, %v1021, %v1765
    %v2166 = vsel %vm165, %v1022, %v1767
    %v2170 = vsel %vm165, %v1023, %v1769
    %v2174 = vsel %vm165, %v1024, %v1771
    %v2178 = vsel %vm165, %v1025, %v1773
    %v2182 = vsel %vm165, %v1026, %v1775
    %v2186 = vsel %vm165, %v1027, %v1777
    %v2190 = vsel %vm165, %v1028, %v1779
    %v2194 = vsel %vm165, %v1029, %v1781
    %v2198 = vsel %vm165, %v1030, %v1783
    %v2202 = vsel %vm165, %v1031, %v1785
    %v2206 = vsel %vm165, %v1032, %v1787
    %v2210 = vsel %vm165, %v1033, %v1789
    %v2214 = vsel %vm165, %v1034, %v1791
    %v2218 = vsel %vm165, %v1035, %v1793
    %v2222 = vsel %vm165, %v1036, %v1795
    %v2226 = vsel %vm165, %v1037, %v1797
    %v2230 = vsel %vm165, %v1038, %v1799
    %v2234 = vsel %vm165, %v1039, %v1801
    %v2238 = vsel %vm165, %v1040, %v1803
    %v2242 = vsel %vm165, %v1041, %v1805
    %v2246 = vsel %vm165, %v1042, %v1807
    %v2250 = vsel %vm165, %v1043, %v1809
    %v2254 = vsel %vm165, %v1044, %v1811
    %v2258 = vsel %vm165, %v1045, %v1813
    %v2262 = vsel %vm165, %v1046, %v1815
    %v2266 = vsel %vm165, %v1207, %v1849
    %v2270 = vsel %vm165, %v1208, %v1851
    %v2274 = vsel %vm165, %v1209, %v1853
    %v2278 = vsel %vm165, %v1210, %v1855
    %v2282 = vsel %vm165, %v1211, %v1857
    %v2286 = vsel %vm165, %v1212, %v1859
    %v2290 = vsel %vm165, %v1213, %v1861
    %v2294 = vsel %vm165, %v1214, %v1863
    %v2298 = vsel %vm165, %v1215, %v1865
    %v2302 = vsel %vm165, %v1216, %v1867
    %v2306 = vsel %vm165, %v1217, %v1869
    %v2310 = vsel %vm165, %v1218, %v1871
    %v2314 = vsel %vm165, %v1219, %v1873
    %v2318 = vsel %vm165, %v1220, %v1875
    %v2322 = vsel %vm165, %v1221, %v1877
    %v2326 = vsel %vm165, %v1222, %v1879
    %v2330 = vsel %vm165, %v1223, %v1881
    %v2334 = vsel %vm165, %v1224, %v1883
    %v2338 = vsel %vm165, %v1225, %v1885
    %v2342 = vsel %vm165, %v1226, %v1887
    %v2346 = vsel %vm165, %v1227, %v1889
    %v2350 = vsel %vm165, %v1228, %v1891
    %v2354 = vsel %vm165, %v1229, %v1893
    %v2358 = vsel %vm165, %v1230, %v1895
    %v2362 = vsel %vm165, %v1231, %v1897
    %v2366 = vsel %vm165, %v1232, %v1899
    %v2370 = vsel %vm165, %v1233, %v1901
    %v2374 = vsel %vm165, %v1234, %v1903
    %v2378 = vsel %vm165, %v1235, %v1905
    %v2382 = vsel %vm165, %v1236, %v1907
    %v2386 = vsel %vm165, %v1237, %v1909
    %v2390 = vsel %vm165, %v1238, %v1911
    %v2394 = vsel %vm165, %v1400, %v1945
    %v2398 = vsel %vm165, %v1401, %v1947
    %v2402 = vsel %vm165, %v1402, %v1949
    %v2406 = vsel %vm165, %v1403, %v1951
    %v2410 = vsel %vm165, %v1404, %v1953
    %v2414 = vsel %vm165, %v1405, %v1955
    %v2418 = vsel %vm165, %v1406, %v1957
    %v2422 = vsel %vm165, %v1407, %v1959
    %v2426 = vsel %vm165, %v1408, %v1961
    %v2430 = vsel %vm165, %v1409, %v1963
    %v2434 = vsel %vm165, %v1410, %v1965
    %v2438 = vsel %vm165, %v1411, %v1967
    %v2442 = vsel %vm165, %v1412, %v1969
    %v2446 = vsel %vm165, %v1413, %v1971
    %v2450 = vsel %vm165, %v1414, %v1973
    %v2454 = vsel %vm165, %v1415, %v1975
    %v2458 = vsel %vm165, %v1416, %v1977
    %v2462 = vsel %vm165, %v1417, %v1979
    %v2466 = vsel %vm165, %v1418, %v1981
    %v2470 = vsel %vm165, %v1419, %v1983
    %v2474 = vsel %vm165, %v1420, %v1985
    %v2478 = vsel %vm165, %v1421, %v1987
    %v2482 = vsel %vm165, %v1422, %v1989
    %v2486 = vsel %vm165, %v1423, %v1991
    %v2490 = vsel %vm165, %v1424, %v1993
    %v2494 = vsel %vm165, %v1425, %v1995
    %v2498 = vsel %vm165, %v1426, %v1997
    %v2502 = vsel %vm165, %v1427, %v1999
    %v2506 = vsel %vm165, %v1428, %v2001
    %v2510 = vsel %vm165, %v1429, %v2003
    %v2514 = vsel %vm165, %v1430, %v2005
    %v2518 = vsel %vm165, %v1431, %v2007
    %v2520 = vld [vmem:[%s2] sm:$0xf]
    %v2521 = vld [vmem:[%s2 + $0x4] sm:$0xf]
    %v2522 = vld [vmem:[%s2 + $0x8] sm:$0xf]
    %v2523 = vld [vmem:[%s2 + $0xc] sm:$0xf]
    %v2524 = vld [vmem:[%s2 + $0x10] sm:$0xf]
    %v2525 = vld [vmem:[%s2 + $0x14] sm:$0xf]
    %v2526 = vld [vmem:[%s2 + $0x18] sm:$0xf]
    %v2527 = vld [vmem:[%s2 + $0x1c] sm:$0xf]
    %v2528 = vld [vmem:[%s2 + $0x20] sm:$0xf]
    %v2529 = vld [vmem:[%s2 + $0x24] sm:$0xf]
    %v2530 = vld [vmem:[%s2 + $0x28] sm:$0xf]
    %v2531 = vld [vmem:[%s2 + $0x2c] sm:$0xf]
    %v2532 = vld [vmem:[%s2 + $0x30] sm:$0xf]
    %v2533 = vld [vmem:[%s2 + $0x34] sm:$0xf]
    %v2534 = vld [vmem:[%s2 + $0x38] sm:$0xf]
    %v2535 = vld [vmem:[%s2 + $0x3c] sm:$0xf]
    %v2536 = vld [vmem:[%s2 + $0x40] sm:$0xf]
    %v2537 = vld [vmem:[%s2 + $0x44] sm:$0xf]
    %v2538 = vld [vmem:[%s2 + $0x48] sm:$0xf]
    %v2539 = vld [vmem:[%s2 + $0x4c] sm:$0xf]
    %v2540 = vld [vmem:[%s2 + $0x50] sm:$0xf]
    %v2541 = vld [vmem:[%s2 + $0x54] sm:$0xf]
    %v2542 = vld [vmem:[%s2 + $0x58] sm:$0xf]
    %v2543 = vld [vmem:[%s2 + $0x5c] sm:$0xf]
    %v2544 = vld [vmem:[%s2 + $0x60] sm:$0xf]
    %v2545 = vld [vmem:[%s2 + $0x64] sm:$0xf]
    %v2546 = vld [vmem:[%s2 + $0x68] sm:$0xf]
    %v2547 = vld [vmem:[%s2 + $0x6c] sm:$0xf]
    %v2548 = vld [vmem:[%s2 + $0x70] sm:$0xf]
    %v2549 = vld [vmem:[%s2 + $0x74] sm:$0xf]
    %v2550 = vld [vmem:[%s2 + $0x78] sm:$0xf]
    %v2551 = vld [vmem:[%s2 + $0x7c] sm:$0xf]
    %v2552 = vld [vmem:[%s2 + $0x80] sm:$0xf]
    %v2553 = vld [vmem:[%s2 + $0x84] sm:$0xf]
    %v2554 = vld [vmem:[%s2 + $0x88] sm:$0xf]
    %v2555 = vld [vmem:[%s2 + $0x8c] sm:$0xf]
    %v2556 = vld [vmem:[%s2 + $0x90] sm:$0xf]
    %v2557 = vld [vmem:[%s2 + $0x94] sm:$0xf]
    %v2558 = vld [vmem:[%s2 + $0x98] sm:$0xf]
    %v2559 = vld [vmem:[%s2 + $0x9c] sm:$0xf]
    %v2560 = vld [vmem:[%s2 + $0xa0] sm:$0xf]
    %v2561 = vld [vmem:[%s2 + $0xa4] sm:$0xf]
    %v2562 = vld [vmem:[%s2 + $0xa8] sm:$0xf]
    %v2563 = vld [vmem:[%s2 + $0xac] sm:$0xf]
    %v2564 = vld [vmem:[%s2 + $0xb0] sm:$0xf]
    %v2565 = vld [vmem:[%s2 + $0xb4] sm:$0xf]
    %v2566 = vld [vmem:[%s2 + $0xb8] sm:$0xf]
    %v2567 = vld [vmem:[%s2 + $0xbc] sm:$0xf]
    %v2568 = vld [vmem:[%s2 + $0xc0] sm:$0xf]
    %v2569 = vld [vmem:[%s2 + $0xc4] sm:$0xf]
    %v2570 = vld [vmem:[%s2 + $0xc8] sm:$0xf]
    %v2571 = vld [vmem:[%s2 + $0xcc] sm:$0xf]
    %v2572 = vld [vmem:[%s2 + $0xd0] sm:$0xf]
    %v2573 = vld [vmem:[%s2 + $0xd4] sm:$0xf]
    %v2574 = vld [vmem:[%s2 + $0xd8] sm:$0xf]
    %v2575 = vld [vmem:[%s2 + $0xdc] sm:$0xf]
    %v2576 = vld [vmem:[%s2 + $0xe0] sm:$0xf]
    %v2577 = vld [vmem:[%s2 + $0xe4] sm:$0xf]
    %v2578 = vld [vmem:[%s2 + $0xe8] sm:$0xf]
    %v2579 = vld [vmem:[%s2 + $0xec] sm:$0xf]
    %v2580 = vld [vmem:[%s2 + $0xf0] sm:$0xf]
    %v2581 = vld [vmem:[%s2 + $0xf4] sm:$0xf]
    %v2582 = vld [vmem:[%s2 + $0xf8] sm:$0xf]
    %v2583 = vld [vmem:[%s2 + $0xfc] sm:$0xf]
    %v2584 = vld [vmem:[%s2 + $0x100] sm:$0xf]
    %v2585 = vld [vmem:[%s2 + $0x104] sm:$0xf]
    %v2586 = vld [vmem:[%s2 + $0x108] sm:$0xf]
    %v2587 = vld [vmem:[%s2 + $0x10c] sm:$0xf]
    %v2588 = vld [vmem:[%s2 + $0x110] sm:$0xf]
    %v2589 = vld [vmem:[%s2 + $0x114] sm:$0xf]
    %v2590 = vld [vmem:[%s2 + $0x118] sm:$0xf]
    %v2591 = vld [vmem:[%s2 + $0x11c] sm:$0xf]
    %v2592 = vlaneseq
    %v2593 = vshrl.u32 %v2592, 7
    %v2594 = vsub.s32 0, %v2593
    %v2595 = vrot.slane %v29, %v2594
    %v2668 = vunpack.c.l.b16 %v2520
    %v2669 = vunpack.c.l.b16 %v2521
    %v2670 = vunpack.c.l.b16 %v2522
    %v2671 = vunpack.c.l.b16 %v2523
    %v2672 = vunpack.c.l.b16 %v2524
    %v2673 = vunpack.c.l.b16 %v2525
    %v2674 = vunpack.c.l.b16 %v2526
    %v2675 = vunpack.c.l.b16 %v2527
    %v2676 = vunpack.c.l.b16 %v2528
    %v2677 = vunpack.c.l.b16 %v2529
    %v2678 = vunpack.c.l.b16 %v2530
    %v2679 = vunpack.c.l.b16 %v2531
    %v2680 = vunpack.c.l.b16 %v2532
    %v2681 = vunpack.c.l.b16 %v2533
    %v2682 = vunpack.c.l.b16 %v2534
    %v2683 = vunpack.c.l.b16 %v2535
    %v2684 = vunpack.c.l.b16 %v2536
    %v2685 = vunpack.c.l.b16 %v2537
    %v2686 = vunpack.c.l.b16 %v2538
    %v2687 = vunpack.c.l.b16 %v2539
    %v2688 = vunpack.c.l.b16 %v2540
    %v2689 = vunpack.c.l.b16 %v2541
    %v2690 = vunpack.c.l.b16 %v2542
    %v2691 = vunpack.c.l.b16 %v2543
    %v2692 = vunpack.c.l.b16 %v2544
    %v2693 = vunpack.c.l.b16 %v2545
    %v2694 = vunpack.c.l.b16 %v2546
    %v2695 = vunpack.c.l.b16 %v2547
    %v2696 = vunpack.c.l.b16 %v2548
    %v2697 = vunpack.c.l.b16 %v2549
    %v2698 = vunpack.c.l.b16 %v2550
    %v2699 = vunpack.c.l.b16 %v2551
    %v2700 = vunpack.c.l.b16 %v2552
    %v2701 = vunpack.c.l.b16 %v2553
    %v2702 = vunpack.c.l.b16 %v2554
    %v2703 = vunpack.c.l.b16 %v2555
    %v2704 = vunpack.c.l.b16 %v2556
    %v2705 = vunpack.c.l.b16 %v2557
    %v2706 = vunpack.c.l.b16 %v2558
    %v2707 = vunpack.c.l.b16 %v2559
    %v2708 = vunpack.c.l.b16 %v2560
    %v2709 = vunpack.c.l.b16 %v2561
    %v2710 = vunpack.c.l.b16 %v2562
    %v2711 = vunpack.c.l.b16 %v2563
    %v2712 = vunpack.c.l.b16 %v2564
    %v2713 = vunpack.c.l.b16 %v2565
    %v2714 = vunpack.c.l.b16 %v2566
    %v2715 = vunpack.c.l.b16 %v2567
    %v2716 = vunpack.c.l.b16 %v2568
    %v2717 = vunpack.c.l.b16 %v2569
    %v2718 = vunpack.c.l.b16 %v2570
    %v2719 = vunpack.c.l.b16 %v2571
    %v2720 = vunpack.c.l.b16 %v2572
    %v2721 = vunpack.c.l.b16 %v2573
    %v2722 = vunpack.c.l.b16 %v2574
    %v2723 = vunpack.c.l.b16 %v2575
    %v2724 = vunpack.c.l.b16 %v2576
    %v2725 = vunpack.c.l.b16 %v2577
    %v2726 = vunpack.c.l.b16 %v2578
    %v2727 = vunpack.c.l.b16 %v2579
    %v2728 = vunpack.c.l.b16 %v2580
    %v2729 = vunpack.c.l.b16 %v2581
    %v2730 = vunpack.c.l.b16 %v2582
    %v2731 = vunpack.c.l.b16 %v2583
    %v2732 = vunpack.c.l.b16 %v2584
    %v2733 = vunpack.c.l.b16 %v2585
    %v2734 = vunpack.c.l.b16 %v2586
    %v2735 = vunpack.c.l.b16 %v2587
    %v2736 = vunpack.c.l.b16 %v2588
    %v2737 = vunpack.c.l.b16 %v2589
    %v2738 = vunpack.c.l.b16 %v2590
    %v2739 = vunpack.c.l.b16 %v2591
    %v2740 = vpack.c.b16 %v2669, %v2668
    %v2741 = vpack.c.b16 %v2671, %v2670
    %v2742 = vpack.c.b16 %v2673, %v2672
    %v2743 = vpack.c.b16 %v2675, %v2674
    %v2744 = vpack.c.b16 %v2677, %v2676
    %v2745 = vpack.c.b16 %v2679, %v2678
    %v2746 = vpack.c.b16 %v2681, %v2680
    %v2747 = vpack.c.b16 %v2683, %v2682
    %v2748 = vpack.c.b16 %v2685, %v2684
    %v2749 = vpack.c.b16 %v2687, %v2686
    %v2750 = vpack.c.b16 %v2689, %v2688
    %v2751 = vpack.c.b16 %v2691, %v2690
    %v2752 = vpack.c.b16 %v2693, %v2692
    %v2753 = vpack.c.b16 %v2695, %v2694
    %v2754 = vpack.c.b16 %v2697, %v2696
    %v2755 = vpack.c.b16 %v2699, %v2698
    %v2756 = vpack.c.b16 %v2701, %v2700
    %v2757 = vpack.c.b16 %v2703, %v2702
    %v2758 = vpack.c.b16 %v2705, %v2704
    %v2759 = vpack.c.b16 %v2707, %v2706
    %v2760 = vpack.c.b16 %v2709, %v2708
    %v2761 = vpack.c.b16 %v2711, %v2710
    %v2762 = vpack.c.b16 %v2713, %v2712
    %v2763 = vpack.c.b16 %v2715, %v2714
    %v2764 = vpack.c.b16 %v2717, %v2716
    %v2765 = vpack.c.b16 %v2719, %v2718
    %v2766 = vpack.c.b16 %v2721, %v2720
    %v2767 = vpack.c.b16 %v2723, %v2722
    %v2768 = vpack.c.b16 %v2725, %v2724
    %v2769 = vpack.c.b16 %v2727, %v2726
    %v2770 = vpack.c.b16 %v2729, %v2728
    %v2771 = vpack.c.b16 %v2731, %v2730
    %v2772 = vpack.c.b16 %v2733, %v2732
    %v2773 = vpack.c.b16 %v2735, %v2734
    %v2774 = vpack.c.b16 %v2737, %v2736
    %v2775 = vpack.c.b16 %v2739, %v2738
    %v2813 = vsel %vm165, %v1592, 0
    %v2816 = vsel %vm165, %v1593, 0
    %v2819 = vsel %vm165, %v1594, 0
    %v2822 = vsel %vm165, %v1595, 0
    %v2825 = vsel %vm165, %v1596, 0
    %v2828 = vsel %vm165, %v1597, 0
    %v2831 = vsel %vm165, %v1598, 0
    %v2834 = vsel %vm165, %v1599, 0
    %v2837 = vsel %vm165, %v1600, 0
    %v2840 = vsel %vm165, %v1601, 0
    %v2843 = vsel %vm165, %v1602, 0
    %v2846 = vsel %vm165, %v1603, 0
    %v2849 = vsel %vm165, %v1604, 0
    %v2852 = vsel %vm165, %v1605, 0
    %v2855 = vsel %vm165, %v1606, 0
    %v2858 = vsel %vm165, %v1607, 0
    %v2861 = vsel %vm165, %v1608, 0
    %v2864 = vsel %vm165, %v1609, 0
    %v2867 = vsel %vm165, %v1610, 0
    %v2870 = vsel %vm165, %v1611, 0
    %v2873 = vsel %vm165, %v1612, 0
    %v2876 = vsel %vm165, %v1613, 0
    %v2879 = vsel %vm165, %v1614, 0
    %v2882 = vsel %vm165, %v1615, 0
    %v2885 = vsel %vm165, %v1616, 0
    %v2888 = vsel %vm165, %v1617, 0
    %v2891 = vsel %vm165, %v1618, 0
    %v2894 = vsel %vm165, %v1619, 0
    %v2897 = vsel %vm165, %v1620, 0
    %v2900 = vsel %vm165, %v1621, 0
    %v2903 = vsel %vm165, %v1622, 0
    %v2906 = vsel %vm165, %v1623, 0
    %2908 = vmatprep.subr.bf16.mxu0 0
    %2909 = vmatpush1.bf16.msra.mxu0 %v2740
    %2910 = vmatprep.subr.bf16.mxu0 0
    %2911 = vmatpush1.bf16.msra.mxu0 %v2741
    %2912 = vmatprep.subr.bf16.mxu0 0
    %2913 = vmatpush1.bf16.msra.mxu0 %v2742
    %2914 = vmatprep.subr.bf16.mxu0 0
    %2915 = vmatpush1.bf16.msra.mxu0 %v2743
    %2916 = vmatprep.subr.bf16.mxu0 0
    %2917 = vmatpush1.bf16.msra.mxu0 %v2744
    %2918 = vmatprep.subr.bf16.mxu0 0
    %2919 = vmatpush1.bf16.msra.mxu0 %v2745
    %2920 = vmatprep.subr.bf16.mxu0 0
    %2921 = vmatpush1.bf16.msra.mxu0 %v2746
    %2922 = vmatprep.subr.bf16.mxu0 0
    %2923 = vmatpush1.bf16.msra.mxu0 %v2747
    %2924 = vmatprep.subr.bf16.mxu0 0
    %2925 = vmatpush1.bf16.msra.mxu0 %v2748
    %2926 = vmatprep.subr.bf16.mxu0 0
    %2927 = vmatpush1.bf16.msra.mxu0 %v2749
    %2928 = vmatprep.subr.bf16.mxu0 0
    %2929 = vmatpush1.bf16.msra.mxu0 %v2750
    %2930 = vmatprep.subr.bf16.mxu0 0
    %2931 = vmatpush1.bf16.msra.mxu0 %v2751
    %2932 = vmatprep.subr.bf16.mxu0 0
    %2933 = vmatpush1.bf16.msra.mxu0 %v2752
    %2934 = vmatprep.subr.bf16.mxu0 0
    %2935 = vmatpush1.bf16.msra.mxu0 %v2753
    %2936 = vmatprep.subr.bf16.mxu0 0
    %2937 = vmatpush1.bf16.msra.mxu0 %v2754
    %2938 = vmatprep.subr.bf16.mxu0 0
    %2939 = vmatpush1.bf16.msra.mxu0 %v2755
    %2940 = vmatprep.mubr.bf16.mxu0 %v2138
    %2941 = vmatmul.mubr.bf16.gmra.mrb[0].mxu0 %v2010
    %v2942 = vpop.f32.mrb[0].mxu0
    %v2943 = vadd.f32 %v2595, %v2942
    %v2944 = vpop.f32.mrb[0].mxu0
    %v2945 = vpop.f32.mrb[0].mxu0
    %v2946 = vadd.f32 %v2595, %v2945
    %v2947 = vpop.f32.mrb[0].mxu0
    %2948 = vmatprep.mubr.bf16.mxu0 %v2142
    %2949 = vmatmul.mubr.bf16.gmra.mrb[0].mxu0 %v2014
    %v2950 = vpop.f32.mrb[0].mxu0
    %v2951 = vadd.f32 %v2595, %v2950
    %v2952 = vpop.f32.mrb[0].mxu0
    %v2953 = vpop.f32.mrb[0].mxu0
    %v2954 = vadd.f32 %v2595, %v2953
    %v2955 = vpop.f32.mrb[0].mxu0
    %2956 = vmatprep.mubr.bf16.mxu0 %v2146
    %2957 = vmatmul.mubr.bf16.gmra.mrb[0].mxu0 %v2018
    %v2958 = vpop.f32.mrb[0].mxu0
    %v2959 = vadd.f32 %v2595, %v2958
    %v2960 = vpop.f32.mrb[0].mxu0
    %v2961 = vpop.f32.mrb[0].mxu0
    %v2962 = vadd.f32 %v2595, %v2961
    %v2963 = vpop.f32.mrb[0].mxu0
    %2964 = vmatprep.mubr.bf16.mxu0 %v2150
    %2965 = vmatmul.mubr.bf16.gmra.mrb[0].mxu0 %v2022
    %v2966 = vpop.f32.mrb[0].mxu0
    %v2967 = vadd.f32 %v2595, %v2966
    %v2968 = vpop.f32.mrb[0].mxu0
    %v2969 = vpop.f32.mrb[0].mxu0
    %v2970 = vadd.f32 %v2595, %v2969
    %v2971 = vpop.f32.mrb[0].mxu0
    %2972 = vmatprep.mubr.bf16.mxu0 %v2154
    %2973 = vmatmul.mubr.bf16.gmra.mrb[0].mxu0 %v2026
    %v2974 = vpop.f32.mrb[0].mxu0
    %v2975 = vadd.f32 %v2595, %v2974
    %v2976 = vpop.f32.mrb[0].mxu0
    %v2977 = vpop.f32.mrb[0].mxu0
    %v2978 = vadd.f32 %v2595, %v2977
    %v2979 = vpop.f32.mrb[0].mxu0
    %2980 = vmatprep.mubr.bf16.mxu0 %v2158
    %2981 = vmatmul.mubr.bf16.gmra.mrb[0].mxu0 %v2030
    %v2982 = vpop.f32.mrb[0].mxu0
    %v2983 = vadd.f32 %v2595, %v2982
    %v2984 = vpop.f32.mrb[0].mxu0
    %v2985 = vpop.f32.mrb[0].mxu0
    %v2986 = vadd.f32 %v2595, %v2985
    %v2987 = vpop.f32.mrb[0].mxu0
    %2988 = vmatprep.mubr.bf16.mxu0 %v2162
    %2989 = vmatmul.mubr.bf16.gmra.mrb[0].mxu0 %v2034
    %v2990 = vpop.f32.mrb[0].mxu0
    %v2991 = vadd.f32 %v2595, %v2990
    %v2992 = vpop.f32.mrb[0].mxu0
    %v2993 = vpop.f32.mrb[0].mxu0
    %v2994 = vadd.f32 %v2595, %v2993
    %v2995 = vpop.f32.mrb[0].mxu0
    %2996 = vmatprep.mubr.bf16.mxu0 %v2166
    %2997 = vmatmul.mubr.bf16.gmra.mrb[0].mxu0 %v2038
    %v2998 = vpop.f32.mrb[0].mxu0
    %v2999 = vadd.f32 %v2595, %v2998
    %v3000 = vpop.f32.mrb[0].mxu0
    %v3001 = vpop.f32.mrb[0].mxu0
    %v3002 = vadd.f32 %v2595, %v3001
    %v3003 = vpop.f32.mrb[0].mxu0
    %3004 = vmatprep.mubr.bf16.mxu0 %v2170
    %3005 = vmatmul.mubr.bf16.gmra.mrb[0].mxu0 %v2042
    %v3006 = vpop.f32.mrb[0].mxu0
    %v3007 = vadd.f32 %v2595, %v3006
    %v3008 = vpop.f32.mrb[0].mxu0
    %v3009 = vpop.f32.mrb[0].mxu0
    %v3010 = vadd.f32 %v2595, %v3009
    %v3011 = vpop.f32.mrb[0].mxu0
    %3012 = vmatprep.mubr.bf16.mxu0 %v2174
    %3013 = vmatmul.mubr.bf16.gmra.mrb[0].mxu0 %v2046
    %v3014 = vpop.f32.mrb[0].mxu0
    %v3015 = vadd.f32 %v2595, %v3014
    %v3016 = vpop.f32.mrb[0].mxu0
    %v3017 = vpop.f32.mrb[0].mxu0
    %v3018 = vadd.f32 %v2595, %v3017
    %v3019 = vpop.f32.mrb[0].mxu0
    %3020 = vmatprep.mubr.bf16.mxu0 %v2178
    %3021 = vmatmul.mubr.bf16.gmra.mrb[0].mxu0 %v2050
    %v3022 = vpop.f32.mrb[0].mxu0
    %v3023 = vadd.f32 %v2595, %v3022
    %v3024 = vpop.f32.mrb[0].mxu0
    %v3025 = vpop.f32.mrb[0].mxu0
    %v3026 = vadd.f32 %v2595, %v3025
    %v3027 = vpop.f32.mrb[0].mxu0
    %3028 = vmatprep.mubr.bf16.mxu0 %v2182
    %3029 = vmatmul.mubr.bf16.gmra.mrb[0].mxu0 %v2054
    %v3030 = vpop.f32.mrb[0].mxu0
    %v3031 = vadd.f32 %v2595, %v3030
    %v3032 = vpop.f32.mrb[0].mxu0
    %v3033 = vpop.f32.mrb[0].mxu0
    %v3034 = vadd.f32 %v2595, %v3033
    %v3035 = vpop.f32.mrb[0].mxu0
    %3036 = vmatprep.mubr.bf16.mxu0 %v2186
    %3037 = vmatmul.mubr.bf16.gmra.mrb[0].mxu0 %v2058
    %v3038 = vpop.f32.mrb[0].mxu0
    %v3039 = vadd.f32 %v2595, %v3038
    %v3040 = vpop.f32.mrb[0].mxu0
    %v3041 = vpop.f32.mrb[0].mxu0
    %v3042 = vadd.f32 %v2595, %v3041
    %v3043 = vpop.f32.mrb[0].mxu0
    %3044 = vmatprep.mubr.bf16.mxu0 %v2190
    %3045 = vmatmul.mubr.bf16.gmra.mrb[0].mxu0 %v2062
    %v3046 = vpop.f32.mrb[0].mxu0
    %v3047 = vadd.f32 %v2595, %v3046
    %v3048 = vpop.f32.mrb[0].mxu0
    %v3049 = vpop.f32.mrb[0].mxu0
    %v3050 = vadd.f32 %v2595, %v3049
    %v3051 = vpop.f32.mrb[0].mxu0
    %3052 = vmatprep.mubr.bf16.mxu0 %v2194
    %3053 = vmatmul.mubr.bf16.gmra.mrb[0].mxu0 %v2066
    %v3054 = vpop.f32.mrb[0].mxu0
    %v3055 = vadd.f32 %v2595, %v3054
    %v3056 = vpop.f32.mrb[0].mxu0
    %v3057 = vpop.f32.mrb[0].mxu0
    %v3058 = vadd.f32 %v2595, %v3057
    %v3059 = vpop.f32.mrb[0].mxu0
    %3060 = vmatprep.mubr.bf16.mxu0 %v2198
    %3061 = vmatmul.mubr.bf16.gmra.mrb[0].mxu0 %v2070
    %v3062 = vpop.f32.mrb[0].mxu0
    %v3063 = vadd.f32 %v2595, %v3062
    %v3064 = vpop.f32.mrb[0].mxu0
    %v3065 = vpop.f32.mrb[0].mxu0
    %v3066 = vadd.f32 %v2595, %v3065
    %v3067 = vpop.f32.mrb[0].mxu0
    %3068 = vmatprep.mubr.bf16.mxu0 %v2202
    %3069 = vmatmul.mubr.bf16.gmra.mrb[0].mxu0 %v2074
    %v3070 = vpop.f32.mrb[0].mxu0
    %v3071 = vadd.f32 %v2595, %v3070
    %v3072 = vpop.f32.mrb[0].mxu0
    %v3073 = vpop.f32.mrb[0].mxu0
    %v3074 = vadd.f32 %v2595, %v3073
    %v3075 = vpop.f32.mrb[0].mxu0
    %3076 = vmatprep.mubr.bf16.mxu0 %v2206
    %3077 = vmatmul.mubr.bf16.gmra.mrb[0].mxu0 %v2078
    %v3078 = vpop.f32.mrb[0].mxu0
    %v3079 = vadd.f32 %v2595, %v3078
    %v3080 = vpop.f32.mrb[0].mxu0
    %v3081 = vpop.f32.mrb[0].mxu0
    %v3082 = vadd.f32 %v2595, %v3081
    %v3083 = vpop.f32.mrb[0].mxu0
    %3084 = vmatprep.mubr.bf16.mxu0 %v2210
    %3085 = vmatmul.mubr.bf16.gmra.mrb[0].mxu0 %v2082
    %v3086 = vpop.f32.mrb[0].mxu0
    %v3087 = vadd.f32 %v2595, %v3086
    %v3088 = vpop.f32.mrb[0].mxu0
    %v3089 = vpop.f32.mrb[0].mxu0
    %v3090 = vadd.f32 %v2595, %v3089
    %v3091 = vpop.f32.mrb[0].mxu0
    %3092 = vmatprep.mubr.bf16.mxu0 %v2214
    %3093 = vmatmul.mubr.bf16.gmra.mrb[0].mxu0 %v2086
    %v3094 = vpop.f32.mrb[0].mxu0
    %v3095 = vadd.f32 %v2595, %v3094
    %v3096 = vpop.f32.mrb[0].mxu0
    %v3097 = vpop.f32.mrb[0].mxu0
    %v3098 = vadd.f32 %v2595, %v3097
    %v3099 = vpop.f32.mrb[0].mxu0
    %3100 = vmatprep.mubr.bf16.mxu0 %v2218
    %3101 = vmatmul.mubr.bf16.gmra.mrb[0].mxu0 %v2090
    %v3102 = vpop.f32.mrb[0].mxu0
    %v3103 = vadd.f32 %v2595, %v3102
    %v3104 = vpop.f32.mrb[0].mxu0
    %v3105 = vpop.f32.mrb[0].mxu0
    %v3106 = vadd.f32 %v2595, %v3105
    %v3107 = vpop.f32.mrb[0].mxu0
    %3108 = vmatprep.mubr.bf16.mxu0 %v2222
    %3109 = vmatmul.mubr.bf16.gmra.mrb[0].mxu0 %v2094
    %v3110 = vpop.f32.mrb[0].mxu0
    %v3111 = vadd.f32 %v2595, %v3110
    %v3112 = vpop.f32.mrb[0].mxu0
    %v3113 = vpop.f32.mrb[0].mxu0
    %v3114 = vadd.f32 %v2595, %v3113
    %v3115 = vpop.f32.mrb[0].mxu0
    %3116 = vmatprep.mubr.bf16.mxu0 %v2226
    %3117 = vmatmul.mubr.bf16.gmra.mrb[0].mxu0 %v2098
    %v3118 = vpop.f32.mrb[0].mxu0
    %v3119 = vadd.f32 %v2595, %v3118
    %v3120 = vpop.f32.mrb[0].mxu0
    %v3121 = vpop.f32.mrb[0].mxu0
    %v3122 = vadd.f32 %v2595, %v3121
    %v3123 = vpop.f32.mrb[0].mxu0
    %3124 = vmatprep.mubr.bf16.mxu0 %v2230
    %3125 = vmatmul.mubr.bf16.gmra.mrb[0].mxu0 %v2102
    %v3126 = vpop.f32.mrb[0].mxu0
    %v3127 = vadd.f32 %v2595, %v3126
    %v3128 = vpop.f32.mrb[0].mxu0
    %v3129 = vpop.f32.mrb[0].mxu0
    %v3130 = vadd.f32 %v2595, %v3129
    %v3131 = vpop.f32.mrb[0].mxu0
    %3132 = vmatprep.mubr.bf16.mxu0 %v2234
    %3133 = vmatmul.mubr.bf16.gmra.mrb[0].mxu0 %v2106
    %v3134 = vpop.f32.mrb[0].mxu0
    %v3135 = vadd.f32 %v2595, %v3134
    %v3136 = vpop.f32.mrb[0].mxu0
    %v3137 = vpop.f32.mrb[0].mxu0
    %v3138 = vadd.f32 %v2595, %v3137
    %v3139 = vpop.f32.mrb[0].mxu0
    %3140 = vmatprep.mubr.bf16.mxu0 %v2238
    %3141 = vmatmul.mubr.bf16.gmra.mrb[0].mxu0 %v2110
    %v3142 = vpop.f32.mrb[0].mxu0
    %v3143 = vadd.f32 %v2595, %v3142
    %v3144 = vpop.f32.mrb[0].mxu0
    %v3145 = vpop.f32.mrb[0].mxu0
    %v3146 = vadd.f32 %v2595, %v3145
    %v3147 = vpop.f32.mrb[0].mxu0
    %3148 = vmatprep.mubr.bf16.mxu0 %v2242
    %3149 = vmatmul.mubr.bf16.gmra.mrb[0].mxu0 %v2114
    %v3150 = vpop.f32.mrb[0].mxu0
    %v3151 = vadd.f32 %v2595, %v3150
    %v3152 = vpop.f32.mrb[0].mxu0
    %v3153 = vpop.f32.mrb[0].mxu0
    %v3154 = vadd.f32 %v2595, %v3153
    %v3155 = vpop.f32.mrb[0].mxu0
    %3156 = vmatprep.mubr.bf16.mxu0 %v2246
    %3157 = vmatmul.mubr.bf16.gmra.mrb[0].mxu0 %v2118
    %v3158 = vpop.f32.mrb[0].mxu0
    %v3159 = vadd.f32 %v2595, %v3158
    %v3160 = vpop.f32.mrb[0].mxu0
    %v3161 = vpop.f32.mrb[0].mxu0
    %v3162 = vadd.f32 %v2595, %v3161
    %v3163 = vpop.f32.mrb[0].mxu0
    %3164 = vmatprep.mubr.bf16.mxu0 %v2250
    %3165 = vmatmul.mubr.bf16.gmra.mrb[0].mxu0 %v2122
    %v3166 = vpop.f32.mrb[0].mxu0
    %v3167 = vadd.f32 %v2595, %v3166
    %v3168 = vpop.f32.mrb[0].mxu0
    %v3169 = vpop.f32.mrb[0].mxu0
    %v3170 = vadd.f32 %v2595, %v3169
    %v3171 = vpop.f32.mrb[0].mxu0
    %3172 = vmatprep.mubr.bf16.mxu0 %v2254
    %3173 = vmatmul.mubr.bf16.gmra.mrb[0].mxu0 %v2126
    %v3174 = vpop.f32.mrb[0].mxu0
    %v3175 = vadd.f32 %v2595, %v3174
    %v3176 = vpop.f32.mrb[0].mxu0
    %v3177 = vpop.f32.mrb[0].mxu0
    %v3178 = vadd.f32 %v2595, %v3177
    %v3179 = vpop.f32.mrb[0].mxu0
    %3180 = vmatprep.mubr.bf16.mxu0 %v2258
    %3181 = vmatmul.mubr.bf16.gmra.mrb[0].mxu0 %v2130
    %v3182 = vpop.f32.mrb[0].mxu0
    %v3183 = vadd.f32 %v2595, %v3182
    %v3184 = vpop.f32.mrb[0].mxu0
    %v3185 = vpop.f32.mrb[0].mxu0
    %v3186 = vadd.f32 %v2595, %v3185
    %v3187 = vpop.f32.mrb[0].mxu0
    %3188 = vmatprep.mubr.bf16.mxu0 %v2262
    %3189 = vmatmul.mubr.bf16.gmra.mrb[0].mxu0 %v2134
    %v3190 = vpop.f32.mrb[0].mxu0
    %v3191 = vadd.f32 %v2595, %v3190
    %v3192 = vpop.f32.mrb[0].mxu0
    %v3193 = vpop.f32.mrb[0].mxu0
    %v3194 = vadd.f32 %v2595, %v3193
    %v3195 = vpop.f32.mrb[0].mxu0
    %3196 = vdwg.mxu0
    %3197 = vmatprep.subr.bf16.mxu0 0
    %3198 = vmatpush1.bf16.msra.mxu0 %v2756
    %3199 = vmatprep.subr.bf16.mxu0 0
    %3200 = vmatpush1.bf16.msra.mxu0 %v2757
    %3201 = vmatprep.subr.bf16.mxu0 0
    %3202 = vmatpush1.bf16.msra.mxu0 %v2758
    %3203 = vmatprep.subr.bf16.mxu0 0
    %3204 = vmatpush1.bf16.msra.mxu0 %v2759
    %3205 = vmatprep.subr.bf16.mxu0 0
    %3206 = vmatpush1.bf16.msra.mxu0 %v2760
    %3207 = vmatprep.subr.bf16.mxu0 0
    %3208 = vmatpush1.bf16.msra.mxu0 %v2761
    %3209 = vmatprep.subr.bf16.mxu0 0
    %3210 = vmatpush1.bf16.msra.mxu0 %v2762
    %3211 = vmatprep.subr.bf16.mxu0 0
    %3212 = vmatpush1.bf16.msra.mxu0 %v2763
    %3213 = vmatprep.subr.bf16.mxu0 0
    %3214 = vmatpush1.bf16.msra.mxu0 %v2764
    %3215 = vmatprep.subr.bf16.mxu0 0
    %3216 = vmatpush1.bf16.msra.mxu0 %v2765
    %3217 = vmatprep.subr.bf16.mxu0 0
    %3218 = vmatpush1.bf16.msra.mxu0 %v2766
    %3219 = vmatprep.subr.bf16.mxu0 0
    %3220 = vmatpush1.bf16.msra.mxu0 %v2767
    %3221 = vmatprep.subr.bf16.mxu0 0
    %3222 = vmatpush1.bf16.msra.mxu0 %v2768
    %3223 = vmatprep.subr.bf16.mxu0 0
    %3224 = vmatpush1.bf16.msra.mxu0 %v2769
    %3225 = vmatprep.subr.bf16.mxu0 0
    %3226 = vmatpush1.bf16.msra.mxu0 %v2770
    %3227 = vmatprep.subr.bf16.mxu0 0
    %3228 = vmatpush1.bf16.msra.mxu0 %v2771
    %3229 = vmatprep.mubr.bf16.mxu0 %v2394
    %3230 = vmatmul.mubr.bf16.gmra.mrb[0].mxu0 %v2266
    %v3231 = vpop.f32.mrb[0].mxu0
    %v3232 = vadd.f32 %v2943, %v3231
    %v3233 = vpop.f32.mrb[0].mxu0
    %v3234 = vpop.f32.mrb[0].mxu0
    %v3235 = vadd.f32 %v2946, %v3234
    %v3236 = vpop.f32.mrb[0].mxu0
    %3237 = vmatprep.mubr.bf16.mxu0 %v2398
    %3238 = vmatmul.mubr.bf16.gmra.mrb[0].mxu0 %v2270
    %v3239 = vpop.f32.mrb[0].mxu0
    %v3240 = vadd.f32 %v2951, %v3239
    %v3241 = vpop.f32.mrb[0].mxu0
    %v3242 = vpop.f32.mrb[0].mxu0
    %v3243 = vadd.f32 %v2954, %v3242
    %v3244 = vpop.f32.mrb[0].mxu0
    %3245 = vmatprep.mubr.bf16.mxu0 %v2402
    %3246 = vmatmul.mubr.bf16.gmra.mrb[0].mxu0 %v2274
    %v3247 = vpop.f32.mrb[0].mxu0
    %v3248 = vadd.f32 %v2959, %v3247
    %v3249 = vpop.f32.mrb[0].mxu0
    %v3250 = vpop.f32.mrb[0].mxu0
    %v3251 = vadd.f32 %v2962, %v3250
    %v3252 = vpop.f32.mrb[0].mxu0
    %3253 = vmatprep.mubr.bf16.mxu0 %v2406
    %3254 = vmatmul.mubr.bf16.gmra.mrb[0].mxu0 %v2278
    %v3255 = vpop.f32.mrb[0].mxu0
    %v3256 = vadd.f32 %v2967, %v3255
    %v3257 = vpop.f32.mrb[0].mxu0
    %v3258 = vpop.f32.mrb[0].mxu0
    %v3259 = vadd.f32 %v2970, %v3258
    %v3260 = vpop.f32.mrb[0].mxu0
    %3261 = vmatprep.mubr.bf16.mxu0 %v2410
    %3262 = vmatmul.mubr.bf16.gmra.mrb[0].mxu0 %v2282
    %v3263 = vpop.f32.mrb[0].mxu0
    %v3264 = vadd.f32 %v2975, %v3263
    %v3265 = vpop.f32.mrb[0].mxu0
    %v3266 = vpop.f32.mrb[0].mxu0
    %v3267 = vadd.f32 %v2978, %v3266
    %v3268 = vpop.f32.mrb[0].mxu0
    %3269 = vmatprep.mubr.bf16.mxu0 %v2414
    %3270 = vmatmul.mubr.bf16.gmra.mrb[0].mxu0 %v2286
    %v3271 = vpop.f32.mrb[0].mxu0
    %v3272 = vadd.f32 %v2983, %v3271
    %v3273 = vpop.f32.mrb[0].mxu0
    %v3274 = vpop.f32.mrb[0].mxu0
    %v3275 = vadd.f32 %v2986, %v3274
    %v3276 = vpop.f32.mrb[0].mxu0
    %3277 = vmatprep.mubr.bf16.mxu0 %v2418
    %3278 = vmatmul.mubr.bf16.gmra.mrb[0].mxu0 %v2290
    %v3279 = vpop.f32.mrb[0].mxu0
    %v3280 = vadd.f32 %v2991, %v3279
    %v3281 = vpop.f32.mrb[0].mxu0
    %v3282 = vpop.f32.mrb[0].mxu0
    %v3283 = vadd.f32 %v2994, %v3282
    %v3284 = vpop.f32.mrb[0].mxu0
    %3285 = vmatprep.mubr.bf16.mxu0 %v2422
    %3286 = vmatmul.mubr.bf16.gmra.mrb[0].mxu0 %v2294
    %v3287 = vpop.f32.mrb[0].mxu0
    %v3288 = vadd.f32 %v2999, %v3287
    %v3289 = vpop.f32.mrb[0].mxu0
    %v3290 = vpop.f32.mrb[0].mxu0
    %v3291 = vadd.f32 %v3002, %v3290
    %v3292 = vpop.f32.mrb[0].mxu0
    %3293 = vmatprep.mubr.bf16.mxu0 %v2426
    %3294 = vmatmul.mubr.bf16.gmra.mrb[0].mxu0 %v2298
    %v3295 = vpop.f32.mrb[0].mxu0
    %v3296 = vadd.f32 %v3007, %v3295
    %v3297 = vpop.f32.mrb[0].mxu0
    %v3298 = vpop.f32.mrb[0].mxu0
    %v3299 = vadd.f32 %v3010, %v3298
    %v3300 = vpop.f32.mrb[0].mxu0
    %3301 = vmatprep.mubr.bf16.mxu0 %v2430
    %3302 = vmatmul.mubr.bf16.gmra.mrb[0].mxu0 %v2302
    %v3303 = vpop.f32.mrb[0].mxu0
    %v3304 = vadd.f32 %v3015, %v3303
    %v3305 = vpop.f32.mrb[0].mxu0
    %v3306 = vpop.f32.mrb[0].mxu0
    %v3307 = vadd.f32 %v3018, %v3306
    %v3308 = vpop.f32.mrb[0].mxu0
    %3309 = vmatprep.mubr.bf16.mxu0 %v2434
    %3310 = vmatmul.mubr.bf16.gmra.mrb[0].mxu0 %v2306
    %v3311 = vpop.f32.mrb[0].mxu0
    %v3312 = vadd.f32 %v3023, %v3311
    %v3313 = vpop.f32.mrb[0].mxu0
    %v3314 = vpop.f32.mrb[0].mxu0
    %v3315 = vadd.f32 %v3026, %v3314
    %v3316 = vpop.f32.mrb[0].mxu0
    %3317 = vmatprep.mubr.bf16.mxu0 %v2438
    %3318 = vmatmul.mubr.bf16.gmra.mrb[0].mxu0 %v2310
    %v3319 = vpop.f32.mrb[0].mxu0
    %v3320 = vadd.f32 %v3031, %v3319
    %v3321 = vpop.f32.mrb[0].mxu0
    %v3322 = vpop.f32.mrb[0].mxu0
    %v3323 = vadd.f32 %v3034, %v3322
    %v3324 = vpop.f32.mrb[0].mxu0
    %3325 = vmatprep.mubr.bf16.mxu0 %v2442
    %3326 = vmatmul.mubr.bf16.gmra.mrb[0].mxu0 %v2314
    %v3327 = vpop.f32.mrb[0].mxu0
    %v3328 = vadd.f32 %v3039, %v3327
    %v3329 = vpop.f32.mrb[0].mxu0
    %v3330 = vpop.f32.mrb[0].mxu0
    %v3331 = vadd.f32 %v3042, %v3330
    %v3332 = vpop.f32.mrb[0].mxu0
    %3333 = vmatprep.mubr.bf16.mxu0 %v2446
    %3334 = vmatmul.mubr.bf16.gmra.mrb[0].mxu0 %v2318
    %v3335 = vpop.f32.mrb[0].mxu0
    %v3336 = vadd.f32 %v3047, %v3335
    %v3337 = vpop.f32.mrb[0].mxu0
    %v3338 = vpop.f32.mrb[0].mxu0
    %v3339 = vadd.f32 %v3050, %v3338
    %v3340 = vpop.f32.mrb[0].mxu0
    %3341 = vmatprep.mubr.bf16.mxu0 %v2450
    %3342 = vmatmul.mubr.bf16.gmra.mrb[0].mxu0 %v2322
    %v3343 = vpop.f32.mrb[0].mxu0
    %v3344 = vadd.f32 %v3055, %v3343
    %v3345 = vpop.f32.mrb[0].mxu0
    %v3346 = vpop.f32.mrb[0].mxu0
    %v3347 = vadd.f32 %v3058, %v3346
    %v3348 = vpop.f32.mrb[0].mxu0
    %3349 = vmatprep.mubr.bf16.mxu0 %v2454
    %3350 = vmatmul.mubr.bf16.gmra.mrb[0].mxu0 %v2326
    %v3351 = vpop.f32.mrb[0].mxu0
    %v3352 = vadd.f32 %v3063, %v3351
    %v3353 = vpop.f32.mrb[0].mxu0
    %v3354 = vpop.f32.mrb[0].mxu0
    %v3355 = vadd.f32 %v3066, %v3354
    %v3356 = vpop.f32.mrb[0].mxu0
    %3357 = vmatprep.mubr.bf16.mxu0 %v2458
    %3358 = vmatmul.mubr.bf16.gmra.mrb[0].mxu0 %v2330
    %v3359 = vpop.f32.mrb[0].mxu0
    %v3360 = vadd.f32 %v3071, %v3359
    %v3361 = vpop.f32.mrb[0].mxu0
    %v3362 = vpop.f32.mrb[0].mxu0
    %v3363 = vadd.f32 %v3074, %v3362
    %v3364 = vpop.f32.mrb[0].mxu0
    %3365 = vmatprep.mubr.bf16.mxu0 %v2462
    %3366 = vmatmul.mubr.bf16.gmra.mrb[0].mxu0 %v2334
    %v3367 = vpop.f32.mrb[0].mxu0
    %v3368 = vadd.f32 %v3079, %v3367
    %v3369 = vpop.f32.mrb[0].mxu0
    %v3370 = vpop.f32.mrb[0].mxu0
    %v3371 = vadd.f32 %v3082, %v3370
    %v3372 = vpop.f32.mrb[0].mxu0
    %3373 = vmatprep.mubr.bf16.mxu0 %v2466
    %3374 = vmatmul.mubr.bf16.gmra.mrb[0].mxu0 %v2338
    %v3375 = vpop.f32.mrb[0].mxu0
    %v3376 = vadd.f32 %v3087, %v3375
    %v3377 = vpop.f32.mrb[0].mxu0
    %v3378 = vpop.f32.mrb[0].mxu0
    %v3379 = vadd.f32 %v3090, %v3378
    %v3380 = vpop.f32.mrb[0].mxu0
    %3381 = vmatprep.mubr.bf16.mxu0 %v2470
    %3382 = vmatmul.mubr.bf16.gmra.mrb[0].mxu0 %v2342
    %v3383 = vpop.f32.mrb[0].mxu0
    %v3384 = vadd.f32 %v3095, %v3383
    %v3385 = vpop.f32.mrb[0].mxu0
    %v3386 = vpop.f32.mrb[0].mxu0
    %v3387 = vadd.f32 %v3098, %v3386
    %v3388 = vpop.f32.mrb[0].mxu0
    %3389 = vmatprep.mubr.bf16.mxu0 %v2474
    %3390 = vmatmul.mubr.bf16.gmra.mrb[0].mxu0 %v2346
    %v3391 = vpop.f32.mrb[0].mxu0
    %v3392 = vadd.f32 %v3103, %v3391
    %v3393 = vpop.f32.mrb[0].mxu0
    %v3394 = vpop.f32.mrb[0].mxu0
    %v3395 = vadd.f32 %v3106, %v3394
    %v3396 = vpop.f32.mrb[0].mxu0
    %3397 = vmatprep.mubr.bf16.mxu0 %v2478
    %3398 = vmatmul.mubr.bf16.gmra.mrb[0].mxu0 %v2350
    %v3399 = vpop.f32.mrb[0].mxu0
    %v3400 = vadd.f32 %v3111, %v3399
    %v3401 = vpop.f32.mrb[0].mxu0
    %v3402 = vpop.f32.mrb[0].mxu0
    %v3403 = vadd.f32 %v3114, %v3402
    %v3404 = vpop.f32.mrb[0].mxu0
    %3405 = vmatprep.mubr.bf16.mxu0 %v2482
    %3406 = vmatmul.mubr.bf16.gmra.mrb[0].mxu0 %v2354
    %v3407 = vpop.f32.mrb[0].mxu0
    %v3408 = vadd.f32 %v3119, %v3407
    %v3409 = vpop.f32.mrb[0].mxu0
    %v3410 = vpop.f32.mrb[0].mxu0
    %v3411 = vadd.f32 %v3122, %v3410
    %v3412 = vpop.f32.mrb[0].mxu0
    %3413 = vmatprep.mubr.bf16.mxu0 %v2486
    %3414 = vmatmul.mubr.bf16.gmra.mrb[0].mxu0 %v2358
    %v3415 = vpop.f32.mrb[0].mxu0
    %v3416 = vadd.f32 %v3127, %v3415
    %v3417 = vpop.f32.mrb[0].mxu0
    %v3418 = vpop.f32.mrb[0].mxu0
    %v3419 = vadd.f32 %v3130, %v3418
    %v3420 = vpop.f32.mrb[0].mxu0
    %3421 = vmatprep.mubr.bf16.mxu0 %v2490
    %3422 = vmatmul.mubr.bf16.gmra.mrb[0].mxu0 %v2362
    %v3423 = vpop.f32.mrb[0].mxu0
    %v3424 = vadd.f32 %v3135, %v3423
    %v3425 = vpop.f32.mrb[0].mxu0
    %v3426 = vpop.f32.mrb[0].mxu0
    %v3427 = vadd.f32 %v3138, %v3426
    %v3428 = vpop.f32.mrb[0].mxu0
    %3429 = vmatprep.mubr.bf16.mxu0 %v2494
    %3430 = vmatmul.mubr.bf16.gmra.mrb[0].mxu0 %v2366
    %v3431 = vpop.f32.mrb[0].mxu0
    %v3432 = vadd.f32 %v3143, %v3431
    %v3433 = vpop.f32.mrb[0].mxu0
    %v3434 = vpop.f32.mrb[0].mxu0
    %v3435 = vadd.f32 %v3146, %v3434
    %v3436 = vpop.f32.mrb[0].mxu0
    %3437 = vmatprep.mubr.bf16.mxu0 %v2498
    %3438 = vmatmul.mubr.bf16.gmra.mrb[0].mxu0 %v2370
    %v3439 = vpop.f32.mrb[0].mxu0
    %v3440 = vadd.f32 %v3151, %v3439
    %v3441 = vpop.f32.mrb[0].mxu0
    %v3442 = vpop.f32.mrb[0].mxu0
    %v3443 = vadd.f32 %v3154, %v3442
    %v3444 = vpop.f32.mrb[0].mxu0
    %3445 = vmatprep.mubr.bf16.mxu0 %v2502
    %3446 = vmatmul.mubr.bf16.gmra.mrb[0].mxu0 %v2374
    %v3447 = vpop.f32.mrb[0].mxu0
    %v3448 = vadd.f32 %v3159, %v3447
    %v3449 = vpop.f32.mrb[0].mxu0
    %v3450 = vpop.f32.mrb[0].mxu0
    %v3451 = vadd.f32 %v3162, %v3450
    %v3452 = vpop.f32.mrb[0].mxu0
    %3453 = vmatprep.mubr.bf16.mxu0 %v2506
    %3454 = vmatmul.mubr.bf16.gmra.mrb[0].mxu0 %v2378
    %v3455 = vpop.f32.mrb[0].mxu0
    %v3456 = vadd.f32 %v3167, %v3455
    %v3457 = vpop.f32.mrb[0].mxu0
    %v3458 = vpop.f32.mrb[0].mxu0
    %v3459 = vadd.f32 %v3170, %v3458
    %v3460 = vpop.f32.mrb[0].mxu0
    %3461 = vmatprep.mubr.bf16.mxu0 %v2510
    %3462 = vmatmul.mubr.bf16.gmra.mrb[0].mxu0 %v2382
    %v3463 = vpop.f32.mrb[0].mxu0
    %v3464 = vadd.f32 %v3175, %v3463
    %v3465 = vpop.f32.mrb[0].mxu0
    %v3466 = vpop.f32.mrb[0].mxu0
    %v3467 = vadd.f32 %v3178, %v3466
    %v3468 = vpop.f32.mrb[0].mxu0
    %3469 = vmatprep.mubr.bf16.mxu0 %v2514
    %3470 = vmatmul.mubr.bf16.gmra.mrb[0].mxu0 %v2386
    %v3471 = vpop.f32.mrb[0].mxu0
    %v3472 = vadd.f32 %v3183, %v3471
    %v3473 = vpop.f32.mrb[0].mxu0
    %v3474 = vpop.f32.mrb[0].mxu0
    %v3475 = vadd.f32 %v3186, %v3474
    %v3476 = vpop.f32.mrb[0].mxu0
    %3477 = vmatprep.mubr.bf16.mxu0 %v2518
    %3478 = vmatmul.mubr.bf16.gmra.mrb[0].mxu0 %v2390
    %v3479 = vpop.f32.mrb[0].mxu0
    %v3480 = vadd.f32 %v3191, %v3479
    %v3481 = vpop.f32.mrb[0].mxu0
    %v3482 = vpop.f32.mrb[0].mxu0
    %v3483 = vadd.f32 %v3194, %v3482
    %v3484 = vpop.f32.mrb[0].mxu0
    %3485 = vdwg.mxu0
    %3486 = vmatprep.subr.bf16.mxu0 0
    %3487 = vmatpush1.bf16.msra.mxu0 %v2772
    %3488 = vmatprep.subr.bf16.mxu0 0
    %3489 = vmatpush1.bf16.msra.mxu0 %v2773
    %3490 = vmatprep.subr.bf16.mxu0 0
    %3491 = vmatpush1.bf16.msra.mxu0 %v2774
    %3492 = vmatprep.subr.bf16.mxu0 0
    %3493 = vmatpush1.bf16.msra.mxu0 %v2775
    %3494 = vmatprep.subr.bf16.mxu0 0
    %3495 = vmatpush1.bf16.msra.mxu0 0
    %3496 = vmatprep.subr.bf16.mxu0 0
    %3497 = vmatpush1.bf16.msra.mxu0 0
    %3498 = vmatprep.subr.bf16.mxu0 0
    %3499 = vmatpush1.bf16.msra.mxu0 0
    %3500 = vmatprep.subr.bf16.mxu0 0
    %3501 = vmatpush1.bf16.msra.mxu0 0
    %3502 = vmatprep.subr.bf16.mxu0 0
    %3503 = vmatpush1.bf16.msra.mxu0 0
    %3504 = vmatprep.subr.bf16.mxu0 0
    %3505 = vmatpush1.bf16.msra.mxu0 0
    %3506 = vmatprep.subr.bf16.mxu0 0
    %3507 = vmatpush1.bf16.msra.mxu0 0
    %3508 = vmatprep.subr.bf16.mxu0 0
    %3509 = vmatpush1.bf16.msra.mxu0 0
    %3510 = vmatprep.subr.bf16.mxu0 0
    %3511 = vmatpush1.bf16.msra.mxu0 0
    %3512 = vmatprep.subr.bf16.mxu0 0
    %3513 = vmatpush1.bf16.msra.mxu0 0
    %3514 = vmatprep.subr.bf16.mxu0 0
    %3515 = vmatpush1.bf16.msra.mxu0 0
    %3516 = vmatprep.subr.bf16.mxu0 0
    %3517 = vmatpush1.bf16.msra.mxu0 0
    %3518 = vmatprep.mubr.bf16.mxu0 0
    %3519 = vmatmul.mubr.bf16.gmra.mrb[0].mxu0 %v2813
    %v3520 = vpop.f32.mrb[0].mxu0
    %v3521 = vadd.f32 %v3232, %v3520
    %v3522 = vpop.f32.mrb[0].mxu0
    %v3523 = vpop.f32.mrb[0].mxu0
    %v3524 = vadd.f32 %v3235, %v3523
    %v3525 = vpop.f32.mrb[0].mxu0
    %3526 = vmatprep.mubr.bf16.mxu0 0
    %3527 = vmatmul.mubr.bf16.gmra.mrb[0].mxu0 %v2816
    %v3528 = vpop.f32.mrb[0].mxu0
    %v3529 = vadd.f32 %v3240, %v3528
    %v3530 = vpop.f32.mrb[0].mxu0
    %v3531 = vpop.f32.mrb[0].mxu0
    %v3532 = vadd.f32 %v3243, %v3531
    %v3533 = vpop.f32.mrb[0].mxu0
    %3534 = vmatprep.mubr.bf16.mxu0 0
    %3535 = vmatmul.mubr.bf16.gmra.mrb[0].mxu0 %v2819
    %v3536 = vpop.f32.mrb[0].mxu0
    %v3537 = vadd.f32 %v3248, %v3536
    %v3538 = vpop.f32.mrb[0].mxu0
    %v3539 = vpop.f32.mrb[0].mxu0
    %v3540 = vadd.f32 %v3251, %v3539
    %v3541 = vpop.f32.mrb[0].mxu0
    %3542 = vmatprep.mubr.bf16.mxu0 0
    %3543 = vmatmul.mubr.bf16.gmra.mrb[0].mxu0 %v2822
    %v3544 = vpop.f32.mrb[0].mxu0
    %v3545 = vadd.f32 %v3256, %v3544
    %v3546 = vpop.f32.mrb[0].mxu0
    %v3547 = vpop.f32.mrb[0].mxu0
    %v3548 = vadd.f32 %v3259, %v3547
    %v3549 = vpop.f32.mrb[0].mxu0
    %3550 = vmatprep.mubr.bf16.mxu0 0
    %3551 = vmatmul.mubr.bf16.gmra.mrb[0].mxu0 %v2825
    %v3552 = vpop.f32.mrb[0].mxu0
    %v3553 = vadd.f32 %v3264, %v3552
    %v3554 = vpop.f32.mrb[0].mxu0
    %v3555 = vpop.f32.mrb[0].mxu0
    %v3556 = vadd.f32 %v3267, %v3555
    %v3557 = vpop.f32.mrb[0].mxu0
    %3558 = vmatprep.mubr.bf16.mxu0 0
    %3559 = vmatmul.mubr.bf16.gmra.mrb[0].mxu0 %v2828
    %v3560 = vpop.f32.mrb[0].mxu0
    %v3561 = vadd.f32 %v3272, %v3560
    %v3562 = vpop.f32.mrb[0].mxu0
    %v3563 = vpop.f32.mrb[0].mxu0
    %v3564 = vadd.f32 %v3275, %v3563
    %v3565 = vpop.f32.mrb[0].mxu0
    %3566 = vmatprep.mubr.bf16.mxu0 0
    %3567 = vmatmul.mubr.bf16.gmra.mrb[0].mxu0 %v2831
    %v3568 = vpop.f32.mrb[0].mxu0
    %v3569 = vadd.f32 %v3280, %v3568
    %v3570 = vpop.f32.mrb[0].mxu0
    %v3571 = vpop.f32.mrb[0].mxu0
    %v3572 = vadd.f32 %v3283, %v3571
    %v3573 = vpop.f32.mrb[0].mxu0
    %3574 = vmatprep.mubr.bf16.mxu0 0
    %3575 = vmatmul.mubr.bf16.gmra.mrb[0].mxu0 %v2834
    %v3576 = vpop.f32.mrb[0].mxu0
    %v3577 = vadd.f32 %v3288, %v3576
    %v3578 = vpop.f32.mrb[0].mxu0
    %v3579 = vpop.f32.mrb[0].mxu0
    %v3580 = vadd.f32 %v3291, %v3579
    %v3581 = vpop.f32.mrb[0].mxu0
    %3582 = vmatprep.mubr.bf16.mxu0 0
    %3583 = vmatmul.mubr.bf16.gmra.mrb[0].mxu0 %v2837
    %v3584 = vpop.f32.mrb[0].mxu0
    %v3585 = vadd.f32 %v3296, %v3584
    %v3586 = vpop.f32.mrb[0].mxu0
    %v3587 = vpop.f32.mrb[0].mxu0
    %v3588 = vadd.f32 %v3299, %v3587
    %v3589 = vpop.f32.mrb[0].mxu0
    %3590 = vmatprep.mubr.bf16.mxu0 0
    %3591 = vmatmul.mubr.bf16.gmra.mrb[0].mxu0 %v2840
    %v3592 = vpop.f32.mrb[0].mxu0
    %v3593 = vadd.f32 %v3304, %v3592
    %v3594 = vpop.f32.mrb[0].mxu0
    %v3595 = vpop.f32.mrb[0].mxu0
    %v3596 = vadd.f32 %v3307, %v3595
    %v3597 = vpop.f32.mrb[0].mxu0
    %3598 = vmatprep.mubr.bf16.mxu0 0
    %3599 = vmatmul.mubr.bf16.gmra.mrb[0].mxu0 %v2843
    %v3600 = vpop.f32.mrb[0].mxu0
    %v3601 = vadd.f32 %v3312, %v3600
    %v3602 = vpop.f32.mrb[0].mxu0
    %v3603 = vpop.f32.mrb[0].mxu0
    %v3604 = vadd.f32 %v3315, %v3603
    %v3605 = vpop.f32.mrb[0].mxu0
    %3606 = vmatprep.mubr.bf16.mxu0 0
    %3607 = vmatmul.mubr.bf16.gmra.mrb[0].mxu0 %v2846
    %v3608 = vpop.f32.mrb[0].mxu0
    %v3609 = vadd.f32 %v3320, %v3608
    %v3610 = vpop.f32.mrb[0].mxu0
    %v3611 = vpop.f32.mrb[0].mxu0
    %v3612 = vadd.f32 %v3323, %v3611
    %v3613 = vpop.f32.mrb[0].mxu0
    %3614 = vmatprep.mubr.bf16.mxu0 0
    %3615 = vmatmul.mubr.bf16.gmra.mrb[0].mxu0 %v2849
    %v3616 = vpop.f32.mrb[0].mxu0
    %v3617 = vadd.f32 %v3328, %v3616
    %v3618 = vpop.f32.mrb[0].mxu0
    %v3619 = vpop.f32.mrb[0].mxu0
    %v3620 = vadd.f32 %v3331, %v3619
    %v3621 = vpop.f32.mrb[0].mxu0
    %3622 = vmatprep.mubr.bf16.mxu0 0
    %3623 = vmatmul.mubr.bf16.gmra.mrb[0].mxu0 %v2852
    %v3624 = vpop.f32.mrb[0].mxu0
    %v3625 = vadd.f32 %v3336, %v3624
    %v3626 = vpop.f32.mrb[0].mxu0
    %v3627 = vpop.f32.mrb[0].mxu0
    %v3628 = vadd.f32 %v3339, %v3627
    %v3629 = vpop.f32.mrb[0].mxu0
    %3630 = vmatprep.mubr.bf16.mxu0 0
    %3631 = vmatmul.mubr.bf16.gmra.mrb[0].mxu0 %v2855
    %v3632 = vpop.f32.mrb[0].mxu0
    %v3633 = vadd.f32 %v3344, %v3632
    %v3634 = vpop.f32.mrb[0].mxu0
    %v3635 = vpop.f32.mrb[0].mxu0
    %v3636 = vadd.f32 %v3347, %v3635
    %v3637 = vpop.f32.mrb[0].mxu0
    %3638 = vmatprep.mubr.bf16.mxu0 0
    %3639 = vmatmul.mubr.bf16.gmra.mrb[0].mxu0 %v2858
    %v3640 = vpop.f32.mrb[0].mxu0
    %v3641 = vadd.f32 %v3352, %v3640
    %v3642 = vpop.f32.mrb[0].mxu0
    %v3643 = vpop.f32.mrb[0].mxu0
    %v3644 = vadd.f32 %v3355, %v3643
    %v3645 = vpop.f32.mrb[0].mxu0
    %3646 = vmatprep.mubr.bf16.mxu0 0
    %3647 = vmatmul.mubr.bf16.gmra.mrb[0].mxu0 %v2861
    %v3648 = vpop.f32.mrb[0].mxu0
    %v3649 = vadd.f32 %v3360, %v3648
    %v3650 = vpop.f32.mrb[0].mxu0
    %v3651 = vpop.f32.mrb[0].mxu0
    %v3652 = vadd.f32 %v3363, %v3651
    %v3653 = vpop.f32.mrb[0].mxu0
    %3654 = vmatprep.mubr.bf16.mxu0 0
    %3655 = vmatmul.mubr.bf16.gmra.mrb[0].mxu0 %v2864
    %v3656 = vpop.f32.mrb[0].mxu0
    %v3657 = vadd.f32 %v3368, %v3656
    %v3658 = vpop.f32.mrb[0].mxu0
    %v3659 = vpop.f32.mrb[0].mxu0
    %v3660 = vadd.f32 %v3371, %v3659
    %v3661 = vpop.f32.mrb[0].mxu0
    %3662 = vmatprep.mubr.bf16.mxu0 0
    %3663 = vmatmul.mubr.bf16.gmra.mrb[0].mxu0 %v2867
    %v3664 = vpop.f32.mrb[0].mxu0
    %v3665 = vadd.f32 %v3376, %v3664
    %v3666 = vpop.f32.mrb[0].mxu0
    %v3667 = vpop.f32.mrb[0].mxu0
    %v3668 = vadd.f32 %v3379, %v3667
    %v3669 = vpop.f32.mrb[0].mxu0
    %3670 = vmatprep.mubr.bf16.mxu0 0
    %3671 = vmatmul.mubr.bf16.gmra.mrb[0].mxu0 %v2870
    %v3672 = vpop.f32.mrb[0].mxu0
    %v3673 = vadd.f32 %v3384, %v3672
    %v3674 = vpop.f32.mrb[0].mxu0
    %v3675 = vpop.f32.mrb[0].mxu0
    %v3676 = vadd.f32 %v3387, %v3675
    %v3677 = vpop.f32.mrb[0].mxu0
    %3678 = vmatprep.mubr.bf16.mxu0 0
    %3679 = vmatmul.mubr.bf16.gmra.mrb[0].mxu0 %v2873
    %v3680 = vpop.f32.mrb[0].mxu0
    %v3681 = vadd.f32 %v3392, %v3680
    %v3682 = vpop.f32.mrb[0].mxu0
    %v3683 = vpop.f32.mrb[0].mxu0
    %v3684 = vadd.f32 %v3395, %v3683
    %v3685 = vpop.f32.mrb[0].mxu0
    %3686 = vmatprep.mubr.bf16.mxu0 0
    %3687 = vmatmul.mubr.bf16.gmra.mrb[0].mxu0 %v2876
    %v3688 = vpop.f32.mrb[0].mxu0
    %v3689 = vadd.f32 %v3400, %v3688
    %v3690 = vpop.f32.mrb[0].mxu0
    %v3691 = vpop.f32.mrb[0].mxu0
    %v3692 = vadd.f32 %v3403, %v3691
    %v3693 = vpop.f32.mrb[0].mxu0
    %3694 = vmatprep.mubr.bf16.mxu0 0
    %3695 = vmatmul.mubr.bf16.gmra.mrb[0].mxu0 %v2879
    %v3696 = vpop.f32.mrb[0].mxu0
    %v3697 = vadd.f32 %v3408, %v3696
    %v3698 = vpop.f32.mrb[0].mxu0
    %v3699 = vpop.f32.mrb[0].mxu0
    %v3700 = vadd.f32 %v3411, %v3699
    %v3701 = vpop.f32.mrb[0].mxu0
    %3702 = vmatprep.mubr.bf16.mxu0 0
    %3703 = vmatmul.mubr.bf16.gmra.mrb[0].mxu0 %v2882
    %v3704 = vpop.f32.mrb[0].mxu0
    %v3705 = vadd.f32 %v3416, %v3704
    %v3706 = vpop.f32.mrb[0].mxu0
    %v3707 = vpop.f32.mrb[0].mxu0
    %v3708 = vadd.f32 %v3419, %v3707
    %v3709 = vpop.f32.mrb[0].mxu0
    %3710 = vmatprep.mubr.bf16.mxu0 0
    %3711 = vmatmul.mubr.bf16.gmra.mrb[0].mxu0 %v2885
    %v3712 = vpop.f32.mrb[0].mxu0
    %v3713 = vadd.f32 %v3424, %v3712
    %v3714 = vpop.f32.mrb[0].mxu0
    %v3715 = vpop.f32.mrb[0].mxu0
    %v3716 = vadd.f32 %v3427, %v3715
    %v3717 = vpop.f32.mrb[0].mxu0
    %3718 = vmatprep.mubr.bf16.mxu0 0
    %3719 = vmatmul.mubr.bf16.gmra.mrb[0].mxu0 %v2888
    %v3720 = vpop.f32.mrb[0].mxu0
    %v3721 = vadd.f32 %v3432, %v3720
    %v3722 = vpop.f32.mrb[0].mxu0
    %v3723 = vpop.f32.mrb[0].mxu0
    %v3724 = vadd.f32 %v3435, %v3723
    %v3725 = vpop.f32.mrb[0].mxu0
    %3726 = vmatprep.mubr.bf16.mxu0 0
    %3727 = vmatmul.mubr.bf16.gmra.mrb[0].mxu0 %v2891
    %v3728 = vpop.f32.mrb[0].mxu0
    %v3729 = vadd.f32 %v3440, %v3728
    %v3730 = vpop.f32.mrb[0].mxu0
    %v3731 = vpop.f32.mrb[0].mxu0
    %v3732 = vadd.f32 %v3443, %v3731
    %v3733 = vpop.f32.mrb[0].mxu0
    %3734 = vmatprep.mubr.bf16.mxu0 0
    %3735 = vmatmul.mubr.bf16.gmra.mrb[0].mxu0 %v2894
    %v3736 = vpop.f32.mrb[0].mxu0
    %v3737 = vadd.f32 %v3448, %v3736
    %v3738 = vpop.f32.mrb[0].mxu0
    %v3739 = vpop.f32.mrb[0].mxu0
    %v3740 = vadd.f32 %v3451, %v3739
    %v3741 = vpop.f32.mrb[0].mxu0
    %3742 = vmatprep.mubr.bf16.mxu0 0
    %3743 = vmatmul.mubr.bf16.gmra.mrb[0].mxu0 %v2897
    %v3744 = vpop.f32.mrb[0].mxu0
    %v3745 = vadd.f32 %v3456, %v3744
    %v3746 = vpop.f32.mrb[0].mxu0
    %v3747 = vpop.f32.mrb[0].mxu0
    %v3748 = vadd.f32 %v3459, %v3747
    %v3749 = vpop.f32.mrb[0].mxu0
    %3750 = vmatprep.mubr.bf16.mxu0 0
    %3751 = vmatmul.mubr.bf16.gmra.mrb[0].mxu0 %v2900
    %v3752 = vpop.f32.mrb[0].mxu0
    %v3753 = vadd.f32 %v3464, %v3752
    %v3754 = vpop.f32.mrb[0].mxu0
    %v3755 = vpop.f32.mrb[0].mxu0
    %v3756 = vadd.f32 %v3467, %v3755
    %v3757 = vpop.f32.mrb[0].mxu0
    %3758 = vmatprep.mubr.bf16.mxu0 0
    %3759 = vmatmul.mubr.bf16.gmra.mrb[0].mxu0 %v2903
    %v3760 = vpop.f32.mrb[0].mxu0
    %v3761 = vadd.f32 %v3472, %v3760
    %v3762 = vpop.f32.mrb[0].mxu0
    %v3763 = vpop.f32.mrb[0].mxu0
    %v3764 = vadd.f32 %v3475, %v3763
    %v3765 = vpop.f32.mrb[0].mxu0
    %3766 = vmatprep.mubr.bf16.mxu0 0
    %3767 = vmatmul.mubr.bf16.gmra.mrb[0].mxu0 %v2906
    %v3768 = vpop.f32.mrb[0].mxu0
    %v3769 = vadd.f32 %v3480, %v3768
    %v3770 = vpop.f32.mrb[0].mxu0
    %v3771 = vpop.f32.mrb[0].mxu0
    %v3772 = vadd.f32 %v3483, %v3771
    %v3773 = vpop.f32.mrb[0].mxu0
    %3774 = vdwg.mxu0
    %v3775 = vmax.f32 %v3521, 0.0
    %v3776 = vmax.f32 %v3524, 0.0
    %v3777 = vmax.f32 %v3529, 0.0
    %v3778 = vmax.f32 %v3532, 0.0
    %v3779 = vmax.f32 %v3537, 0.0
    %v3780 = vmax.f32 %v3540, 0.0
    %v3781 = vmax.f32 %v3545, 0.0
    %v3782 = vmax.f32 %v3548, 0.0
    %v3783 = vmax.f32 %v3553, 0.0
    %v3784 = vmax.f32 %v3556, 0.0
    %v3785 = vmax.f32 %v3561, 0.0
    %v3786 = vmax.f32 %v3564, 0.0
    %v3787 = vmax.f32 %v3569, 0.0
    %v3788 = vmax.f32 %v3572, 0.0
    %v3789 = vmax.f32 %v3577, 0.0
    %v3790 = vmax.f32 %v3580, 0.0
    %v3791 = vmax.f32 %v3585, 0.0
    %v3792 = vmax.f32 %v3588, 0.0
    %v3793 = vmax.f32 %v3593, 0.0
    %v3794 = vmax.f32 %v3596, 0.0
    %v3795 = vmax.f32 %v3601, 0.0
    %v3796 = vmax.f32 %v3604, 0.0
    %v3797 = vmax.f32 %v3609, 0.0
    %v3798 = vmax.f32 %v3612, 0.0
    %v3799 = vmax.f32 %v3617, 0.0
    %v3800 = vmax.f32 %v3620, 0.0
    %v3801 = vmax.f32 %v3625, 0.0
    %v3802 = vmax.f32 %v3628, 0.0
    %v3803 = vmax.f32 %v3633, 0.0
    %v3804 = vmax.f32 %v3636, 0.0
    %v3805 = vmax.f32 %v3641, 0.0
    %v3806 = vmax.f32 %v3644, 0.0
    %v3807 = vmax.f32 %v3649, 0.0
    %v3808 = vmax.f32 %v3652, 0.0
    %v3809 = vmax.f32 %v3657, 0.0
    %v3810 = vmax.f32 %v3660, 0.0
    %v3811 = vmax.f32 %v3665, 0.0
    %v3812 = vmax.f32 %v3668, 0.0
    %v3813 = vmax.f32 %v3673, 0.0
    %v3814 = vmax.f32 %v3676, 0.0
    %v3815 = vmax.f32 %v3681, 0.0
    %v3816 = vmax.f32 %v3684, 0.0
    %v3817 = vmax.f32 %v3689, 0.0
    %v3818 = vmax.f32 %v3692, 0.0
    %v3819 = vmax.f32 %v3697, 0.0
    %v3820 = vmax.f32 %v3700, 0.0
    %v3821 = vmax.f32 %v3705, 0.0
    %v3822 = vmax.f32 %v3708, 0.0
    %v3823 = vmax.f32 %v3713, 0.0
    %v3824 = vmax.f32 %v3716, 0.0
    %v3825 = vmax.f32 %v3721, 0.0
    %v3826 = vmax.f32 %v3724, 0.0
    %v3827 = vmax.f32 %v3729, 0.0
    %v3828 = vmax.f32 %v3732, 0.0
    %v3829 = vmax.f32 %v3737, 0.0
    %v3830 = vmax.f32 %v3740, 0.0
    %v3831 = vmax.f32 %v3745, 0.0
    %v3832 = vmax.f32 %v3748, 0.0
    %v3833 = vmax.f32 %v3753, 0.0
    %v3834 = vmax.f32 %v3756, 0.0
    %v3835 = vmax.f32 %v3761, 0.0
    %v3836 = vmax.f32 %v3764, 0.0
    %v3837 = vmax.f32 %v3769, 0.0
    %v3838 = vmax.f32 %v3772, 0.0
    %v3839 = vsel %vm165, %v3775, 0.0
    %v3840 = vsel %vm165, %v3776, 0.0
    %v3841 = vadd.f32 %v3839, %v3840
    %v3842 = vsel %vm165, %v3777, 0.0
    %v3843 = vadd.f32 %v3841, %v3842
    %v3844 = vsel %vm165, %v3778, 0.0
    %v3845 = vadd.f32 %v3843, %v3844
    %v3846 = vsel %vm165, %v3779, 0.0
    %v3847 = vadd.f32 %v3845, %v3846
    %v3848 = vsel %vm165, %v3780, 0.0
    %v3849 = vadd.f32 %v3847, %v3848
    %v3850 = vsel %vm165, %v3781, 0.0
    %v3851 = vadd.f32 %v3849, %v3850
    %v3852 = vsel %vm165, %v3782, 0.0
    %v3853 = vadd.f32 %v3851, %v3852
    %v3854 = vsel %vm165, %v3783, 0.0
    %v3855 = vadd.f32 %v3853, %v3854
    %v3856 = vsel %vm165, %v3784, 0.0
    %v3857 = vadd.f32 %v3855, %v3856
    %v3858 = vsel %vm165, %v3785, 0.0
    %v3859 = vadd.f32 %v3857, %v3858
    %v3860 = vsel %vm165, %v3786, 0.0
    %v3861 = vadd.f32 %v3859, %v3860
    %v3862 = vsel %vm165, %v3787, 0.0
    %v3863 = vadd.f32 %v3861, %v3862
    %v3864 = vsel %vm165, %v3788, 0.0
    %v3865 = vadd.f32 %v3863, %v3864
    %v3866 = vsel %vm165, %v3789, 0.0
    %v3867 = vadd.f32 %v3865, %v3866
    %v3868 = vsel %vm165, %v3790, 0.0
    %v3869 = vadd.f32 %v3867, %v3868
    %v3870 = vsel %vm165, %v3791, 0.0
    %v3871 = vadd.f32 %v3869, %v3870
    %v3872 = vsel %vm165, %v3792, 0.0
    %v3873 = vadd.f32 %v3871, %v3872
    %v3874 = vsel %vm165, %v3793, 0.0
    %v3875 = vadd.f32 %v3873, %v3874
    %v3876 = vsel %vm165, %v3794, 0.0
    %v3877 = vadd.f32 %v3875, %v3876
    %v3878 = vsel %vm165, %v3795, 0.0
    %v3879 = vadd.f32 %v3877, %v3878
    %v3880 = vsel %vm165, %v3796, 0.0
    %v3881 = vadd.f32 %v3879, %v3880
    %v3882 = vsel %vm165, %v3797, 0.0
    %v3883 = vadd.f32 %v3881, %v3882
    %v3884 = vsel %vm165, %v3798, 0.0
    %v3885 = vadd.f32 %v3883, %v3884
    %v3886 = vsel %vm165, %v3799, 0.0
    %v3887 = vadd.f32 %v3885, %v3886
    %v3888 = vsel %vm165, %v3800, 0.0
    %v3889 = vadd.f32 %v3887, %v3888
    %v3890 = vsel %vm165, %v3801, 0.0
    %v3891 = vadd.f32 %v3889, %v3890
    %v3892 = vsel %vm165, %v3802, 0.0
    %v3893 = vadd.f32 %v3891, %v3892
    %v3894 = vsel %vm165, %v3803, 0.0
    %v3895 = vadd.f32 %v3893, %v3894
    %v3896 = vsel %vm165, %v3804, 0.0
    %v3897 = vadd.f32 %v3895, %v3896
    %v3898 = vsel %vm165, %v3805, 0.0
    %v3899 = vadd.f32 %v3897, %v3898
    %v3900 = vsel %vm165, %v3806, 0.0
    %v3901 = vadd.f32 %v3899, %v3900
    %v3902 = vrot.slane %v3901, 4
    %v3903 = vadd.f32 %v3901, %v3902
    %v3904 = vrot.slane %v3903, 2
    %v3905 = vadd.f32 %v3903, %v3904
    %v3906 = vrot.slane %v3905, 1
    %v3907 = vadd.f32 %v3905, %v3906
    %v3908 = vsel %vm165, %v3807, 0.0
    %v3909 = vsel %vm165, %v3808, 0.0
    %v3910 = vadd.f32 %v3908, %v3909
    %v3911 = vsel %vm165, %v3809, 0.0
    %v3912 = vadd.f32 %v3910, %v3911
    %v3913 = vsel %vm165, %v3810, 0.0
    %v3914 = vadd.f32 %v3912, %v3913
    %v3915 = vsel %vm165, %v3811, 0.0
    %v3916 = vadd.f32 %v3914, %v3915
    %v3917 = vsel %vm165, %v3812, 0.0
    %v3918 = vadd.f32 %v3916, %v3917
    %v3919 = vsel %vm165, %v3813, 0.0
    %v3920 = vadd.f32 %v3918, %v3919
    %v3921 = vsel %vm165, %v3814, 0.0
    %v3922 = vadd.f32 %v3920, %v3921
    %v3923 = vsel %vm165, %v3815, 0.0
    %v3924 = vadd.f32 %v3922, %v3923
    %v3925 = vsel %vm165, %v3816, 0.0
    %v3926 = vadd.f32 %v3924, %v3925
    %v3927 = vsel %vm165, %v3817, 0.0
    %v3928 = vadd.f32 %v3926, %v3927
    %v3929 = vsel %vm165, %v3818, 0.0
    %v3930 = vadd.f32 %v3928, %v3929
    %v3931 = vsel %vm165, %v3819, 0.0
    %v3932 = vadd.f32 %v3930, %v3931
    %v3933 = vsel %vm165, %v3820, 0.0
    %v3934 = vadd.f32 %v3932, %v3933
    %v3935 = vsel %vm165, %v3821, 0.0
    %v3936 = vadd.f32 %v3934, %v3935
    %v3937 = vsel %vm165, %v3822, 0.0
    %v3938 = vadd.f32 %v3936, %v3937
    %v3939 = vsel %vm165, %v3823, 0.0
    %v3940 = vadd.f32 %v3938, %v3939
    %v3941 = vsel %vm165, %v3824, 0.0
    %v3942 = vadd.f32 %v3940, %v3941
    %v3943 = vsel %vm165, %v3825, 0.0
    %v3944 = vadd.f32 %v3942, %v3943
    %v3945 = vsel %vm165, %v3826, 0.0
    %v3946 = vadd.f32 %v3944, %v3945
    %v3947 = vsel %vm165, %v3827, 0.0
    %v3948 = vadd.f32 %v3946, %v3947
    %v3949 = vsel %vm165, %v3828, 0.0
    %v3950 = vadd.f32 %v3948, %v3949
    %v3951 = vsel %vm165, %v3829, 0.0
    %v3952 = vadd.f32 %v3950, %v3951
    %v3953 = vsel %vm165, %v3830, 0.0
    %v3954 = vadd.f32 %v3952, %v3953
    %v3955 = vsel %vm165, %v3831, 0.0
    %v3956 = vadd.f32 %v3954, %v3955
    %v3957 = vsel %vm165, %v3832, 0.0
    %v3958 = vadd.f32 %v3956, %v3957
    %v3959 = vsel %vm165, %v3833, 0.0
    %v3960 = vadd.f32 %v3958, %v3959
    %v3961 = vsel %vm165, %v3834, 0.0
    %v3962 = vadd.f32 %v3960, %v3961
    %v3963 = vsel %vm165, %v3835, 0.0
    %v3964 = vadd.f32 %v3962, %v3963
    %v3965 = vsel %vm165, %v3836, 0.0
    %v3966 = vadd.f32 %v3964, %v3965
    %v3967 = vsel %vm165, %v3837, 0.0
    %v3968 = vadd.f32 %v3966, %v3967
    %v3969 = vsel %vm165, %v3838, 0.0
    %v3970 = vadd.f32 %v3968, %v3969
    %v3971 = vrot.slane %v3970, 4
    %v3972 = vadd.f32 %v3970, %v3971
    %v3973 = vrot.slane %v3972, 2
    %v3974 = vadd.f32 %v3972, %v3973
    %v3975 = vrot.slane %v3974, 1
    %v3976 = vadd.f32 %v3974, %v3975
    %v3977 = vrcp.pop 256.0
    %v3978 = vmul.f32 %v3907, %v3977
    %v3979 = vmul.f32 %v3976, %v3977
    %v3980 = vld [vmem:[%s3] sm:$0xff]
    %v3981 = vld [vmem:[%s3 + $0x8] sm:$0xff]
    %v3982 = vld [vmem:[%s3 + $0x10] sm:$0xff]
    %v3983 = vld [vmem:[%s3 + $0x18] sm:$0xff]
    %v3984 = vld [vmem:[%s3 + $0x20] sm:$0xff]
    %v3985 = vld [vmem:[%s3 + $0x28] sm:$0xff]
    %v3986 = vld [vmem:[%s3 + $0x30] sm:$0xff]
    %v3987 = vld [vmem:[%s3 + $0x38] sm:$0xff]
    %v3988 = vlaneseq
    %v3989 = vshrl.u32 %v3988, 7
    %v3990 = vsub.s32 0, %v3989
    %v3991 = vrot.slane %v30, %v3990
    %vm3994 = vcmask 1041409
    %v3995 = vsel %vm3994, %v3979, %v3978
    %v3996 = vsel %vm165, %v3995, 0
    %3998 = vmatprep.subr.mxu0 0.0
    %3999 = vmatpush1.msra.mxu0 %v3980
    %4000 = vmatprep.subr.mxu0 0.0
    %4001 = vmatpush1.msra.mxu0 %v3981
    %4002 = vmatprep.subr.mxu0 0.0
    %4003 = vmatpush1.msra.mxu0 %v3982
    %4004 = vmatprep.subr.mxu0 0.0
    %4005 = vmatpush1.msra.mxu0 %v3983
    %4006 = vmatprep.subr.mxu0 0.0
    %4007 = vmatpush1.msra.mxu0 %v3984
    %4008 = vmatprep.subr.mxu0 0.0
    %4009 = vmatpush1.msra.mxu0 %v3985
    %4010 = vmatprep.subr.mxu0 0.0
    %4011 = vmatpush1.msra.mxu0 %v3986
    %4012 = vmatprep.subr.mxu0 0.0
    %4013 = vmatpush1.msra.mxu0 %v3987
    %4014 = vmatprep.subr.mxu0 0.0
    %4015 = vmatpush1.msra.mxu0 0.0
    %4016 = vmatprep.subr.mxu0 0.0
    %4017 = vmatpush1.msra.mxu0 0.0
    %4018 = vmatprep.subr.mxu0 0.0
    %4019 = vmatpush1.msra.mxu0 0.0
    %4020 = vmatprep.subr.mxu0 0.0
    %4021 = vmatpush1.msra.mxu0 0.0
    %4022 = vmatprep.subr.mxu0 0.0
    %4023 = vmatpush1.msra.mxu0 0.0
    %4024 = vmatprep.subr.mxu0 0.0
    %4025 = vmatpush1.msra.mxu0 0.0
    %4026 = vmatprep.subr.mxu0 0.0
    %4027 = vmatpush1.msra.mxu0 0.0
    %4028 = vmatprep.subr.mxu0 0.0
    %4029 = vmatpush1.msra.mxu0 0.0
    %4030 = vmatprep.subr.mxu0 0.0
    %4031 = vmatpush1.msra.mxu0 0.0
    %4032 = vmatprep.subr.mxu0 0.0
    %4033 = vmatpush1.msra.mxu0 0.0
    %4034 = vmatprep.subr.mxu0 0.0
    %4035 = vmatpush1.msra.mxu0 0.0
    %4036 = vmatprep.subr.mxu0 0.0
    %4037 = vmatpush1.msra.mxu0 0.0
    %4038 = vmatprep.subr.mxu0 0.0
    %4039 = vmatpush1.msra.mxu0 0.0
    %4040 = vmatprep.subr.mxu0 0.0
    %4041 = vmatpush1.msra.mxu0 0.0
    %4042 = vmatprep.subr.mxu0 0.0
    %4043 = vmatpush1.msra.mxu0 0.0
    %4044 = vmatprep.subr.mxu0 0.0
    %4045 = vmatpush1.msra.mxu0 0.0
    %4046 = vmatprep.subr.mxu0 0.0
    %4047 = vmatpush1.msra.mxu0 0.0
    %4048 = vmatprep.subr.mxu0 0.0
    %4049 = vmatpush1.msra.mxu0 0.0
    %4050 = vmatprep.subr.mxu0 0.0
    %4051 = vmatpush1.msra.mxu0 0.0
    %4052 = vmatprep.subr.mxu0 0.0
    %4053 = vmatpush1.msra.mxu0 0.0
    %4054 = vmatprep.subr.mxu0 0.0
    %4055 = vmatpush1.msra.mxu0 0.0
    %4056 = vmatprep.subr.mxu0 0.0
    %4057 = vmatpush1.msra.mxu0 0.0
    %4058 = vmatprep.subr.mxu0 0.0
    %4059 = vmatpush1.msra.mxu0 0.0
    %4060 = vmatprep.subr.mxu0 0.0
    %4061 = vmatpush1.msra.mxu0 0.0
    %4062 = vmatprep.mubr.f32.mxu0 0.0
    %4063 = vmatmul.mubr.f32.gmra.mrb[0].mxu0 %v3996
    %v4064 = vpop.f32.mrb[0].mxu0
    %v4065 = vadd.f32 %v3991, %v4064
    %v4066 = vpop.f32.mrb[0].mxu0
    %4067 = vdwg.mxu0
    %v4068 = vmax.f32 %v4065, 0.0
    %v4069 = vld [vmem:[%s4] sm:$0xff]
    %v4070 = vld [vmem:[%s4 + $0x8] sm:$0xff]
    %v4071 = vld [vmem:[%s4 + $0x10] sm:$0xff]
    %v4072 = vld [vmem:[%s4 + $0x18] sm:$0xff]
    %v4073 = vlaneseq
    %v4074 = vshrl.u32 %v4073, 7
    %v4075 = vsub.s32 0, %v4074
    %v4076 = vrot.slane %v31, %v4075
    %vm4077 = vcmask 261120
    %v4079 = vsel %vm4077, %v4068, 0
    %4081 = vmatprep.subr.mxu0 0.0
    %4082 = vmatpush1.msra.mxu0 %v4069
    %4083 = vmatprep.subr.mxu0 0.0
    %4084 = vmatpush1.msra.mxu0 %v4070
    %4085 = vmatprep.subr.mxu0 0.0
    %4086 = vmatpush1.msra.mxu0 %v4071
    %4087 = vmatprep.subr.mxu0 0.0
    %4088 = vmatpush1.msra.mxu0 %v4072
    %4089 = vmatprep.subr.mxu0 0.0
    %4090 = vmatpush1.msra.mxu0 0.0
    %4091 = vmatprep.subr.mxu0 0.0
    %4092 = vmatpush1.msra.mxu0 0.0
    %4093 = vmatprep.subr.mxu0 0.0
    %4094 = vmatpush1.msra.mxu0 0.0
    %4095 = vmatprep.subr.mxu0 0.0
    %4096 = vmatpush1.msra.mxu0 0.0
    %4097 = vmatprep.subr.mxu0 0.0
    %4098 = vmatpush1.msra.mxu0 0.0
    %4099 = vmatprep.subr.mxu0 0.0
    %4100 = vmatpush1.msra.mxu0 0.0
    %4101 = vmatprep.subr.mxu0 0.0
    %4102 = vmatpush1.msra.mxu0 0.0
    %4103 = vmatprep.subr.mxu0 0.0
    %4104 = vmatpush1.msra.mxu0 0.0
    %4105 = vmatprep.subr.mxu0 0.0
    %4106 = vmatpush1.msra.mxu0 0.0
    %4107 = vmatprep.subr.mxu0 0.0
    %4108 = vmatpush1.msra.mxu0 0.0
    %4109 = vmatprep.subr.mxu0 0.0
    %4110 = vmatpush1.msra.mxu0 0.0
    %4111 = vmatprep.subr.mxu0 0.0
    %4112 = vmatpush1.msra.mxu0 0.0
    %4113 = vmatprep.subr.mxu0 0.0
    %4114 = vmatpush1.msra.mxu0 0.0
    %4115 = vmatprep.subr.mxu0 0.0
    %4116 = vmatpush1.msra.mxu0 0.0
    %4117 = vmatprep.subr.mxu0 0.0
    %4118 = vmatpush1.msra.mxu0 0.0
    %4119 = vmatprep.subr.mxu0 0.0
    %4120 = vmatpush1.msra.mxu0 0.0
    %4121 = vmatprep.subr.mxu0 0.0
    %4122 = vmatpush1.msra.mxu0 0.0
    %4123 = vmatprep.subr.mxu0 0.0
    %4124 = vmatpush1.msra.mxu0 0.0
    %4125 = vmatprep.subr.mxu0 0.0
    %4126 = vmatpush1.msra.mxu0 0.0
    %4127 = vmatprep.subr.mxu0 0.0
    %4128 = vmatpush1.msra.mxu0 0.0
    %4129 = vmatprep.subr.mxu0 0.0
    %4130 = vmatpush1.msra.mxu0 0.0
    %4131 = vmatprep.subr.mxu0 0.0
    %4132 = vmatpush1.msra.mxu0 0.0
    %4133 = vmatprep.subr.mxu0 0.0
    %4134 = vmatpush1.msra.mxu0 0.0
    %4135 = vmatprep.subr.mxu0 0.0
    %4136 = vmatpush1.msra.mxu0 0.0
    %4137 = vmatprep.subr.mxu0 0.0
    %4138 = vmatpush1.msra.mxu0 0.0
    %4139 = vmatprep.subr.mxu0 0.0
    %4140 = vmatpush1.msra.mxu0 0.0
    %4141 = vmatprep.subr.mxu0 0.0
    %4142 = vmatpush1.msra.mxu0 0.0
    %4143 = vmatprep.subr.mxu0 0.0
    %4144 = vmatpush1.msra.mxu0 0.0
    %4145 = vmatprep.mubr.f32.mxu0 0.0
    %4146 = vmatmul.mubr.f32.gmra.mrb[0].mxu0 %v4079
    %v4147 = vpop.f32.mrb[0].mxu0
    %v4148 = vadd.f32 %v4076, %v4147
    %v4149 = vpop.f32.mrb[0].mxu0
    %4150 = vdwg.mxu0
    %v4151 = vxor.u32 %v4148, 2147483648
    %v4152 = vmul.f32 %v4151, 1.442695
    %v4153 = vpow.pop %v4152
    %v4154 = vadd.f32 %v4153, 1.0
    %v4155 = vrcp.pop %v4154
    %v4156 = vmul.f32 1.0, %v4155
    %v4159 = vunpack.c.l.s4 1966171168
    %v4160 = vunpack.c.0.s8 %v4159
    %v4161 = vlaneseq
    %v4162 = vshrl.u32 %v4161, 7
    %v4163 = vsub.s32 %v4160, %v4162
    %v4164 = vrot.slane %v4156, %v4163
    %v4165 = vcombine.high %v4164, %v4164
    %v4167 = vunpack.c.l.s4 1966171168
    %v4168 = vunpack.c.0.s8 %v4167
    %v4169 = vlaneseq
    %v4170 = vshrl.u32 %v4169, 7
    %v4171 = vsub.s32 %v4168, %v4170
    %v4172 = vrot.slane %v4164, %v4171
    %v4174 = vunpack.c.l.s4 1966171168
    %v4175 = vunpack.c.0.s8 %v4174
    %v4176 = vlaneseq
    %v4177 = vshrl.u32 %v4176, 7
    %v4178 = vsub.s32 %v4175, %v4177
    %v4179 = vrot.slane %v4165, %v4178
    %v4180 = vlaneseq
    %v4181 = vshrl.u32 %v4180, 7
    %v4182 = vsub.s32 0, %v4181
    %v4183 = vrot.slane %v4172, %v4182
    %v4184 = vlaneseq
    %v4185 = vshrl.u32 %v4184, 7
    %v4186 = vsub.s32 0, %v4185
    %v4187 = vrot.slane %v4179, %v4186
    %v4190 = vmul.f32 %v3775, %v4183
    %v4191 = vmul.f32 %v3776, %v4183
    %v4192 = vmul.f32 %v3777, %v4183
    %v4193 = vmul.f32 %v3778, %v4183
    %v4194 = vmul.f32 %v3779, %v4183
    %v4195 = vmul.f32 %v3780, %v4183
    %v4196 = vmul.f32 %v3781, %v4183
    %v4197 = vmul.f32 %v3782, %v4183
    %v4198 = vmul.f32 %v3783, %v4183
    %v4199 = vmul.f32 %v3784, %v4183
    %v4200 = vmul.f32 %v3785, %v4183
    %v4201 = vmul.f32 %v3786, %v4183
    %v4202 = vmul.f32 %v3787, %v4183
    %v4203 = vmul.f32 %v3788, %v4183
    %v4204 = vmul.f32 %v3789, %v4183
    %v4205 = vmul.f32 %v3790, %v4183
    %v4206 = vmul.f32 %v3791, %v4183
    %v4207 = vmul.f32 %v3792, %v4183
    %v4208 = vmul.f32 %v3793, %v4183
    %v4209 = vmul.f32 %v3794, %v4183
    %v4210 = vmul.f32 %v3795, %v4183
    %v4211 = vmul.f32 %v3796, %v4183
    %v4212 = vmul.f32 %v3797, %v4183
    %v4213 = vmul.f32 %v3798, %v4183
    %v4214 = vmul.f32 %v3799, %v4183
    %v4215 = vmul.f32 %v3800, %v4183
    %v4216 = vmul.f32 %v3801, %v4183
    %v4217 = vmul.f32 %v3802, %v4183
    %v4218 = vmul.f32 %v3803, %v4183
    %v4219 = vmul.f32 %v3804, %v4183
    %v4220 = vmul.f32 %v3805, %v4183
    %v4221 = vmul.f32 %v3806, %v4183
    %v4222 = vmul.f32 %v3807, %v4187
    %v4223 = vmul.f32 %v3808, %v4187
    %v4224 = vmul.f32 %v3809, %v4187
    %v4225 = vmul.f32 %v3810, %v4187
    %v4226 = vmul.f32 %v3811, %v4187
    %v4227 = vmul.f32 %v3812, %v4187
    %v4228 = vmul.f32 %v3813, %v4187
    %v4229 = vmul.f32 %v3814, %v4187
    %v4230 = vmul.f32 %v3815, %v4187
    %v4231 = vmul.f32 %v3816, %v4187
    %v4232 = vmul.f32 %v3817, %v4187
    %v4233 = vmul.f32 %v3818, %v4187
    %v4234 = vmul.f32 %v3819, %v4187
    %v4235 = vmul.f32 %v3820, %v4187
    %v4236 = vmul.f32 %v3821, %v4187
    %v4237 = vmul.f32 %v3822, %v4187
    %v4238 = vmul.f32 %v3823, %v4187
    %v4239 = vmul.f32 %v3824, %v4187
    %v4240 = vmul.f32 %v3825, %v4187
    %v4241 = vmul.f32 %v3826, %v4187
    %v4242 = vmul.f32 %v3827, %v4187
    %v4243 = vmul.f32 %v3828, %v4187
    %v4244 = vmul.f32 %v3829, %v4187
    %v4245 = vmul.f32 %v3830, %v4187
    %v4246 = vmul.f32 %v3831, %v4187
    %v4247 = vmul.f32 %v3832, %v4187
    %v4248 = vmul.f32 %v3833, %v4187
    %v4249 = vmul.f32 %v3834, %v4187
    %v4250 = vmul.f32 %v3835, %v4187
    %v4251 = vmul.f32 %v3836, %v4187
    %v4252 = vmul.f32 %v3837, %v4187
    %v4253 = vmul.f32 %v3838, %v4187
    %v4254 = vpack.c.bf16 %v4191, %v4190
    %v4255 = vpack.c.bf16 %v4193, %v4192
    %v4256 = vpack.c.bf16 %v4195, %v4194
    %v4257 = vpack.c.bf16 %v4197, %v4196
    %v4258 = vpack.c.bf16 %v4199, %v4198
    %v4259 = vpack.c.bf16 %v4201, %v4200
    %v4260 = vpack.c.bf16 %v4203, %v4202
    %v4261 = vpack.c.bf16 %v4205, %v4204
    %v4262 = vpack.c.bf16 %v4207, %v4206
    %v4263 = vpack.c.bf16 %v4209, %v4208
    %v4264 = vpack.c.bf16 %v4211, %v4210
    %v4265 = vpack.c.bf16 %v4213, %v4212
    %v4266 = vpack.c.bf16 %v4215, %v4214
    %v4267 = vpack.c.bf16 %v4217, %v4216
    %v4268 = vpack.c.bf16 %v4219, %v4218
    %v4269 = vpack.c.bf16 %v4221, %v4220
    %v4270 = vpack.c.bf16 %v4223, %v4222
    %v4271 = vpack.c.bf16 %v4225, %v4224
    %v4272 = vpack.c.bf16 %v4227, %v4226
    %v4273 = vpack.c.bf16 %v4229, %v4228
    %v4274 = vpack.c.bf16 %v4231, %v4230
    %v4275 = vpack.c.bf16 %v4233, %v4232
    %v4276 = vpack.c.bf16 %v4235, %v4234
    %v4277 = vpack.c.bf16 %v4237, %v4236
    %v4278 = vpack.c.bf16 %v4239, %v4238
    %v4279 = vpack.c.bf16 %v4241, %v4240
    %v4280 = vpack.c.bf16 %v4243, %v4242
    %v4281 = vpack.c.bf16 %v4245, %v4244
    %v4282 = vpack.c.bf16 %v4247, %v4246
    %v4283 = vpack.c.bf16 %v4249, %v4248
    %v4284 = vpack.c.bf16 %v4251, %v4250
    %v4285 = vpack.c.bf16 %v4253, %v4252
    %v4286 = vld [vmem:[%s5] sm:$0xf]
    %v4287 = vld [vmem:[%s5 + $0x4] sm:$0xf]
    %v4288 = vld [vmem:[%s5 + $0x8] sm:$0xf]
    %v4289 = vld [vmem:[%s5 + $0xc] sm:$0xf]
    %v4290 = vld [vmem:[%s5 + $0x10] sm:$0xf]
    %v4291 = vld [vmem:[%s5 + $0x14] sm:$0xf]
    %v4292 = vld [vmem:[%s5 + $0x18] sm:$0xf]
    %v4293 = vld [vmem:[%s5 + $0x1c] sm:$0xf]
    %v4294 = vlaneseq
    %v4295 = vshrl.u32 %v4294, 7
    %v4296 = vsub.s32 0, %v4295
    %v4297 = vrot.slane %v32, %v4296
    %v4306 = vunpack.c.l.b16 %v4286
    %v4307 = vunpack.c.l.b16 %v4287
    %v4308 = vunpack.c.l.b16 %v4288
    %v4309 = vunpack.c.l.b16 %v4289
    %v4310 = vunpack.c.l.b16 %v4290
    %v4311 = vunpack.c.l.b16 %v4291
    %v4312 = vunpack.c.l.b16 %v4292
    %v4313 = vunpack.c.l.b16 %v4293
    %v4314 = vpack.c.b16 %v4307, %v4306
    %v4315 = vpack.c.b16 %v4309, %v4308
    %v4316 = vpack.c.b16 %v4311, %v4310
    %v4317 = vpack.c.b16 %v4313, %v4312
    %v4323 = vsel %vm165, %v4254, 0
    %v4326 = vsel %vm165, %v4255, 0
    %v4329 = vsel %vm165, %v4256, 0
    %v4332 = vsel %vm165, %v4257, 0
    %v4335 = vsel %vm165, %v4258, 0
    %v4338 = vsel %vm165, %v4259, 0
    %v4341 = vsel %vm165, %v4260, 0
    %v4344 = vsel %vm165, %v4261, 0
    %v4347 = vsel %vm165, %v4262, 0
    %v4350 = vsel %vm165, %v4263, 0
    %v4353 = vsel %vm165, %v4264, 0
    %v4356 = vsel %vm165, %v4265, 0
    %v4359 = vsel %vm165, %v4266, 0
    %v4362 = vsel %vm165, %v4267, 0
    %v4365 = vsel %vm165, %v4268, 0
    %v4368 = vsel %vm165, %v4269, 0
    %v4371 = vsel %vm165, %v4270, 0
    %v4374 = vsel %vm165, %v4271, 0
    %v4377 = vsel %vm165, %v4272, 0
    %v4380 = vsel %vm165, %v4273, 0
    %v4383 = vsel %vm165, %v4274, 0
    %v4386 = vsel %vm165, %v4275, 0
    %v4389 = vsel %vm165, %v4276, 0
    %v4392 = vsel %vm165, %v4277, 0
    %v4395 = vsel %vm165, %v4278, 0
    %v4398 = vsel %vm165, %v4279, 0
    %v4401 = vsel %vm165, %v4280, 0
    %v4404 = vsel %vm165, %v4281, 0
    %v4407 = vsel %vm165, %v4282, 0
    %v4410 = vsel %vm165, %v4283, 0
    %v4413 = vsel %vm165, %v4284, 0
    %v4416 = vsel %vm165, %v4285, 0
    %4418 = vmatprep.subr.bf16.mxu0 0
    %4419 = vmatpush1.bf16.msra.mxu0 %v4314
    %4420 = vmatprep.subr.bf16.mxu0 0
    %4421 = vmatpush1.bf16.msra.mxu0 %v4315
    %4422 = vmatprep.subr.bf16.mxu0 0
    %4423 = vmatpush1.bf16.msra.mxu0 %v4316
    %4424 = vmatprep.subr.bf16.mxu0 0
    %4425 = vmatpush1.bf16.msra.mxu0 %v4317
    %4426 = vmatprep.subr.bf16.mxu0 0
    %4427 = vmatpush1.bf16.msra.mxu0 0
    %4428 = vmatprep.subr.bf16.mxu0 0
    %4429 = vmatpush1.bf16.msra.mxu0 0
    %4430 = vmatprep.subr.bf16.mxu0 0
    %4431 = vmatpush1.bf16.msra.mxu0 0
    %4432 = vmatprep.subr.bf16.mxu0 0
    %4433 = vmatpush1.bf16.msra.mxu0 0
    %4434 = vmatprep.subr.bf16.mxu0 0
    %4435 = vmatpush1.bf16.msra.mxu0 0
    %4436 = vmatprep.subr.bf16.mxu0 0
    %4437 = vmatpush1.bf16.msra.mxu0 0
    %4438 = vmatprep.subr.bf16.mxu0 0
    %4439 = vmatpush1.bf16.msra.mxu0 0
    %4440 = vmatprep.subr.bf16.mxu0 0
    %4441 = vmatpush1.bf16.msra.mxu0 0
    %4442 = vmatprep.subr.bf16.mxu0 0
    %4443 = vmatpush1.bf16.msra.mxu0 0
    %4444 = vmatprep.subr.bf16.mxu0 0
    %4445 = vmatpush1.bf16.msra.mxu0 0
    %4446 = vmatprep.subr.bf16.mxu0 0
    %4447 = vmatpush1.bf16.msra.mxu0 0
    %4448 = vmatprep.subr.bf16.mxu0 0
    %4449 = vmatpush1.bf16.msra.mxu0 0
    %4450 = vmatprep.mubr.bf16.mxu0 0
    %4451 = vmatmul.mubr.bf16.gmra.mrb[0].mxu0 %v4323
    %v4452 = vpop.f32.mrb[0].mxu0
    %v4453 = vadd.f32 %v4297, %v4452
    %v4454 = vpop.f32.mrb[0].mxu0
    %v4455 = vpop.f32.mrb[0].mxu0
    %v4456 = vadd.f32 %v4297, %v4455
    %v4457 = vpop.f32.mrb[0].mxu0
    %4458 = vmatprep.mubr.bf16.mxu0 0
    %4459 = vmatmul.mubr.bf16.gmra.mrb[0].mxu0 %v4326
    %v4460 = vpop.f32.mrb[0].mxu0
    %v4461 = vadd.f32 %v4297, %v4460
    %v4462 = vpop.f32.mrb[0].mxu0
    %v4463 = vpop.f32.mrb[0].mxu0
    %v4464 = vadd.f32 %v4297, %v4463
    %v4465 = vpop.f32.mrb[0].mxu0
    %4466 = vmatprep.mubr.bf16.mxu0 0
    %4467 = vmatmul.mubr.bf16.gmra.mrb[0].mxu0 %v4329
    %v4468 = vpop.f32.mrb[0].mxu0
    %v4469 = vadd.f32 %v4297, %v4468
    %v4470 = vpop.f32.mrb[0].mxu0
    %v4471 = vpop.f32.mrb[0].mxu0
    %v4472 = vadd.f32 %v4297, %v4471
    %v4473 = vpop.f32.mrb[0].mxu0
    %4474 = vmatprep.mubr.bf16.mxu0 0
    %4475 = vmatmul.mubr.bf16.gmra.mrb[0].mxu0 %v4332
    %v4476 = vpop.f32.mrb[0].mxu0
    %v4477 = vadd.f32 %v4297, %v4476
    %v4478 = vpop.f32.mrb[0].mxu0
    %v4479 = vpop.f32.mrb[0].mxu0
    %v4480 = vadd.f32 %v4297, %v4479
    %v4481 = vpop.f32.mrb[0].mxu0
    %4482 = vmatprep.mubr.bf16.mxu0 0
    %4483 = vmatmul.mubr.bf16.gmra.mrb[0].mxu0 %v4335
    %v4484 = vpop.f32.mrb[0].mxu0
    %v4485 = vadd.f32 %v4297, %v4484
    %v4486 = vpop.f32.mrb[0].mxu0
    %v4487 = vpop.f32.mrb[0].mxu0
    %v4488 = vadd.f32 %v4297, %v4487
    %v4489 = vpop.f32.mrb[0].mxu0
    %4490 = vmatprep.mubr.bf16.mxu0 0
    %4491 = vmatmul.mubr.bf16.gmra.mrb[0].mxu0 %v4338
    %v4492 = vpop.f32.mrb[0].mxu0
    %v4493 = vadd.f32 %v4297, %v4492
    %v4494 = vpop.f32.mrb[0].mxu0
    %v4495 = vpop.f32.mrb[0].mxu0
    %v4496 = vadd.f32 %v4297, %v4495
    %v4497 = vpop.f32.mrb[0].mxu0
    %4498 = vmatprep.mubr.bf16.mxu0 0
    %4499 = vmatmul.mubr.bf16.gmra.mrb[0].mxu0 %v4341
    %v4500 = vpop.f32.mrb[0].mxu0
    %v4501 = vadd.f32 %v4297, %v4500
    %v4502 = vpop.f32.mrb[0].mxu0
    %v4503 = vpop.f32.mrb[0].mxu0
    %v4504 = vadd.f32 %v4297, %v4503
    %v4505 = vpop.f32.mrb[0].mxu0
    %4506 = vmatprep.mubr.bf16.mxu0 0
    %4507 = vmatmul.mubr.bf16.gmra.mrb[0].mxu0 %v4344
    %v4508 = vpop.f32.mrb[0].mxu0
    %v4509 = vadd.f32 %v4297, %v4508
    %v4510 = vpop.f32.mrb[0].mxu0
    %v4511 = vpop.f32.mrb[0].mxu0
    %v4512 = vadd.f32 %v4297, %v4511
    %v4513 = vpop.f32.mrb[0].mxu0
    %4514 = vmatprep.mubr.bf16.mxu0 0
    %4515 = vmatmul.mubr.bf16.gmra.mrb[0].mxu0 %v4347
    %v4516 = vpop.f32.mrb[0].mxu0
    %v4517 = vadd.f32 %v4297, %v4516
    %v4518 = vpop.f32.mrb[0].mxu0
    %v4519 = vpop.f32.mrb[0].mxu0
    %v4520 = vadd.f32 %v4297, %v4519
    %v4521 = vpop.f32.mrb[0].mxu0
    %4522 = vmatprep.mubr.bf16.mxu0 0
    %4523 = vmatmul.mubr.bf16.gmra.mrb[0].mxu0 %v4350
    %v4524 = vpop.f32.mrb[0].mxu0
    %v4525 = vadd.f32 %v4297, %v4524
    %v4526 = vpop.f32.mrb[0].mxu0
    %v4527 = vpop.f32.mrb[0].mxu0
    %v4528 = vadd.f32 %v4297, %v4527
    %v4529 = vpop.f32.mrb[0].mxu0
    %4530 = vmatprep.mubr.bf16.mxu0 0
    %4531 = vmatmul.mubr.bf16.gmra.mrb[0].mxu0 %v4353
    %v4532 = vpop.f32.mrb[0].mxu0
    %v4533 = vadd.f32 %v4297, %v4532
    %v4534 = vpop.f32.mrb[0].mxu0
    %v4535 = vpop.f32.mrb[0].mxu0
    %v4536 = vadd.f32 %v4297, %v4535
    %v4537 = vpop.f32.mrb[0].mxu0
    %4538 = vmatprep.mubr.bf16.mxu0 0
    %4539 = vmatmul.mubr.bf16.gmra.mrb[0].mxu0 %v4356
    %v4540 = vpop.f32.mrb[0].mxu0
    %v4541 = vadd.f32 %v4297, %v4540
    %v4542 = vpop.f32.mrb[0].mxu0
    %v4543 = vpop.f32.mrb[0].mxu0
    %v4544 = vadd.f32 %v4297, %v4543
    %v4545 = vpop.f32.mrb[0].mxu0
    %4546 = vmatprep.mubr.bf16.mxu0 0
    %4547 = vmatmul.mubr.bf16.gmra.mrb[0].mxu0 %v4359
    %v4548 = vpop.f32.mrb[0].mxu0
    %v4549 = vadd.f32 %v4297, %v4548
    %v4550 = vpop.f32.mrb[0].mxu0
    %v4551 = vpop.f32.mrb[0].mxu0
    %v4552 = vadd.f32 %v4297, %v4551
    %v4553 = vpop.f32.mrb[0].mxu0
    %4554 = vmatprep.mubr.bf16.mxu0 0
    %4555 = vmatmul.mubr.bf16.gmra.mrb[0].mxu0 %v4362
    %v4556 = vpop.f32.mrb[0].mxu0
    %v4557 = vadd.f32 %v4297, %v4556
    %v4558 = vpop.f32.mrb[0].mxu0
    %v4559 = vpop.f32.mrb[0].mxu0
    %v4560 = vadd.f32 %v4297, %v4559
    %v4561 = vpop.f32.mrb[0].mxu0
    %4562 = vmatprep.mubr.bf16.mxu0 0
    %4563 = vmatmul.mubr.bf16.gmra.mrb[0].mxu0 %v4365
    %v4564 = vpop.f32.mrb[0].mxu0
    %v4565 = vadd.f32 %v4297, %v4564
    %v4566 = vpop.f32.mrb[0].mxu0
    %v4567 = vpop.f32.mrb[0].mxu0
    %v4568 = vadd.f32 %v4297, %v4567
    %v4569 = vpop.f32.mrb[0].mxu0
    %4570 = vmatprep.mubr.bf16.mxu0 0
    %4571 = vmatmul.mubr.bf16.gmra.mrb[0].mxu0 %v4368
    %v4572 = vpop.f32.mrb[0].mxu0
    %v4573 = vadd.f32 %v4297, %v4572
    %v4574 = vpop.f32.mrb[0].mxu0
    %v4575 = vpop.f32.mrb[0].mxu0
    %v4576 = vadd.f32 %v4297, %v4575
    %v4577 = vpop.f32.mrb[0].mxu0
    %4578 = vmatprep.mubr.bf16.mxu0 0
    %4579 = vmatmul.mubr.bf16.gmra.mrb[0].mxu0 %v4371
    %v4580 = vpop.f32.mrb[0].mxu0
    %v4581 = vadd.f32 %v4297, %v4580
    %v4582 = vpop.f32.mrb[0].mxu0
    %v4583 = vpop.f32.mrb[0].mxu0
    %v4584 = vadd.f32 %v4297, %v4583
    %v4585 = vpop.f32.mrb[0].mxu0
    %4586 = vmatprep.mubr.bf16.mxu0 0
    %4587 = vmatmul.mubr.bf16.gmra.mrb[0].mxu0 %v4374
    %v4588 = vpop.f32.mrb[0].mxu0
    %v4589 = vadd.f32 %v4297, %v4588
    %v4590 = vpop.f32.mrb[0].mxu0
    %v4591 = vpop.f32.mrb[0].mxu0
    %v4592 = vadd.f32 %v4297, %v4591
    %v4593 = vpop.f32.mrb[0].mxu0
    %4594 = vmatprep.mubr.bf16.mxu0 0
    %4595 = vmatmul.mubr.bf16.gmra.mrb[0].mxu0 %v4377
    %v4596 = vpop.f32.mrb[0].mxu0
    %v4597 = vadd.f32 %v4297, %v4596
    %v4598 = vpop.f32.mrb[0].mxu0
    %v4599 = vpop.f32.mrb[0].mxu0
    %v4600 = vadd.f32 %v4297, %v4599
    %v4601 = vpop.f32.mrb[0].mxu0
    %4602 = vmatprep.mubr.bf16.mxu0 0
    %4603 = vmatmul.mubr.bf16.gmra.mrb[0].mxu0 %v4380
    %v4604 = vpop.f32.mrb[0].mxu0
    %v4605 = vadd.f32 %v4297, %v4604
    %v4606 = vpop.f32.mrb[0].mxu0
    %v4607 = vpop.f32.mrb[0].mxu0
    %v4608 = vadd.f32 %v4297, %v4607
    %v4609 = vpop.f32.mrb[0].mxu0
    %4610 = vmatprep.mubr.bf16.mxu0 0
    %4611 = vmatmul.mubr.bf16.gmra.mrb[0].mxu0 %v4383
    %v4612 = vpop.f32.mrb[0].mxu0
    %v4613 = vadd.f32 %v4297, %v4612
    %v4614 = vpop.f32.mrb[0].mxu0
    %v4615 = vpop.f32.mrb[0].mxu0
    %v4616 = vadd.f32 %v4297, %v4615
    %v4617 = vpop.f32.mrb[0].mxu0
    %4618 = vmatprep.mubr.bf16.mxu0 0
    %4619 = vmatmul.mubr.bf16.gmra.mrb[0].mxu0 %v4386
    %v4620 = vpop.f32.mrb[0].mxu0
    %v4621 = vadd.f32 %v4297, %v4620
    %v4622 = vpop.f32.mrb[0].mxu0
    %v4623 = vpop.f32.mrb[0].mxu0
    %v4624 = vadd.f32 %v4297, %v4623
    %v4625 = vpop.f32.mrb[0].mxu0
    %4626 = vmatprep.mubr.bf16.mxu0 0
    %4627 = vmatmul.mubr.bf16.gmra.mrb[0].mxu0 %v4389
    %v4628 = vpop.f32.mrb[0].mxu0
    %v4629 = vadd.f32 %v4297, %v4628
    %v4630 = vpop.f32.mrb[0].mxu0
    %v4631 = vpop.f32.mrb[0].mxu0
    %v4632 = vadd.f32 %v4297, %v4631
    %v4633 = vpop.f32.mrb[0].mxu0
    %4634 = vmatprep.mubr.bf16.mxu0 0
    %4635 = vmatmul.mubr.bf16.gmra.mrb[0].mxu0 %v4392
    %v4636 = vpop.f32.mrb[0].mxu0
    %v4637 = vadd.f32 %v4297, %v4636
    %v4638 = vpop.f32.mrb[0].mxu0
    %v4639 = vpop.f32.mrb[0].mxu0
    %v4640 = vadd.f32 %v4297, %v4639
    %v4641 = vpop.f32.mrb[0].mxu0
    %4642 = vmatprep.mubr.bf16.mxu0 0
    %4643 = vmatmul.mubr.bf16.gmra.mrb[0].mxu0 %v4395
    %v4644 = vpop.f32.mrb[0].mxu0
    %v4645 = vadd.f32 %v4297, %v4644
    %v4646 = vpop.f32.mrb[0].mxu0
    %v4647 = vpop.f32.mrb[0].mxu0
    %v4648 = vadd.f32 %v4297, %v4647
    %v4649 = vpop.f32.mrb[0].mxu0
    %4650 = vmatprep.mubr.bf16.mxu0 0
    %4651 = vmatmul.mubr.bf16.gmra.mrb[0].mxu0 %v4398
    %v4652 = vpop.f32.mrb[0].mxu0
    %v4653 = vadd.f32 %v4297, %v4652
    %v4654 = vpop.f32.mrb[0].mxu0
    %v4655 = vpop.f32.mrb[0].mxu0
    %v4656 = vadd.f32 %v4297, %v4655
    %v4657 = vpop.f32.mrb[0].mxu0
    %4658 = vmatprep.mubr.bf16.mxu0 0
    %4659 = vmatmul.mubr.bf16.gmra.mrb[0].mxu0 %v4401
    %v4660 = vpop.f32.mrb[0].mxu0
    %v4661 = vadd.f32 %v4297, %v4660
    %v4662 = vpop.f32.mrb[0].mxu0
    %v4663 = vpop.f32.mrb[0].mxu0
    %v4664 = vadd.f32 %v4297, %v4663
    %v4665 = vpop.f32.mrb[0].mxu0
    %4666 = vmatprep.mubr.bf16.mxu0 0
    %4667 = vmatmul.mubr.bf16.gmra.mrb[0].mxu0 %v4404
    %v4668 = vpop.f32.mrb[0].mxu0
    %v4669 = vadd.f32 %v4297, %v4668
    %v4670 = vpop.f32.mrb[0].mxu0
    %v4671 = vpop.f32.mrb[0].mxu0
    %v4672 = vadd.f32 %v4297, %v4671
    %v4673 = vpop.f32.mrb[0].mxu0
    %4674 = vmatprep.mubr.bf16.mxu0 0
    %4675 = vmatmul.mubr.bf16.gmra.mrb[0].mxu0 %v4407
    %v4676 = vpop.f32.mrb[0].mxu0
    %v4677 = vadd.f32 %v4297, %v4676
    %v4678 = vpop.f32.mrb[0].mxu0
    %v4679 = vpop.f32.mrb[0].mxu0
    %v4680 = vadd.f32 %v4297, %v4679
    %v4681 = vpop.f32.mrb[0].mxu0
    %4682 = vmatprep.mubr.bf16.mxu0 0
    %4683 = vmatmul.mubr.bf16.gmra.mrb[0].mxu0 %v4410
    %v4684 = vpop.f32.mrb[0].mxu0
    %v4685 = vadd.f32 %v4297, %v4684
    %v4686 = vpop.f32.mrb[0].mxu0
    %v4687 = vpop.f32.mrb[0].mxu0
    %v4688 = vadd.f32 %v4297, %v4687
    %v4689 = vpop.f32.mrb[0].mxu0
    %4690 = vmatprep.mubr.bf16.mxu0 0
    %4691 = vmatmul.mubr.bf16.gmra.mrb[0].mxu0 %v4413
    %v4692 = vpop.f32.mrb[0].mxu0
    %v4693 = vadd.f32 %v4297, %v4692
    %v4694 = vpop.f32.mrb[0].mxu0
    %v4695 = vpop.f32.mrb[0].mxu0
    %v4696 = vadd.f32 %v4297, %v4695
    %v4697 = vpop.f32.mrb[0].mxu0
    %4698 = vmatprep.mubr.bf16.mxu0 0
    %4699 = vmatmul.mubr.bf16.gmra.mrb[0].mxu0 %v4416
    %v4700 = vpop.f32.mrb[0].mxu0
    %v4701 = vadd.f32 %v4297, %v4700
    %v4702 = vpop.f32.mrb[0].mxu0
    %v4703 = vpop.f32.mrb[0].mxu0
    %v4704 = vadd.f32 %v4297, %v4703
    %v4705 = vpop.f32.mrb[0].mxu0
    %4706 = vdwg.mxu0
    %v4707 = vadd.f32 %v4453, %v33
    %v4708 = vadd.f32 %v4456, %v34
    %v4709 = vadd.f32 %v4461, %v35
    %v4710 = vadd.f32 %v4464, %v36
    %v4711 = vadd.f32 %v4469, %v37
    %v4712 = vadd.f32 %v4472, %v38
    %v4713 = vadd.f32 %v4477, %v39
    %v4714 = vadd.f32 %v4480, %v40
    %v4715 = vadd.f32 %v4485, %v41
    %v4716 = vadd.f32 %v4488, %v42
    %v4717 = vadd.f32 %v4493, %v43
    %v4718 = vadd.f32 %v4496, %v44
    %v4719 = vadd.f32 %v4501, %v45
    %v4720 = vadd.f32 %v4504, %v46
    %v4721 = vadd.f32 %v4509, %v47
    %v4722 = vadd.f32 %v4512, %v48
    %v4723 = vadd.f32 %v4517, %v49
    %v4724 = vadd.f32 %v4520, %v50
    %v4725 = vadd.f32 %v4525, %v51
    %v4726 = vadd.f32 %v4528, %v52
    %v4727 = vadd.f32 %v4533, %v53
    %v4728 = vadd.f32 %v4536, %v54
    %v4729 = vadd.f32 %v4541, %v55
    %v4730 = vadd.f32 %v4544, %v56
    %v4731 = vadd.f32 %v4549, %v57
    %v4732 = vadd.f32 %v4552, %v58
    %v4733 = vadd.f32 %v4557, %v59
    %v4734 = vadd.f32 %v4560, %v60
    %v4735 = vadd.f32 %v4565, %v61
    %v4736 = vadd.f32 %v4568, %v62
    %v4737 = vadd.f32 %v4573, %v63
    %v4738 = vadd.f32 %v4576, %v64
    %v4739 = vadd.f32 %v4581, %v65
    %v4740 = vadd.f32 %v4584, %v66
    %v4741 = vadd.f32 %v4589, %v67
    %v4742 = vadd.f32 %v4592, %v68
    %v4743 = vadd.f32 %v4597, %v69
    %v4744 = vadd.f32 %v4600, %v70
    %v4745 = vadd.f32 %v4605, %v71
    %v4746 = vadd.f32 %v4608, %v72
    %v4747 = vadd.f32 %v4613, %v73
    %v4748 = vadd.f32 %v4616, %v74
    %v4749 = vadd.f32 %v4621, %v75
    %v4750 = vadd.f32 %v4624, %v76
    %v4751 = vadd.f32 %v4629, %v77
    %v4752 = vadd.f32 %v4632, %v78
    %v4753 = vadd.f32 %v4637, %v79
    %v4754 = vadd.f32 %v4640, %v80
    %v4755 = vadd.f32 %v4645, %v81
    %v4756 = vadd.f32 %v4648, %v82
    %v4757 = vadd.f32 %v4653, %v83
    %v4758 = vadd.f32 %v4656, %v84
    %v4759 = vadd.f32 %v4661, %v85
    %v4760 = vadd.f32 %v4664, %v86
    %v4761 = vadd.f32 %v4669, %v87
    %v4762 = vadd.f32 %v4672, %v88
    %v4763 = vadd.f32 %v4677, %v89
    %v4764 = vadd.f32 %v4680, %v90
    %v4765 = vadd.f32 %v4685, %v91
    %v4766 = vadd.f32 %v4688, %v92
    %v4767 = vadd.f32 %v4693, %v93
    %v4768 = vadd.f32 %v4696, %v94
    %v4769 = vadd.f32 %v4701, %v95
    %v4770 = vadd.f32 %v4704, %v96
    %v4771 = vmax.f32 %v4707, 0.0
    %v4772 = vmax.f32 %v4708, 0.0
    %v4773 = vmax.f32 %v4709, 0.0
    %v4774 = vmax.f32 %v4710, 0.0
    %v4775 = vmax.f32 %v4711, 0.0
    %v4776 = vmax.f32 %v4712, 0.0
    %v4777 = vmax.f32 %v4713, 0.0
    %v4778 = vmax.f32 %v4714, 0.0
    %v4779 = vmax.f32 %v4715, 0.0
    %v4780 = vmax.f32 %v4716, 0.0
    %v4781 = vmax.f32 %v4717, 0.0
    %v4782 = vmax.f32 %v4718, 0.0
    %v4783 = vmax.f32 %v4719, 0.0
    %v4784 = vmax.f32 %v4720, 0.0
    %v4785 = vmax.f32 %v4721, 0.0
    %v4786 = vmax.f32 %v4722, 0.0
    %v4787 = vmax.f32 %v4723, 0.0
    %v4788 = vmax.f32 %v4724, 0.0
    %v4789 = vmax.f32 %v4725, 0.0
    %v4790 = vmax.f32 %v4726, 0.0
    %v4791 = vmax.f32 %v4727, 0.0
    %v4792 = vmax.f32 %v4728, 0.0
    %v4793 = vmax.f32 %v4729, 0.0
    %v4794 = vmax.f32 %v4730, 0.0
    %v4795 = vmax.f32 %v4731, 0.0
    %v4796 = vmax.f32 %v4732, 0.0
    %v4797 = vmax.f32 %v4733, 0.0
    %v4798 = vmax.f32 %v4734, 0.0
    %v4799 = vmax.f32 %v4735, 0.0
    %v4800 = vmax.f32 %v4736, 0.0
    %v4801 = vmax.f32 %v4737, 0.0
    %v4802 = vmax.f32 %v4738, 0.0
    %v4803 = vmax.f32 %v4739, 0.0
    %v4804 = vmax.f32 %v4740, 0.0
    %v4805 = vmax.f32 %v4741, 0.0
    %v4806 = vmax.f32 %v4742, 0.0
    %v4807 = vmax.f32 %v4743, 0.0
    %v4808 = vmax.f32 %v4744, 0.0
    %v4809 = vmax.f32 %v4745, 0.0
    %v4810 = vmax.f32 %v4746, 0.0
    %v4811 = vmax.f32 %v4747, 0.0
    %v4812 = vmax.f32 %v4748, 0.0
    %v4813 = vmax.f32 %v4749, 0.0
    %v4814 = vmax.f32 %v4750, 0.0
    %v4815 = vmax.f32 %v4751, 0.0
    %v4816 = vmax.f32 %v4752, 0.0
    %v4817 = vmax.f32 %v4753, 0.0
    %v4818 = vmax.f32 %v4754, 0.0
    %v4819 = vmax.f32 %v4755, 0.0
    %v4820 = vmax.f32 %v4756, 0.0
    %v4821 = vmax.f32 %v4757, 0.0
    %v4822 = vmax.f32 %v4758, 0.0
    %v4823 = vmax.f32 %v4759, 0.0
    %v4824 = vmax.f32 %v4760, 0.0
    %v4825 = vmax.f32 %v4761, 0.0
    %v4826 = vmax.f32 %v4762, 0.0
    %v4827 = vmax.f32 %v4763, 0.0
    %v4828 = vmax.f32 %v4764, 0.0
    %v4829 = vmax.f32 %v4765, 0.0
    %v4830 = vmax.f32 %v4766, 0.0
    %v4831 = vmax.f32 %v4767, 0.0
    %v4832 = vmax.f32 %v4768, 0.0
    %v4833 = vmax.f32 %v4769, 0.0
    %v4834 = vmax.f32 %v4770, 0.0
    %4835 = vst.msk [vmem:[#allocation3] sm:$0xff] %vm165, %v4771
    %4836 = vst.msk [vmem:[#allocation3 + $0x8] sm:$0xff] %vm165, %v4772
    %4837 = vst.msk [vmem:[#allocation3 + $0x10] sm:$0xff] %vm165, %v4773
    %4838 = vst.msk [vmem:[#allocation3 + $0x18] sm:$0xff] %vm165, %v4774
    %4839 = vst.msk [vmem:[#allocation3 + $0x20] sm:$0xff] %vm165, %v4775
    %4840 = vst.msk [vmem:[#allocation3 + $0x28] sm:$0xff] %vm165, %v4776
    %4841 = vst.msk [vmem:[#allocation3 + $0x30] sm:$0xff] %vm165, %v4777
    %4842 = vst.msk [vmem:[#allocation3 + $0x38] sm:$0xff] %vm165, %v4778
    %4843 = vst.msk [vmem:[#allocation3 + $0x40] sm:$0xff] %vm165, %v4779
    %4844 = vst.msk [vmem:[#allocation3 + $0x48] sm:$0xff] %vm165, %v4780
    %4845 = vst.msk [vmem:[#allocation3 + $0x50] sm:$0xff] %vm165, %v4781
    %4846 = vst.msk [vmem:[#allocation3 + $0x58] sm:$0xff] %vm165, %v4782
    %4847 = vst.msk [vmem:[#allocation3 + $0x60] sm:$0xff] %vm165, %v4783
    %4848 = vst.msk [vmem:[#allocation3 + $0x68] sm:$0xff] %vm165, %v4784
    %4849 = vst.msk [vmem:[#allocation3 + $0x70] sm:$0xff] %vm165, %v4785
    %4850 = vst.msk [vmem:[#allocation3 + $0x78] sm:$0xff] %vm165, %v4786
    %4851 = vst.msk [vmem:[#allocation3 + $0x80] sm:$0xff] %vm165, %v4787
    %4852 = vst.msk [vmem:[#allocation3 + $0x88] sm:$0xff] %vm165, %v4788
    %4853 = vst.msk [vmem:[#allocation3 + $0x90] sm:$0xff] %vm165, %v4789
    %4854 = vst.msk [vmem:[#allocation3 + $0x98] sm:$0xff] %vm165, %v4790
    %4855 = vst.msk [vmem:[#allocation3 + $0xa0] sm:$0xff] %vm165, %v4791
    %4856 = vst.msk [vmem:[#allocation3 + $0xa8] sm:$0xff] %vm165, %v4792
    %4857 = vst.msk [vmem:[#allocation3 + $0xb0] sm:$0xff] %vm165, %v4793
    %4858 = vst.msk [vmem:[#allocation3 + $0xb8] sm:$0xff] %vm165, %v4794
    %4859 = vst.msk [vmem:[#allocation3 + $0xc0] sm:$0xff] %vm165, %v4795
    %4860 = vst.msk [vmem:[#allocation3 + $0xc8] sm:$0xff] %vm165, %v4796
    %4861 = vst.msk [vmem:[#allocation3 + $0xd0] sm:$0xff] %vm165, %v4797
    %4862 = vst.msk [vmem:[#allocation3 + $0xd8] sm:$0xff] %vm165, %v4798
    %4863 = vst.msk [vmem:[#allocation3 + $0xe0] sm:$0xff] %vm165, %v4799
    %4864 = vst.msk [vmem:[#allocation3 + $0xe8] sm:$0xff] %vm165, %v4800
    %4865 = vst.msk [vmem:[#allocation3 + $0xf0] sm:$0xff] %vm165, %v4801
    %4866 = vst.msk [vmem:[#allocation3 + $0xf8] sm:$0xff] %vm165, %v4802
    %4867 = vst.msk [vmem:[#allocation3 + $0x100] sm:$0xff] %vm165, %v4803
    %4868 = vst.msk [vmem:[#allocation3 + $0x108] sm:$0xff] %vm165, %v4804
    %4869 = vst.msk [vmem:[#allocation3 + $0x110] sm:$0xff] %vm165, %v4805
    %4870 = vst.msk [vmem:[#allocation3 + $0x118] sm:$0xff] %vm165, %v4806
    %4871 = vst.msk [vmem:[#allocation3 + $0x120] sm:$0xff] %vm165, %v4807
    %4872 = vst.msk [vmem:[#allocation3 + $0x128] sm:$0xff] %vm165, %v4808
    %4873 = vst.msk [vmem:[#allocation3 + $0x130] sm:$0xff] %vm165, %v4809
    %4874 = vst.msk [vmem:[#allocation3 + $0x138] sm:$0xff] %vm165, %v4810
    %4875 = vst.msk [vmem:[#allocation3 + $0x140] sm:$0xff] %vm165, %v4811
    %4876 = vst.msk [vmem:[#allocation3 + $0x148] sm:$0xff] %vm165, %v4812
    %4877 = vst.msk [vmem:[#allocation3 + $0x150] sm:$0xff] %vm165, %v4813
    %4878 = vst.msk [vmem:[#allocation3 + $0x158] sm:$0xff] %vm165, %v4814
    %4879 = vst.msk [vmem:[#allocation3 + $0x160] sm:$0xff] %vm165, %v4815
    %4880 = vst.msk [vmem:[#allocation3 + $0x168] sm:$0xff] %vm165, %v4816
    %4881 = vst.msk [vmem:[#allocation3 + $0x170] sm:$0xff] %vm165, %v4817
    %4882 = vst.msk [vmem:[#allocation3 + $0x178] sm:$0xff] %vm165, %v4818
    %4883 = vst.msk [vmem:[#allocation3 + $0x180] sm:$0xff] %vm165, %v4819
    %4884 = vst.msk [vmem:[#allocation3 + $0x188] sm:$0xff] %vm165, %v4820
    %4885 = vst.msk [vmem:[#allocation3 + $0x190] sm:$0xff] %vm165, %v4821
    %4886 = vst.msk [vmem:[#allocation3 + $0x198] sm:$0xff] %vm165, %v4822
    %4887 = vst.msk [vmem:[#allocation3 + $0x1a0] sm:$0xff] %vm165, %v4823
    %4888 = vst.msk [vmem:[#allocation3 + $0x1a8] sm:$0xff] %vm165, %v4824
    %4889 = vst.msk [vmem:[#allocation3 + $0x1b0] sm:$0xff] %vm165, %v4825
    %4890 = vst.msk [vmem:[#allocation3 + $0x1b8] sm:$0xff] %vm165, %v4826
    %4891 = vst.msk [vmem:[#allocation3 + $0x1c0] sm:$0xff] %vm165, %v4827
    %4892 = vst.msk [vmem:[#allocation3 + $0x1c8] sm:$0xff] %vm165, %v4828
    %4893 = vst.msk [vmem:[#allocation3 + $0x1d0] sm:$0xff] %vm165, %v4829
    %4894 = vst.msk [vmem:[#allocation3 + $0x1d8] sm:$0xff] %vm165, %v4830
    %4895 = vst.msk [vmem:[#allocation3 + $0x1e0] sm:$0xff] %vm165, %v4831
    %4896 = vst.msk [vmem:[#allocation3 + $0x1e8] sm:$0xff] %vm165, %v4832
    %4897 = vst.msk [vmem:[#allocation3 + $0x1f0] sm:$0xff] %vm165, %v4833
    %4898 = vst.msk [vmem:[#allocation3 + $0x1f8] sm:$0xff] %vm165, %v4834
    // Predicated region
    $region30: #{_bottleneck_forward.1} parent=1 // pred_check
      _
    $region31: #{_bottleneck_forward.1} parent=1 // pred_check_branch
      %4900 = sbr.rel (0) target = $region33
    $region32: #{_bottleneck_forward.1} parent=1 // pred_region
      %s4902 = ssub.s32 8192, 8192
      %4903 = vsyncadd [#allocation4], %s4902
      %s4904 = sshll.u32 [#allocation3], 4
      %s4905 = int_to_ptr.vmem [resolvable:$true] %s4904
      %4910 = dma.vmem_to_hbm [thread:$0]  %s4905, 8192, %s7, [#allocation4], 128, 128, 8
    $region33: #{_bottleneck_forward.1} parent=1 // pred_fallthru
      _
    // Predicated region
    $region34: #{_bottleneck_forward.1} parent=1 // pred_check
      _
    $region35: #{_bottleneck_forward.1} parent=1 // pred_check_branch
      %4912 = sbr.rel (0) target = $region37
    $region36: #{_bottleneck_forward.1} parent=1 // pred_region
      %4913 = dma.done [#allocation4], 8192
    $region37: #{_bottleneck_forward.1} parent=1 // pred_fallthru
      _
    %4914 = vsyncpa [#allocation4], 1

</llo_original>
